<compile_context>
chip_gen: v6e
topology: v6e:2x2x1
jax: 0.10.0
libtpu: 0.0.40
codegen_flags: <defaults>
</compile_context>

<pallas_src>
import functools

import jax
import jax.numpy as jnp
from jax import lax
from jax.experimental import pallas as pl
from jax.experimental.pallas import tpu as pltpu

BN_EPS = 1e-5
K_SIZE = 3
PAD = 1


# ---------------------------------------------------------------------------
# Pallas kernels
# ---------------------------------------------------------------------------

def _conv_bias_relu_bn_kernel(p_ref, w_ref, b_ref, g_ref, beta_ref, o_ref,
                              *, apply_bn, m_valid):
    """(Cout, M) = BatchNorm(relu(W @ P + b)); lane axis = M (lane-dense)."""
    y = jnp.dot(w_ref[...], p_ref[...], preferred_element_type=jnp.float32)
    y = y + b_ref[...]
    y = jnp.maximum(y, 0.0)
    if apply_bn:
        inv_m = 1.0 / float(m_valid)
        mean = jnp.sum(y, axis=1, keepdims=True) * inv_m
        d = y - mean
        var = jnp.sum(d * d, axis=1, keepdims=True) * inv_m   # biased (training mode)
        y = d * lax.rsqrt(var + BN_EPS) * g_ref[...] + beta_ref[...]
    o_ref[...] = y.astype(o_ref.dtype)


def fused_conv_bias_relu_bn(p_km, w_ck, bias, gamma, beta, *, apply_bn):
    """One fused pallas_call per conv layer; whole layer resident in VMEM."""
    K, M = p_km.shape
    C = w_ck.shape[0]
    kernel = functools.partial(_conv_bias_relu_bn_kernel,
                               apply_bn=apply_bn, m_valid=M)
    return pl.pallas_call(
        kernel,
        out_shape=jax.ShapeDtypeStruct((C, M), jnp.float32),
        grid=(1,),
        in_specs=[
            pl.BlockSpec((K, M), lambda i: (0, 0)),
            pl.BlockSpec((C, K), lambda i: (0, 0)),
            pl.BlockSpec((C, 1), lambda i: (0, 0)),
            pl.BlockSpec((C, 1), lambda i: (0, 0)),
            pl.BlockSpec((C, 1), lambda i: (0, 0)),
        ],
        out_specs=pl.BlockSpec((C, M), lambda i: (0, 0)),
        compiler_params=pltpu.CompilerParams(
            dimension_semantics=("arbitrary",)),
    )(p_km, w_ck, bias, gamma, beta)


def _fc_stack_kernel(x_ref, w1_ref, b1_ref, w2_ref, b2_ref,
                     w3_ref, b3_ref, w4_ref, b4_ref, o_ref):
    """fc1 -> fc2 -> fc3 -> fc4 (no nonlinearities), all resident in VMEM."""
    h = jnp.dot(x_ref[...], w1_ref[...],
                preferred_element_type=jnp.float32) + b1_ref[...]
    h = jnp.dot(h, w2_ref[...], preferred_element_type=jnp.float32) + b2_ref[...]
    h = jnp.dot(h, w3_ref[...], preferred_element_type=jnp.float32) + b3_ref[...]
    o_ref[...] = (jnp.dot(h, w4_ref[...], preferred_element_type=jnp.float32)
                  + b4_ref[...]).astype(o_ref.dtype)


def fused_linear_decoder(x_flat, fc_params):
    """All four Linear layers of DeeperLinearInkDecoder in a single kernel."""
    N = x_flat.shape[0]
    (w1, b1), (w2, b2), (w3, b3), (w4, b4) = fc_params
    h1, h2, h3, out_n = w1.shape[0], w2.shape[0], w3.shape[0], w4.shape[0]
    args = [
        x_flat,
        w1.T, b1.reshape(1, h1),
        w2.T, b2.reshape(1, h2),
        w3.T, b3.reshape(1, h3),
        w4.T, b4.reshape(1, out_n),
    ]
    in_specs = [pl.BlockSpec(a.shape, lambda i: (0, 0)) for a in args]
    return pl.pallas_call(
        _fc_stack_kernel,
        out_shape=jax.ShapeDtypeStruct((N, out_n), jnp.float32),
        grid=(1,),
        in_specs=in_specs,
        out_specs=pl.BlockSpec((N, out_n), lambda i: (0, 0)),
        compiler_params=pltpu.CompilerParams(
            dimension_semantics=("arbitrary",)),
    )(*args)


# ---------------------------------------------------------------------------
# Host-side layer wrappers (data-movement glue; matmuls live in the kernels)
# ---------------------------------------------------------------------------

def _conv_bn_layer(x_ncdhw, w, b, gamma, beta, *, stride, apply_bn):
    """Conv3d(k=3, p=1, stride) + ReLU + training-mode BatchNorm3d, NCDHW."""
    N, Cin, D, H, W = x_ncdhw.shape
    Cout = w.shape[0]
    OD = (D + 2 * PAD - K_SIZE) // stride + 1
    OH = (H + 2 * PAD - K_SIZE) // stride + 1
    OW = (W + 2 * PAD - K_SIZE) // stride + 1
    xp = jnp.pad(x_ncdhw, ((0, 0), (0, 0), (PAD, PAD), (PAD, PAD), (PAD, PAD)))

    # Strided-direct-conv im2col in (K, M) layout:
    #   rows   k = ((kd*3+kh)*3+kw)*Cin + cin
    #   cols   m = n*OD*OH*OW + od*OH*OW + oh*OW + ow   (lane axis)
    taps = []
    for kd in range(K_SIZE):
        for kh in range(K_SIZE):
            for kw in range(K_SIZE):
                sl = lax.slice(
                    xp,
                    (0, 0, kd, kh, kw),
                    (N, Cin,
                     kd + stride * (OD - 1) + 1,
                     kh + stride * (OH - 1) + 1,
                     kw + stride * (OW - 1) + 1),
                    (1, 1, stride, stride, stride))
                taps.append(jnp.transpose(sl, (1, 0, 2, 3, 4)))  # (Cin,N,OD,OH,OW)
    patches = jnp.stack(taps, axis=0).reshape(K_SIZE ** 3 * Cin, N * OD * OH * OW)
    w_mat = jnp.transpose(w, (0, 2, 3, 4, 1)).reshape(Cout, K_SIZE ** 3 * Cin)

    out_cm = fused_conv_bias_relu_bn(
        patches.astype(jnp.bfloat16), w_mat.astype(jnp.bfloat16),
        b.reshape(Cout, 1), gamma.reshape(Cout, 1), beta.reshape(Cout, 1),
        apply_bn=apply_bn)
    return jnp.transpose(out_cm.reshape(Cout, N, OD, OH, OW), (1, 0, 2, 3, 4))


def deeper_ink_classifier_forward(x_ncdhw, params, batch_norm=True):
    """Matches DeeperInkClassifier3DCNN.forward (training-mode BatchNorm)."""
    conv_params, fc_params = params
    strides = (1, 2, 2, 2)
    y = x_ncdhw                       # in_channels == 1 -> no squeeze branch
    for (w, b, g, beta), s in zip(conv_params, strides):
        y = _conv_bn_layer(y, w, b, g, beta, stride=s, apply_bn=batch_norm)
    y_flat = y.reshape(y.shape[0], -1)                 # torch.nn.Flatten order
    logits = fused_linear_decoder(y_flat, fc_params)   # (N, 2)
    return {'ink_classes': logits[:, :, None, None]}   # unsqueeze(2), unsqueeze(3)


# ---------------------------------------------------------------------------
# Parameter init (shapes/scales matching the PyTorch module)
# ---------------------------------------------------------------------------

def init_params(key, filters, subvolume_shape, output_neurons=2):
    in_channels = 1
    conv_specs = [(in_channels, filters[0]), (filters[0], filters[1]),
                  (filters[1], filters[2]), (filters[2], filters[3])]
    conv_params = []
    for cin, cout in conv_specs:
        key, wk = jax.random.split(key)
        fan_in = cin * K_SIZE ** 3
        fan_out = cout * K_SIZE ** 3
        bound = (6.0 / (fan_in + fan_out)) ** 0.5            # xavier_uniform
        w = jax.random.uniform(wk, (cout, cin, 3, 3, 3), jnp.float32, -bound, bound)
        conv_params.append((w,
                            jnp.zeros((cout,), jnp.float32),   # bias
                            jnp.ones((cout,), jnp.float32),    # BN gamma
                            jnp.zeros((cout,), jnp.float32)))  # BN beta

    shape = subvolume_shape
    for s in (1, 2, 2, 2):
        shape = tuple((d + 2 * PAD - K_SIZE) // s + 1 for d in shape)
    flat = filters[3] * shape[0] * shape[1] * shape[2]
    hidden = 128
    fc_specs = [(flat, hidden), (hidden, hidden), (hidden, hidden),
                (hidden, output_neurons)]
    fc_params = []
    for fin, fout in fc_specs:
        key, wk, bk = jax.random.split(key, 3)
        bound = 1.0 / (fin ** 0.5)                           # PyTorch Linear default
        w = jax.random.uniform(wk, (fout, fin), jnp.float32, -bound, bound)
        bias = jax.random.uniform(bk, (fout,), jnp.float32, -bound, bound)
        fc_params.append((w, bias))
    return conv_params, fc_params


# ---------------------------------------------------------------------------
# Pure-JAX reference (XLA conv) for verification
# ---------------------------------------------------------------------------

def reference_forward(x_ncdhw, params, batch_norm=True):
    conv_params, fc_params = params
    strides = (1, 2, 2, 2)
    y = x_ncdhw
    for (w, b, g, beta), s in zip(conv_params, strides):
        # Same bf16-input / f32-accumulate policy as the Pallas path.
        y = lax.conv_general_dilated(
            y.astype(jnp.bfloat16), w.astype(jnp.bfloat16),
            window_strides=(s, s, s), padding=[(PAD, PAD)] * 3,
            dimension_numbers=('NCDHW', 'OIDHW', 'NCDHW'),
            preferred_element_type=jnp.float32)
        y = y + b[None, :, None, None, None]
        y = jnp.maximum(y, 0.0)
        if batch_norm:
            mean = jnp.mean(y, axis=(0, 2, 3, 4), keepdims=True)
            var = jnp.mean((y - mean) ** 2, axis=(0, 2, 3, 4), keepdims=True)
            y = ((y - mean) * lax.rsqrt(var + BN_EPS)
                 * g[None, :, None, None, None] + beta[None, :, None, None, None])
    h = y.reshape(y.shape[0], -1)
    for w, b in fc_params:
        h = h @ w.T + b
    return h[:, :, None, None]


if __name__ == "__main__":
    key = jax.random.PRNGKey(0)
    batch = 2
    subvolume_shape = (16, 16, 16)
    filters = [8, 8, 16, 16]

    xkey, pkey = jax.random.split(key)
    x = jax.random.normal(xkey, (batch, 1) + subvolume_shape, jnp.float32)
    params = init_params(pkey, filters, subvolume_shape)

    fwd = jax.jit(lambda inp: deeper_ink_classifier_forward(inp, params))
    out = jax.block_until_ready(fwd(x))['ink_classes']
    assert out.shape == (batch, 2, 1, 1), out.shape

    ref = jax.block_until_ready(reference_forward(x, params))
    max_err = float(jnp.max(jnp.abs(out - ref)))
    assert max_err < 1e-2, f"max abs err vs reference: {max_err}"
    print("KERNEL_OK")
</pallas_src>

<mosaic_0001>
module attributes {stable_mosaic.version = 11 : i64} {
  func.func @_conv_bias_relu_bn_kernel(%arg0: i32, %arg1: memref<27x8192xbf16, #tpu.memory_space<vmem>>, %arg2: memref<8x27xbf16, #tpu.memory_space<vmem>>, %arg3: memref<8x1xf32, #tpu.memory_space<vmem>>, %arg4: memref<8x1xf32, #tpu.memory_space<vmem>>, %arg5: memref<8x1xf32, #tpu.memory_space<vmem>>, %arg6: memref<8x8192xf32, #tpu.memory_space<vmem>>) attributes {dimension_semantics = [#tpu.dimension_semantics<arbitrary>], iteration_bounds = array<i64: 1>, scalar_prefetch = 0 : i64, scratch_operands = 0 : i64, tpu.core_type = #tpu.core_type<tc>, window_params = [{pipeline_mode = #tpu.pipeline_mode<synchronous>, transform_indices = @transform_0, window_bounds = array<i64: 27, 8192>}, {pipeline_mode = #tpu.pipeline_mode<synchronous>, transform_indices = @transform_1, window_bounds = array<i64: 8, 27>}, {pipeline_mode = #tpu.pipeline_mode<synchronous>, transform_indices = @transform_2, window_bounds = array<i64: 8, 1>}, {pipeline_mode = #tpu.pipeline_mode<synchronous>, transform_indices = @transform_3, window_bounds = array<i64: 8, 1>}, {pipeline_mode = #tpu.pipeline_mode<synchronous>, transform_indices = @transform_4, window_bounds = array<i64: 8, 1>}, {pipeline_mode = #tpu.pipeline_mode<synchronous>, transform_indices = @transform_5, window_bounds = array<i64: 8, 8192>}]} {
    %c0 = arith.constant 0 : index
    %c0_0 = arith.constant 0 : index
    %0 = vector.load %arg2[%c0, %c0_0] : memref<8x27xbf16, #tpu.memory_space<vmem>>, vector<8x27xbf16>
    %c0_1 = arith.constant 0 : index
    %c0_2 = arith.constant 0 : index
    %1 = vector.load %arg1[%c0_1, %c0_2] : memref<27x8192xbf16, #tpu.memory_space<vmem>>, vector<27x8192xbf16>
    %cst = arith.constant dense<0.000000e+00> : vector<8x8192xf32>
    %2 = tpu.matmul %0, %1, %cst {dimension_numbers = #tpu.dot_dimension_numbers<[1], [0], [0], [1], [0, 0, 1, 1], [], []>} : vector<8x27xbf16>, vector<27x8192xbf16>, vector<8x8192xf32> -> vector<8x8192xf32>
    %c0_3 = arith.constant 0 : index
    %c0_4 = arith.constant 0 : index
    %3 = vector.load %arg3[%c0_3, %c0_4] : memref<8x1xf32, #tpu.memory_space<vmem>>, vector<8x1xf32>
    %4 = vector.broadcast %3 : vector<8x1xf32> to vector<8x8192xf32>
    %5 = arith.addf %2, %4 : vector<8x8192xf32>
    %cst_5 = arith.constant 0.000000e+00 : f32
    %6 = vector.broadcast %cst_5 : f32 to vector<8x8192xf32>
    %7 = arith.maximumf %5, %6 : vector<8x8192xf32>
    %cst_6 = arith.constant dense<0.000000e+00> : vector<8xf32>
    %8 = vector.multi_reduction <add>, %7, %cst_6 [1] : vector<8x8192xf32> to vector<8xf32>
    %9 = vector.shape_cast %8 : vector<8xf32> to vector<8x1xf32>
    %cst_7 = arith.constant 1.22070313E-4 : f32
    %10 = vector.broadcast %cst_7 : f32 to vector<8x1xf32>
    %11 = arith.mulf %9, %10 : vector<8x1xf32>
    %12 = vector.broadcast %11 : vector<8x1xf32> to vector<8x8192xf32>
    %13 = arith.subf %7, %12 : vector<8x8192xf32>
    %14 = arith.mulf %13, %13 : vector<8x8192xf32>
    %cst_8 = arith.constant dense<0.000000e+00> : vector<8xf32>
    %15 = vector.multi_reduction <add>, %14, %cst_8 [1] : vector<8x8192xf32> to vector<8xf32>
    %16 = vector.shape_cast %15 : vector<8xf32> to vector<8x1xf32>
    %cst_9 = arith.constant 1.22070313E-4 : f32
    %17 = vector.broadcast %cst_9 : f32 to vector<8x1xf32>
    %18 = arith.mulf %16, %17 : vector<8x1xf32>
    %cst_10 = arith.constant 9.99999974E-6 : f32
    %19 = vector.broadcast %cst_10 : f32 to vector<8x1xf32>
    %20 = arith.addf %18, %19 : vector<8x1xf32>
    %21 = math.rsqrt %20 : vector<8x1xf32>
    %22 = vector.broadcast %21 : vector<8x1xf32> to vector<8x8192xf32>
    %23 = arith.mulf %13, %22 : vector<8x8192xf32>
    %c0_11 = arith.constant 0 : index
    %c0_12 = arith.constant 0 : index
    %24 = vector.load %arg4[%c0_11, %c0_12] : memref<8x1xf32, #tpu.memory_space<vmem>>, vector<8x1xf32>
    %25 = vector.broadcast %24 : vector<8x1xf32> to vector<8x8192xf32>
    %26 = arith.mulf %23, %25 : vector<8x8192xf32>
    %c0_13 = arith.constant 0 : index
    %c0_14 = arith.constant 0 : index
    %27 = vector.load %arg5[%c0_13, %c0_14] : memref<8x1xf32, #tpu.memory_space<vmem>>, vector<8x1xf32>
    %28 = vector.broadcast %27 : vector<8x1xf32> to vector<8x8192xf32>
    %29 = arith.addf %26, %28 : vector<8x8192xf32>
    %c0_15 = arith.constant 0 : index
    %c0_16 = arith.constant 0 : index
    %30 = vector.load %arg6[%c0_15, %c0_16] : memref<8x8192xf32, #tpu.memory_space<vmem>>, vector<8x8192xf32>
    tpu.vector_store %arg6[%c0_15, %c0_16], %29 {strides = array<i32>} : memref<8x8192xf32, #tpu.memory_space<vmem>>, vector<8x8192xf32>,
    return
  }
  func.func @transform_0(%arg0: i32) -> (i32, i32) {
    %c0_i32 = arith.constant 0 : i32
    %c0_i32_0 = arith.constant 0 : i32
    %c0_i32_1 = arith.constant 0 : i32
    return %c0_i32, %c0_i32_0 : i32, i32
  }
  func.func @transform_1(%arg0: i32) -> (i32, i32) {
    %c0_i32 = arith.constant 0 : i32
    %c0_i32_0 = arith.constant 0 : i32
    %c0_i32_1 = arith.constant 0 : i32
    return %c0_i32, %c0_i32_0 : i32, i32
  }
  func.func @transform_2(%arg0: i32) -> (i32, i32) {
    %c0_i32 = arith.constant 0 : i32
    %c0_i32_0 = arith.constant 0 : i32
    %c0_i32_1 = arith.constant 0 : i32
    return %c0_i32, %c0_i32_0 : i32, i32
  }
  func.func @transform_3(%arg0: i32) -> (i32, i32) {
    %c0_i32 = arith.constant 0 : i32
    %c0_i32_0 = arith.constant 0 : i32
    %c0_i32_1 = arith.constant 0 : i32
    return %c0_i32, %c0_i32_0 : i32, i32
  }
  func.func @transform_4(%arg0: i32) -> (i32, i32) {
    %c0_i32 = arith.constant 0 : i32
    %c0_i32_0 = arith.constant 0 : i32
    %c0_i32_1 = arith.constant 0 : i32
    return %c0_i32, %c0_i32_0 : i32, i32
  }
  func.func @transform_5(%arg0: i32) -> (i32, i32) {
    %c0_i32 = arith.constant 0 : i32
    %c0_i32_0 = arith.constant 0 : i32
    %c0_i32_1 = arith.constant 0 : i32
    return %c0_i32, %c0_i32_0 : i32, i32
  }
}

module attributes {stable_mosaic.version = 11 : i64} {
  func.func @_conv_bias_relu_bn_kernel(%arg0: i32, %arg1: memref<216x1024xbf16, #tpu.memory_space<vmem>>, %arg2: memref<8x216xbf16, #tpu.memory_space<vmem>>, %arg3: memref<8x1xf32, #tpu.memory_space<vmem>>, %arg4: memref<8x1xf32, #tpu.memory_space<vmem>>, %arg5: memref<8x1xf32, #tpu.memory_space<vmem>>, %arg6: memref<8x1024xf32, #tpu.memory_space<vmem>>) attributes {dimension_semantics = [#tpu.dimension_semantics<arbitrary>], iteration_bounds = array<i64: 1>, scalar_prefetch = 0 : i64, scratch_operands = 0 : i64, tpu.core_type = #tpu.core_type<tc>, window_params = [{pipeline_mode = #tpu.pipeline_mode<synchronous>, transform_indices = @transform_0, window_bounds = array<i64: 216, 1024>}, {pipeline_mode = #tpu.pipeline_mode<synchronous>, transform_indices = @transform_1, window_bounds = array<i64: 8, 216>}, {pipeline_mode = #tpu.pipeline_mode<synchronous>, transform_indices = @transform_2, window_bounds = array<i64: 8, 1>}, {pipeline_mode = #tpu.pipeline_mode<synchronous>, transform_indices = @transform_3, window_bounds = array<i64: 8, 1>}, {pipeline_mode = #tpu.pipeline_mode<synchronous>, transform_indices = @transform_4, window_bounds = array<i64: 8, 1>}, {pipeline_mode = #tpu.pipeline_mode<synchronous>, transform_indices = @transform_5, window_bounds = array<i64: 8, 1024>}]} {
    %c0 = arith.constant 0 : index
    %c0_0 = arith.constant 0 : index
    %0 = vector.load %arg2[%c0, %c0_0] : memref<8x216xbf16, #tpu.memory_space<vmem>>, vector<8x216xbf16>
    %c0_1 = arith.constant 0 : index
    %c0_2 = arith.constant 0 : index
    %1 = vector.load %arg1[%c0_1, %c0_2] : memref<216x1024xbf16, #tpu.memory_space<vmem>>, vector<216x1024xbf16>
    %cst = arith.constant dense<0.000000e+00> : vector<8x1024xf32>
    %2 = tpu.matmul %0, %1, %cst {dimension_numbers = #tpu.dot_dimension_numbers<[1], [0], [0], [1], [0, 0, 1, 1], [], []>} : vector<8x216xbf16>, vector<216x1024xbf16>, vector<8x1024xf32> -> vector<8x1024xf32>
    %c0_3 = arith.constant 0 : index
    %c0_4 = arith.constant 0 : index
    %3 = vector.load %arg3[%c0_3, %c0_4] : memref<8x1xf32, #tpu.memory_space<vmem>>, vector<8x1xf32>
    %4 = vector.broadcast %3 : vector<8x1xf32> to vector<8x1024xf32>
    %5 = arith.addf %2, %4 : vector<8x1024xf32>
    %cst_5 = arith.constant 0.000000e+00 : f32
    %6 = vector.broadcast %cst_5 : f32 to vector<8x1024xf32>
    %7 = arith.maximumf %5, %6 : vector<8x1024xf32>
    %cst_6 = arith.constant dense<0.000000e+00> : vector<8xf32>
    %8 = vector.multi_reduction <add>, %7, %cst_6 [1] : vector<8x1024xf32> to vector<8xf32>
    %9 = vector.shape_cast %8 : vector<8xf32> to vector<8x1xf32>
    %cst_7 = arith.constant 9.765625E-4 : f32
    %10 = vector.broadcast %cst_7 : f32 to vector<8x1xf32>
    %11 = arith.mulf %9, %10 : vector<8x1xf32>
    %12 = vector.broadcast %11 : vector<8x1xf32> to vector<8x1024xf32>
    %13 = arith.subf %7, %12 : vector<8x1024xf32>
    %14 = arith.mulf %13, %13 : vector<8x1024xf32>
    %cst_8 = arith.constant dense<0.000000e+00> : vector<8xf32>
    %15 = vector.multi_reduction <add>, %14, %cst_8 [1] : vector<8x1024xf32> to vector<8xf32>
    %16 = vector.shape_cast %15 : vector<8xf32> to vector<8x1xf32>
    %cst_9 = arith.constant 9.765625E-4 : f32
    %17 = vector.broadcast %cst_9 : f32 to vector<8x1xf32>
    %18 = arith.mulf %16, %17 : vector<8x1xf32>
    %cst_10 = arith.constant 9.99999974E-6 : f32
    %19 = vector.broadcast %cst_10 : f32 to vector<8x1xf32>
    %20 = arith.addf %18, %19 : vector<8x1xf32>
    %21 = math.rsqrt %20 : vector<8x1xf32>
    %22 = vector.broadcast %21 : vector<8x1xf32> to vector<8x1024xf32>
    %23 = arith.mulf %13, %22 : vector<8x1024xf32>
    %c0_11 = arith.constant 0 : index
    %c0_12 = arith.constant 0 : index
    %24 = vector.load %arg4[%c0_11, %c0_12] : memref<8x1xf32, #tpu.memory_space<vmem>>, vector<8x1xf32>
    %25 = vector.broadcast %24 : vector<8x1xf32> to vector<8x1024xf32>
    %26 = arith.mulf %23, %25 : vector<8x1024xf32>
    %c0_13 = arith.constant 0 : index
    %c0_14 = arith.constant 0 : index
    %27 = vector.load %arg5[%c0_13, %c0_14] : memref<8x1xf32, #tpu.memory_space<vmem>>, vector<8x1xf32>
    %28 = vector.broadcast %27 : vector<8x1xf32> to vector<8x1024xf32>
    %29 = arith.addf %26, %28 : vector<8x1024xf32>
    %c0_15 = arith.constant 0 : index
    %c0_16 = arith.constant 0 : index
    %30 = vector.load %arg6[%c0_15, %c0_16] : memref<8x1024xf32, #tpu.memory_space<vmem>>, vector<8x1024xf32>
    tpu.vector_store %arg6[%c0_15, %c0_16], %29 {strides = array<i32>} : memref<8x1024xf32, #tpu.memory_space<vmem>>, vector<8x1024xf32>,
    return
  }
  func.func @transform_0(%arg0: i32) -> (i32, i32) {
    %c0_i32 = arith.constant 0 : i32
    %c0_i32_0 = arith.constant 0 : i32
    %c0_i32_1 = arith.constant 0 : i32
    return %c0_i32, %c0_i32_0 : i32, i32
  }
  func.func @transform_1(%arg0: i32) -> (i32, i32) {
    %c0_i32 = arith.constant 0 : i32
    %c0_i32_0 = arith.constant 0 : i32
    %c0_i32_1 = arith.constant 0 : i32
    return %c0_i32, %c0_i32_0 : i32, i32
  }
  func.func @transform_2(%arg0: i32) -> (i32, i32) {
    %c0_i32 = arith.constant 0 : i32
    %c0_i32_0 = arith.constant 0 : i32
    %c0_i32_1 = arith.constant 0 : i32
    return %c0_i32, %c0_i32_0 : i32, i32
  }
  func.func @transform_3(%arg0: i32) -> (i32, i32) {
    %c0_i32 = arith.constant 0 : i32
    %c0_i32_0 = arith.constant 0 : i32
    %c0_i32_1 = arith.constant 0 : i32
    return %c0_i32, %c0_i32_0 : i32, i32
  }
  func.func @transform_4(%arg0: i32) -> (i32, i32) {
    %c0_i32 = arith.constant 0 : i32
    %c0_i32_0 = arith.constant 0 : i32
    %c0_i32_1 = arith.constant 0 : i32
    return %c0_i32, %c0_i32_0 : i32, i32
  }
  func.func @transform_5(%arg0: i32) -> (i32, i32) {
    %c0_i32 = arith.constant 0 : i32
    %c0_i32_0 = arith.constant 0 : i32
    %c0_i32_1 = arith.constant 0 : i32
    return %c0_i32, %c0_i32_0 : i32, i32
  }
}

module attributes {stable_mosaic.version = 11 : i64} {
  func.func @_conv_bias_relu_bn_kernel(%arg0: i32, %arg1: memref<216x128xbf16, #tpu.memory_space<vmem>>, %arg2: memref<16x216xbf16, #tpu.memory_space<vmem>>, %arg3: memref<16x1xf32, #tpu.memory_space<vmem>>, %arg4: memref<16x1xf32, #tpu.memory_space<vmem>>, %arg5: memref<16x1xf32, #tpu.memory_space<vmem>>, %arg6: memref<16x128xf32, #tpu.memory_space<vmem>>) attributes {dimension_semantics = [#tpu.dimension_semantics<arbitrary>], iteration_bounds = array<i64: 1>, scalar_prefetch = 0 : i64, scratch_operands = 0 : i64, tpu.core_type = #tpu.core_type<tc>, window_params = [{pipeline_mode = #tpu.pipeline_mode<synchronous>, transform_indices = @transform_0, window_bounds = array<i64: 216, 128>}, {pipeline_mode = #tpu.pipeline_mode<synchronous>, transform_indices = @transform_1, window_bounds = array<i64: 16, 216>}, {pipeline_mode = #tpu.pipeline_mode<synchronous>, transform_indices = @transform_2, window_bounds = array<i64: 16, 1>}, {pipeline_mode = #tpu.pipeline_mode<synchronous>, transform_indices = @transform_3, window_bounds = array<i64: 16, 1>}, {pipeline_mode = #tpu.pipeline_mode<synchronous>, transform_indices = @transform_4, window_bounds = array<i64: 16, 1>}, {pipeline_mode = #tpu.pipeline_mode<synchronous>, transform_indices = @transform_5, window_bounds = array<i64: 16, 128>}]} {
    %c0 = arith.constant 0 : index
    %c0_0 = arith.constant 0 : index
    %0 = vector.load %arg2[%c0, %c0_0] : memref<16x216xbf16, #tpu.memory_space<vmem>>, vector<16x216xbf16>
    %c0_1 = arith.constant 0 : index
    %c0_2 = arith.constant 0 : index
    %1 = vector.load %arg1[%c0_1, %c0_2] : memref<216x128xbf16, #tpu.memory_space<vmem>>, vector<216x128xbf16>
    %cst = arith.constant dense<0.000000e+00> : vector<16x128xf32>
    %2 = tpu.matmul %0, %1, %cst {dimension_numbers = #tpu.dot_dimension_numbers<[1], [0], [0], [1], [0, 0, 1, 1], [], []>} : vector<16x216xbf16>, vector<216x128xbf16>, vector<16x128xf32> -> vector<16x128xf32>
    %c0_3 = arith.constant 0 : index
    %c0_4 = arith.constant 0 : index
    %3 = vector.load %arg3[%c0_3, %c0_4] : memref<16x1xf32, #tpu.memory_space<vmem>>, vector<16x1xf32>
    %4 = vector.broadcast %3 : vector<16x1xf32> to vector<16x128xf32>
    %5 = arith.addf %2, %4 : vector<16x128xf32>
    %cst_5 = arith.constant 0.000000e+00 : f32
    %6 = vector.broadcast %cst_5 : f32 to vector<16x128xf32>
    %7 = arith.maximumf %5, %6 : vector<16x128xf32>
    %cst_6 = arith.constant dense<0.000000e+00> : vector<16xf32>
    %8 = vector.multi_reduction <add>, %7, %cst_6 [1] : vector<16x128xf32> to vector<16xf32>
    %9 = vector.shape_cast %8 : vector<16xf32> to vector<16x1xf32>
    %cst_7 = arith.constant 7.812500e-03 : f32
    %10 = vector.broadcast %cst_7 : f32 to vector<16x1xf32>
    %11 = arith.mulf %9, %10 : vector<16x1xf32>
    %12 = vector.broadcast %11 : vector<16x1xf32> to vector<16x128xf32>
    %13 = arith.subf %7, %12 : vector<16x128xf32>
    %14 = arith.mulf %13, %13 : vector<16x128xf32>
    %cst_8 = arith.constant dense<0.000000e+00> : vector<16xf32>
    %15 = vector.multi_reduction <add>, %14, %cst_8 [1] : vector<16x128xf32> to vector<16xf32>
    %16 = vector.shape_cast %15 : vector<16xf32> to vector<16x1xf32>
    %cst_9 = arith.constant 7.812500e-03 : f32
    %17 = vector.broadcast %cst_9 : f32 to vector<16x1xf32>
    %18 = arith.mulf %16, %17 : vector<16x1xf32>
    %cst_10 = arith.constant 9.99999974E-6 : f32
    %19 = vector.broadcast %cst_10 : f32 to vector<16x1xf32>
    %20 = arith.addf %18, %19 : vector<16x1xf32>
    %21 = math.rsqrt %20 : vector<16x1xf32>
    %22 = vector.broadcast %21 : vector<16x1xf32> to vector<16x128xf32>
    %23 = arith.mulf %13, %22 : vector<16x128xf32>
    %c0_11 = arith.constant 0 : index
    %c0_12 = arith.constant 0 : index
    %24 = vector.load %arg4[%c0_11, %c0_12] : memref<16x1xf32, #tpu.memory_space<vmem>>, vector<16x1xf32>
    %25 = vector.broadcast %24 : vector<16x1xf32> to vector<16x128xf32>
    %26 = arith.mulf %23, %25 : vector<16x128xf32>
    %c0_13 = arith.constant 0 : index
    %c0_14 = arith.constant 0 : index
    %27 = vector.load %arg5[%c0_13, %c0_14] : memref<16x1xf32, #tpu.memory_space<vmem>>, vector<16x1xf32>
    %28 = vector.broadcast %27 : vector<16x1xf32> to vector<16x128xf32>
    %29 = arith.addf %26, %28 : vector<16x128xf32>
    %c0_15 = arith.constant 0 : index
    %c0_16 = arith.constant 0 : index
    %30 = vector.load %arg6[%c0_15, %c0_16] : memref<16x128xf32, #tpu.memory_space<vmem>>, vector<16x128xf32>
    tpu.vector_store %arg6[%c0_15, %c0_16], %29 {strides = array<i32>} : memref<16x128xf32, #tpu.memory_space<vmem>>, vector<16x128xf32>,
    return
  }
  func.func @transform_0(%arg0: i32) -> (i32, i32) {
    %c0_i32 = arith.constant 0 : i32
    %c0_i32_0 = arith.constant 0 : i32
    %c0_i32_1 = arith.constant 0 : i32
    return %c0_i32, %c0_i32_0 : i32, i32
  }
  func.func @transform_1(%arg0: i32) -> (i32, i32) {
    %c0_i32 = arith.constant 0 : i32
    %c0_i32_0 = arith.constant 0 : i32
    %c0_i32_1 = arith.constant 0 : i32
    return %c0_i32, %c0_i32_0 : i32, i32
  }
  func.func @transform_2(%arg0: i32) -> (i32, i32) {
    %c0_i32 = arith.constant 0 : i32
    %c0_i32_0 = arith.constant 0 : i32
    %c0_i32_1 = arith.constant 0 : i32
    return %c0_i32, %c0_i32_0 : i32, i32
  }
  func.func @transform_3(%arg0: i32) -> (i32, i32) {
    %c0_i32 = arith.constant 0 : i32
    %c0_i32_0 = arith.constant 0 : i32
    %c0_i32_1 = arith.constant 0 : i32
    return %c0_i32, %c0_i32_0 : i32, i32
  }
  func.func @transform_4(%arg0: i32) -> (i32, i32) {
    %c0_i32 = arith.constant 0 : i32
    %c0_i32_0 = arith.constant 0 : i32
    %c0_i32_1 = arith.constant 0 : i32
    return %c0_i32, %c0_i32_0 : i32, i32
  }
  func.func @transform_5(%arg0: i32) -> (i32, i32) {
    %c0_i32 = arith.constant 0 : i32
    %c0_i32_0 = arith.constant 0 : i32
    %c0_i32_1 = arith.constant 0 : i32
    return %c0_i32, %c0_i32_0 : i32, i32
  }
}

module attributes {stable_mosaic.version = 11 : i64} {
  func.func @_conv_bias_relu_bn_kernel(%arg0: i32, %arg1: memref<432x16xbf16, #tpu.memory_space<vmem>>, %arg2: memref<16x432xbf16, #tpu.memory_space<vmem>>, %arg3: memref<16x1xf32, #tpu.memory_space<vmem>>, %arg4: memref<16x1xf32, #tpu.memory_space<vmem>>, %arg5: memref<16x1xf32, #tpu.memory_space<vmem>>, %arg6: memref<16x16xf32, #tpu.memory_space<vmem>>) attributes {dimension_semantics = [#tpu.dimension_semantics<arbitrary>], iteration_bounds = array<i64: 1>, scalar_prefetch = 0 : i64, scratch_operands = 0 : i64, tpu.core_type = #tpu.core_type<tc>, window_params = [{pipeline_mode = #tpu.pipeline_mode<synchronous>, transform_indices = @transform_0, window_bounds = array<i64: 432, 16>}, {pipeline_mode = #tpu.pipeline_mode<synchronous>, transform_indices = @transform_1, window_bounds = array<i64: 16, 432>}, {pipeline_mode = #tpu.pipeline_mode<synchronous>, transform_indices = @transform_2, window_bounds = array<i64: 16, 1>}, {pipeline_mode = #tpu.pipeline_mode<synchronous>, transform_indices = @transform_3, window_bounds = array<i64: 16, 1>}, {pipeline_mode = #tpu.pipeline_mode<synchronous>, transform_indices = @transform_4, window_bounds = array<i64: 16, 1>}, {pipeline_mode = #tpu.pipeline_mode<synchronous>, transform_indices = @transform_5, window_bounds = array<i64: 16, 16>}]} {
    %c0 = arith.constant 0 : index
    %c0_0 = arith.constant 0 : index
    %0 = vector.load %arg2[%c0, %c0_0] : memref<16x432xbf16, #tpu.memory_space<vmem>>, vector<16x432xbf16>
    %c0_1 = arith.constant 0 : index
    %c0_2 = arith.constant 0 : index
    %1 = vector.load %arg1[%c0_1, %c0_2] : memref<432x16xbf16, #tpu.memory_space<vmem>>, vector<432x16xbf16>
    %cst = arith.constant dense<0.000000e+00> : vector<16x16xf32>
    %2 = tpu.matmul %0, %1, %cst {dimension_numbers = #tpu.dot_dimension_numbers<[1], [0], [0], [1], [0, 0, 1, 1], [], []>} : vector<16x432xbf16>, vector<432x16xbf16>, vector<16x16xf32> -> vector<16x16xf32>
    %c0_3 = arith.constant 0 : index
    %c0_4 = arith.constant 0 : index
    %3 = vector.load %arg3[%c0_3, %c0_4] : memref<16x1xf32, #tpu.memory_space<vmem>>, vector<16x1xf32>
    %4 = vector.broadcast %3 : vector<16x1xf32> to vector<16x16xf32>
    %5 = arith.addf %2, %4 : vector<16x16xf32>
    %cst_5 = arith.constant 0.000000e+00 : f32
    %6 = vector.broadcast %cst_5 : f32 to vector<16x16xf32>
    %7 = arith.maximumf %5, %6 : vector<16x16xf32>
    %cst_6 = arith.constant dense<0.000000e+00> : vector<16xf32>
    %8 = vector.multi_reduction <add>, %7, %cst_6 [1] : vector<16x16xf32> to vector<16xf32>
    %9 = vector.shape_cast %8 : vector<16xf32> to vector<16x1xf32>
    %cst_7 = arith.constant 6.250000e-02 : f32
    %10 = vector.broadcast %cst_7 : f32 to vector<16x1xf32>
    %11 = arith.mulf %9, %10 : vector<16x1xf32>
    %12 = vector.broadcast %11 : vector<16x1xf32> to vector<16x16xf32>
    %13 = arith.subf %7, %12 : vector<16x16xf32>
    %14 = arith.mulf %13, %13 : vector<16x16xf32>
    %cst_8 = arith.constant dense<0.000000e+00> : vector<16xf32>
    %15 = vector.multi_reduction <add>, %14, %cst_8 [1] : vector<16x16xf32> to vector<16xf32>
    %16 = vector.shape_cast %15 : vector<16xf32> to vector<16x1xf32>
    %cst_9 = arith.constant 6.250000e-02 : f32
    %17 = vector.broadcast %cst_9 : f32 to vector<16x1xf32>
    %18 = arith.mulf %16, %17 : vector<16x1xf32>
    %cst_10 = arith.constant 9.99999974E-6 : f32
    %19 = vector.broadcast %cst_10 : f32 to vector<16x1xf32>
    %20 = arith.addf %18, %19 : vector<16x1xf32>
    %21 = math.rsqrt %20 : vector<16x1xf32>
    %22 = vector.broadcast %21 : vector<16x1xf32> to vector<16x16xf32>
    %23 = arith.mulf %13, %22 : vector<16x16xf32>
    %c0_11 = arith.constant 0 : index
    %c0_12 = arith.constant 0 : index
    %24 = vector.load %arg4[%c0_11, %c0_12] : memref<16x1xf32, #tpu.memory_space<vmem>>, vector<16x1xf32>
    %25 = vector.broadcast %24 : vector<16x1xf32> to vector<16x16xf32>
    %26 = arith.mulf %23, %25 : vector<16x16xf32>
    %c0_13 = arith.constant 0 : index
    %c0_14 = arith.constant 0 : index
    %27 = vector.load %arg5[%c0_13, %c0_14] : memref<16x1xf32, #tpu.memory_space<vmem>>, vector<16x1xf32>
    %28 = vector.broadcast %27 : vector<16x1xf32> to vector<16x16xf32>
    %29 = arith.addf %26, %28 : vector<16x16xf32>
    %c0_15 = arith.constant 0 : index
    %c0_16 = arith.constant 0 : index
    %30 = vector.load %arg6[%c0_15, %c0_16] : memref<16x16xf32, #tpu.memory_space<vmem>>, vector<16x16xf32>
    tpu.vector_store %arg6[%c0_15, %c0_16], %29 {strides = array<i32>} : memref<16x16xf32, #tpu.memory_space<vmem>>, vector<16x16xf32>,
    return
  }
  func.func @transform_0(%arg0: i32) -> (i32, i32) {
    %c0_i32 = arith.constant 0 : i32
    %c0_i32_0 = arith.constant 0 : i32
    %c0_i32_1 = arith.constant 0 : i32
    return %c0_i32, %c0_i32_0 : i32, i32
  }
  func.func @transform_1(%arg0: i32) -> (i32, i32) {
    %c0_i32 = arith.constant 0 : i32
    %c0_i32_0 = arith.constant 0 : i32
    %c0_i32_1 = arith.constant 0 : i32
    return %c0_i32, %c0_i32_0 : i32, i32
  }
  func.func @transform_2(%arg0: i32) -> (i32, i32) {
    %c0_i32 = arith.constant 0 : i32
    %c0_i32_0 = arith.constant 0 : i32
    %c0_i32_1 = arith.constant 0 : i32
    return %c0_i32, %c0_i32_0 : i32, i32
  }
  func.func @transform_3(%arg0: i32) -> (i32, i32) {
    %c0_i32 = arith.constant 0 : i32
    %c0_i32_0 = arith.constant 0 : i32
    %c0_i32_1 = arith.constant 0 : i32
    return %c0_i32, %c0_i32_0 : i32, i32
  }
  func.func @transform_4(%arg0: i32) -> (i32, i32) {
    %c0_i32 = arith.constant 0 : i32
    %c0_i32_0 = arith.constant 0 : i32
    %c0_i32_1 = arith.constant 0 : i32
    return %c0_i32, %c0_i32_0 : i32, i32
  }
  func.func @transform_5(%arg0: i32) -> (i32, i32) {
    %c0_i32 = arith.constant 0 : i32
    %c0_i32_0 = arith.constant 0 : i32
    %c0_i32_1 = arith.constant 0 : i32
    return %c0_i32, %c0_i32_0 : i32, i32
  }
}

module attributes {stable_mosaic.version = 11 : i64} {
  func.func @_fc_stack_kernel(%arg0: i32, %arg1: memref<2x128xf32, #tpu.memory_space<vmem>>, %arg2: memref<128x128xf32, #tpu.memory_space<vmem>>, %arg3: memref<1x128xf32, #tpu.memory_space<vmem>>, %arg4: memref<128x128xf32, #tpu.memory_space<vmem>>, %arg5: memref<1x128xf32, #tpu.memory_space<vmem>>, %arg6: memref<128x128xf32, #tpu.memory_space<vmem>>, %arg7: memref<1x128xf32, #tpu.memory_space<vmem>>, %arg8: memref<128x2xf32, #tpu.memory_space<vmem>>, %arg9: memref<1x2xf32, #tpu.memory_space<vmem>>, %arg10: memref<2x2xf32, #tpu.memory_space<vmem>>) attributes {dimension_semantics = [#tpu.dimension_semantics<arbitrary>], iteration_bounds = array<i64: 1>, scalar_prefetch = 0 : i64, scratch_operands = 0 : i64, tpu.core_type = #tpu.core_type<tc>, window_params = [{pipeline_mode = #tpu.pipeline_mode<synchronous>, transform_indices = @transform_0, window_bounds = array<i64: 2, 128>}, {pipeline_mode = #tpu.pipeline_mode<synchronous>, transform_indices = @transform_1, window_bounds = array<i64: 128, 128>}, {pipeline_mode = #tpu.pipeline_mode<synchronous>, transform_indices = @transform_2, window_bounds = array<i64: 1, 128>}, {pipeline_mode = #tpu.pipeline_mode<synchronous>, transform_indices = @transform_3, window_bounds = array<i64: 128, 128>}, {pipeline_mode = #tpu.pipeline_mode<synchronous>, transform_indices = @transform_4, window_bounds = array<i64: 1, 128>}, {pipeline_mode = #tpu.pipeline_mode<synchronous>, transform_indices = @transform_5, window_bounds = array<i64: 128, 128>}, {pipeline_mode = #tpu.pipeline_mode<synchronous>, transform_indices = @transform_6, window_bounds = array<i64: 1, 128>}, {pipeline_mode = #tpu.pipeline_mode<synchronous>, transform_indices = @transform_7, window_bounds = array<i64: 128, 2>}, {pipeline_mode = #tpu.pipeline_mode<synchronous>, transform_indices = @transform_8, window_bounds = array<i64: 1, 2>}, {pipeline_mode = #tpu.pipeline_mode<synchronous>, transform_indices = @transform_9, window_bounds = array<i64: 2, 2>}]} {
    %c0 = arith.constant 0 : index
    %c0_0 = arith.constant 0 : index
    %0 = vector.load %arg1[%c0, %c0_0] : memref<2x128xf32, #tpu.memory_space<vmem>>, vector<2x128xf32>
    %c0_1 = arith.constant 0 : index
    %c0_2 = arith.constant 0 : index
    %1 = vector.load %arg2[%c0_1, %c0_2] : memref<128x128xf32, #tpu.memory_space<vmem>>, vector<128x128xf32>
    %cst = arith.constant dense<0.000000e+00> : vector<2x128xf32>
    %2 = tpu.matmul %0, %1, %cst {dimension_numbers = #tpu.dot_dimension_numbers<[1], [0], [0], [1], [0, 0, 1, 1], [], []>} : vector<2x128xf32>, vector<128x128xf32>, vector<2x128xf32> -> vector<2x128xf32>
    %c0_3 = arith.constant 0 : index
    %c0_4 = arith.constant 0 : index
    %3 = vector.load %arg3[%c0_3, %c0_4] : memref<1x128xf32, #tpu.memory_space<vmem>>, vector<1x128xf32>
    %4 = vector.broadcast %3 : vector<1x128xf32> to vector<2x128xf32>
    %5 = arith.addf %2, %4 : vector<2x128xf32>
    %c0_5 = arith.constant 0 : index
    %c0_6 = arith.constant 0 : index
    %6 = vector.load %arg4[%c0_5, %c0_6] : memref<128x128xf32, #tpu.memory_space<vmem>>, vector<128x128xf32>
    %cst_7 = arith.constant dense<0.000000e+00> : vector<2x128xf32>
    %7 = tpu.matmul %5, %6, %cst_7 {dimension_numbers = #tpu.dot_dimension_numbers<[1], [0], [0], [1], [0, 0, 1, 1], [], []>} : vector<2x128xf32>, vector<128x128xf32>, vector<2x128xf32> -> vector<2x128xf32>
    %c0_8 = arith.constant 0 : index
    %c0_9 = arith.constant 0 : index
    %8 = vector.load %arg5[%c0_8, %c0_9] : memref<1x128xf32, #tpu.memory_space<vmem>>, vector<1x128xf32>
    %9 = vector.broadcast %8 : vector<1x128xf32> to vector<2x128xf32>
    %10 = arith.addf %7, %9 : vector<2x128xf32>
    %c0_10 = arith.constant 0 : index
    %c0_11 = arith.constant 0 : index
    %11 = vector.load %arg6[%c0_10, %c0_11] : memref<128x128xf32, #tpu.memory_space<vmem>>, vector<128x128xf32>
    %cst_12 = arith.constant dense<0.000000e+00> : vector<2x128xf32>
    %12 = tpu.matmul %10, %11, %cst_12 {dimension_numbers = #tpu.dot_dimension_numbers<[1], [0], [0], [1], [0, 0, 1, 1], [], []>} : vector<2x128xf32>, vector<128x128xf32>, vector<2x128xf32> -> vector<2x128xf32>
    %c0_13 = arith.constant 0 : index
    %c0_14 = arith.constant 0 : index
    %13 = vector.load %arg7[%c0_13, %c0_14] : memref<1x128xf32, #tpu.memory_space<vmem>>, vector<1x128xf32>
    %14 = vector.broadcast %13 : vector<1x128xf32> to vector<2x128xf32>
    %15 = arith.addf %12, %14 : vector<2x128xf32>
    %c0_15 = arith.constant 0 : index
    %c0_16 = arith.constant 0 : index
    %16 = vector.load %arg8[%c0_15, %c0_16] : memref<128x2xf32, #tpu.memory_space<vmem>>, vector<128x2xf32>
    %cst_17 = arith.constant dense<0.000000e+00> : vector<2x2xf32>
    %17 = tpu.matmul %15, %16, %cst_17 {dimension_numbers = #tpu.dot_dimension_numbers<[1], [0], [0], [1], [0, 0, 1, 1], [], []>} : vector<2x128xf32>, vector<128x2xf32>, vector<2x2xf32> -> vector<2x2xf32>
    %c0_18 = arith.constant 0 : index
    %c0_19 = arith.constant 0 : index
    %18 = vector.load %arg9[%c0_18, %c0_19] : memref<1x2xf32, #tpu.memory_space<vmem>>, vector<1x2xf32>
    %19 = vector.broadcast %18 : vector<1x2xf32> to vector<2x2xf32>
    %20 = arith.addf %17, %19 : vector<2x2xf32>
    %c0_20 = arith.constant 0 : index
    %c0_21 = arith.constant 0 : index
    %21 = vector.load %arg10[%c0_20, %c0_21] : memref<2x2xf32, #tpu.memory_space<vmem>>, vector<2x2xf32>
    tpu.vector_store %arg10[%c0_20, %c0_21], %20 {strides = array<i32>} : memref<2x2xf32, #tpu.memory_space<vmem>>, vector<2x2xf32>,
    return
  }
  func.func @transform_0(%arg0: i32) -> (i32, i32) {
    %c0_i32 = arith.constant 0 : i32
    %c0_i32_0 = arith.constant 0 : i32
    %c0_i32_1 = arith.constant 0 : i32
    return %c0_i32, %c0_i32_0 : i32, i32
  }
  func.func @transform_1(%arg0: i32) -> (i32, i32) {
    %c0_i32 = arith.constant 0 : i32
    %c0_i32_0 = arith.constant 0 : i32
    %c0_i32_1 = arith.constant 0 : i32
    return %c0_i32, %c0_i32_0 : i32, i32
  }
  func.func @transform_2(%arg0: i32) -> (i32, i32) {
    %c0_i32 = arith.constant 0 : i32
    %c0_i32_0 = arith.constant 0 : i32
    %c0_i32_1 = arith.constant 0 : i32
    return %c0_i32, %c0_i32_0 : i32, i32
  }
  func.func @transform_3(%arg0: i32) -> (i32, i32) {
    %c0_i32 = arith.constant 0 : i32
    %c0_i32_0 = arith.constant 0 : i32
    %c0_i32_1 = arith.constant 0 : i32
    return %c0_i32, %c0_i32_0 : i32, i32
  }
  func.func @transform_4(%arg0: i32) -> (i32, i32) {
    %c0_i32 = arith.constant 0 : i32
    %c0_i32_0 = arith.constant 0 : i32
    %c0_i32_1 = arith.constant 0 : i32
    return %c0_i32, %c0_i32_0 : i32, i32
  }
  func.func @transform_5(%arg0: i32) -> (i32, i32) {
    %c0_i32 = arith.constant 0 : i32
    %c0_i32_0 = arith.constant 0 : i32
    %c0_i32_1 = arith.constant 0 : i32
    return %c0_i32, %c0_i32_0 : i32, i32
  }
  func.func @transform_6(%arg0: i32) -> (i32, i32) {
    %c0_i32 = arith.constant 0 : i32
    %c0_i32_0 = arith.constant 0 : i32
    %c0_i32_1 = arith.constant 0 : i32
    return %c0_i32, %c0_i32_0 : i32, i32
  }
  func.func @transform_7(%arg0: i32) -> (i32, i32) {
    %c0_i32 = arith.constant 0 : i32
    %c0_i32_0 = arith.constant 0 : i32
    %c0_i32_1 = arith.constant 0 : i32
    return %c0_i32, %c0_i32_0 : i32, i32
  }
  func.func @transform_8(%arg0: i32) -> (i32, i32) {
    %c0_i32 = arith.constant 0 : i32
    %c0_i32_0 = arith.constant 0 : i32
    %c0_i32_1 = arith.constant 0 : i32
    return %c0_i32, %c0_i32_0 : i32, i32
  }
  func.func @transform_9(%arg0: i32) -> (i32, i32) {
    %c0_i32 = arith.constant 0 : i32
    %c0_i32_0 = arith.constant 0 : i32
    %c0_i32_1 = arith.constant 0 : i32
    return %c0_i32, %c0_i32_0 : i32, i32
  }
}

</mosaic_0001>

<llo_original>
// kernel: _lambda_.5
$region0: #{_lambda_.5}
  #allocation0 [shape = 'u32[]', space=smem, size = 0x4, offset = 0x4, fixed_abs, tag = 'smem constant byte address 0x4 - core index']
  #allocation1 [shape = 'u32[144,128]{1,0:T(1,128)}', space=vmem, size = 0x12000, scoped, tag = 'internal scratch']
  %s0 = inlined_call_operand.vmem [shape: bf16[27,8192], index: 0, kind: input, shape index: {}]
  %s1 = inlined_call_operand.vmem [shape: bf16[8,27], index: 1, kind: input, shape index: {}]
  %s2 = inlined_call_operand.vmem [shape: f32[8,1], index: 2, kind: input, shape index: {}, may-alias: {2,4}]
  %s3 = inlined_call_operand.vmem [shape: f32[8,1], index: 3, kind: input, shape index: {}]
  %s4 = inlined_call_operand.vmem [shape: f32[8,1], index: 4, kind: input, shape index: {}, may-alias: {2,4}]
  %s5 = inlined_call_operand.vmem [shape: f32[8,8192], index: 5, kind: output, shape index: {}]
  %s6 = sld [smem:[#allocation0]]
  $region30: #{_lambda_.5} parent=0
    _
  %s8 = ssub.s32 1, %s6
  %s9 = scalar_select 0, %s8, %s6
  // Predicated region
  $region2: #{_lambda_.5} parent=0 // pred_check
    _
  $region3: #{_lambda_.5} parent=0 // pred_check_branch
    %11 = sbr.rel (0) target = $region5
  $region4: #{_lambda_.5} parent=0 // pred_region
    _
  $region5: #{_lambda_.5} parent=0 // pred_fallthru
    _
  // Predicated region
  $region6: #{_lambda_.5} parent=0 // pred_check
    _
  $region7: #{_lambda_.5} parent=0 // pred_check_branch
    %13 = sbr.rel (0) target = $region9
  $region8: #{_lambda_.5} parent=0 // pred_region
    _
  $region9: #{_lambda_.5} parent=0 // pred_fallthru
    _
  // Predicated region
  $region10: #{_lambda_.5} parent=0 // pred_check
    _
  $region11: #{_lambda_.5} parent=0 // pred_check_branch
    %15 = sbr.rel (0) target = $region13
  $region12: #{_lambda_.5} parent=0 // pred_region
    _
  $region13: #{_lambda_.5} parent=0 // pred_fallthru
    _
  // Predicated region
  $region14: #{_lambda_.5} parent=0 // pred_check
    _
  $region15: #{_lambda_.5} parent=0 // pred_check_branch
    %17 = sbr.rel (0) target = $region17
  $region16: #{_lambda_.5} parent=0 // pred_region
    _
  $region17: #{_lambda_.5} parent=0 // pred_fallthru
    _
  // Predicated region
  $region18: #{_lambda_.5} parent=0 // pred_check
    _
  $region19: #{_lambda_.5} parent=0 // pred_check_branch
    %19 = sbr.rel (0) target = $region21
  $region20: #{_lambda_.5} parent=0 // pred_region
    _
  $region21: #{_lambda_.5} parent=0 // pred_fallthru
    _
  %v21 = vld [vmem:[%s1] sm:$0xf]
  %v22 = vld [vmem:[%s0] sm:$0xff]
  %v23 = vld [vmem:[%s0 + $0x8] sm:$0xff]
  %v24 = vld [vmem:[%s0 + $0x10] sm:$0xff]
  %v25 = vld [vmem:[%s0 + $0x18] sm:$0xff]
  %v26 = vld [vmem:[%s0 + $0x20] sm:$0xff]
  %v27 = vld [vmem:[%s0 + $0x28] sm:$0xff]
  %v28 = vld [vmem:[%s0 + $0x30] sm:$0xff]
  %v29 = vld [vmem:[%s0 + $0x38] sm:$0xff]
  %v30 = vld [vmem:[%s0 + $0x40] sm:$0xff]
  %v31 = vld [vmem:[%s0 + $0x48] sm:$0xff]
  %v32 = vld [vmem:[%s0 + $0x50] sm:$0xff]
  %v33 = vld [vmem:[%s0 + $0x58] sm:$0xff]
  %v34 = vld [vmem:[%s0 + $0x60] sm:$0xff]
  %v35 = vld [vmem:[%s0 + $0x68] sm:$0xff]
  %v36 = vld [vmem:[%s0 + $0x70] sm:$0xff]
  %v37 = vld [vmem:[%s0 + $0x78] sm:$0xff]
  %v38 = vld [vmem:[%s0 + $0x80] sm:$0xff]
  %v39 = vld [vmem:[%s0 + $0x88] sm:$0xff]
  %v40 = vld [vmem:[%s0 + $0x90] sm:$0xff]
  %v41 = vld [vmem:[%s0 + $0x98] sm:$0xff]
  %v42 = vld [vmem:[%s0 + $0xa0] sm:$0xff]
  %v43 = vld [vmem:[%s0 + $0xa8] sm:$0xff]
  %v44 = vld [vmem:[%s0 + $0xb0] sm:$0xff]
  %v45 = vld [vmem:[%s0 + $0xb8] sm:$0xff]
  %v46 = vld [vmem:[%s0 + $0xc0] sm:$0xff]
  %v47 = vld [vmem:[%s0 + $0xc8] sm:$0xff]
  %v48 = vld [vmem:[%s0 + $0xd0] sm:$0xff]
  %v49 = vld [vmem:[%s0 + $0xd8] sm:$0xff]
  %v50 = vld [vmem:[%s0 + $0xe0] sm:$0xff]
  %v51 = vld [vmem:[%s0 + $0xe8] sm:$0xff]
  %v52 = vld [vmem:[%s0 + $0xf0] sm:$0xff]
  %v53 = vld [vmem:[%s0 + $0xf8] sm:$0xff]
  %v54 = vld [vmem:[%s0 + $0x100] sm:$0xff]
  %v55 = vld [vmem:[%s0 + $0x108] sm:$0xff]
  %v56 = vld [vmem:[%s0 + $0x110] sm:$0xff]
  %v57 = vld [vmem:[%s0 + $0x118] sm:$0xff]
  %v58 = vld [vmem:[%s0 + $0x120] sm:$0xff]
  %v59 = vld [vmem:[%s0 + $0x128] sm:$0xff]
  %v60 = vld [vmem:[%s0 + $0x130] sm:$0xff]
  %v61 = vld [vmem:[%s0 + $0x138] sm:$0xff]
  %v62 = vld [vmem:[%s0 + $0x140] sm:$0xff]
  %v63 = vld [vmem:[%s0 + $0x148] sm:$0xff]
  %v64 = vld [vmem:[%s0 + $0x150] sm:$0xff]
  %v65 = vld [vmem:[%s0 + $0x158] sm:$0xff]
  %v66 = vld [vmem:[%s0 + $0x160] sm:$0xff]
  %v67 = vld [vmem:[%s0 + $0x168] sm:$0xff]
  %v68 = vld [vmem:[%s0 + $0x170] sm:$0xff]
  %v69 = vld [vmem:[%s0 + $0x178] sm:$0xff]
  %v70 = vld [vmem:[%s0 + $0x180] sm:$0xff]
  %v71 = vld [vmem:[%s0 + $0x188] sm:$0xff]
  %v72 = vld [vmem:[%s0 + $0x190] sm:$0xff]
  %v73 = vld [vmem:[%s0 + $0x198] sm:$0xff]
  %v74 = vld [vmem:[%s0 + $0x1a0] sm:$0xff]
  %v75 = vld [vmem:[%s0 + $0x1a8] sm:$0xff]
  %v76 = vld [vmem:[%s0 + $0x1b0] sm:$0xff]
  %v77 = vld [vmem:[%s0 + $0x1b8] sm:$0xff]
  %v78 = vld [vmem:[%s0 + $0x1c0] sm:$0xff]
  %v79 = vld [vmem:[%s0 + $0x1c8] sm:$0xff]
  %v80 = vld [vmem:[%s0 + $0x1d0] sm:$0xff]
  %v81 = vld [vmem:[%s0 + $0x1d8] sm:$0xff]
  %v82 = vld [vmem:[%s0 + $0x1e0] sm:$0xff]
  %v83 = vld [vmem:[%s0 + $0x1e8] sm:$0xff]
  %v84 = vld [vmem:[%s0 + $0x1f0] sm:$0xff]
  %v85 = vld [vmem:[%s0 + $0x1f8] sm:$0xff]
  %v86 = vld [vmem:[%s0 + $0x200] sm:$0xff]
  %v87 = vld [vmem:[%s0 + $0x208] sm:$0xff]
  %v88 = vld [vmem:[%s0 + $0x210] sm:$0xff]
  %v89 = vld [vmem:[%s0 + $0x218] sm:$0xff]
  %v90 = vld [vmem:[%s0 + $0x220] sm:$0xff]
  %v91 = vld [vmem:[%s0 + $0x228] sm:$0xff]
  %v92 = vld [vmem:[%s0 + $0x230] sm:$0xff]
  %v93 = vld [vmem:[%s0 + $0x238] sm:$0xff]
  %v94 = vld [vmem:[%s0 + $0x240] sm:$0xff]
  %v95 = vld [vmem:[%s0 + $0x248] sm:$0xff]
  %v96 = vld [vmem:[%s0 + $0x250] sm:$0xff]
  %v97 = vld [vmem:[%s0 + $0x258] sm:$0xff]
  %v98 = vld [vmem:[%s0 + $0x260] sm:$0xff]
  %v99 = vld [vmem:[%s0 + $0x268] sm:$0xff]
  %v100 = vld [vmem:[%s0 + $0x270] sm:$0xff]
  %v101 = vld [vmem:[%s0 + $0x278] sm:$0xff]
  %v102 = vld [vmem:[%s0 + $0x280] sm:$0xff]
  %v103 = vld [vmem:[%s0 + $0x288] sm:$0xff]
  %v104 = vld [vmem:[%s0 + $0x290] sm:$0xff]
  %v105 = vld [vmem:[%s0 + $0x298] sm:$0xff]
  %v106 = vld [vmem:[%s0 + $0x2a0] sm:$0xff]
  %v107 = vld [vmem:[%s0 + $0x2a8] sm:$0xff]
  %v108 = vld [vmem:[%s0 + $0x2b0] sm:$0xff]
  %v109 = vld [vmem:[%s0 + $0x2b8] sm:$0xff]
  %v110 = vld [vmem:[%s0 + $0x2c0] sm:$0xff]
  %v111 = vld [vmem:[%s0 + $0x2c8] sm:$0xff]
  %v112 = vld [vmem:[%s0 + $0x2d0] sm:$0xff]
  %v113 = vld [vmem:[%s0 + $0x2d8] sm:$0xff]
  %v114 = vld [vmem:[%s0 + $0x2e0] sm:$0xff]
  %v115 = vld [vmem:[%s0 + $0x2e8] sm:$0xff]
  %v116 = vld [vmem:[%s0 + $0x2f0] sm:$0xff]
  %v117 = vld [vmem:[%s0 + $0x2f8] sm:$0xff]
  %v118 = vld [vmem:[%s0 + $0x300] sm:$0x33]
  %v119 = vld [vmem:[%s0 + $0x308] sm:$0x33]
  %v120 = vld [vmem:[%s0 + $0x310] sm:$0x33]
  %v121 = vld [vmem:[%s0 + $0x318] sm:$0x33]
  %v122 = vld [vmem:[%s0 + $0x320] sm:$0x33]
  %v123 = vld [vmem:[%s0 + $0x328] sm:$0x33]
  %v124 = vld [vmem:[%s0 + $0x330] sm:$0x33]
  %v125 = vld [vmem:[%s0 + $0x338] sm:$0x33]
  %v126 = vld [vmem:[%s0 + $0x340] sm:$0x33]
  %v127 = vld [vmem:[%s0 + $0x348] sm:$0x33]
  %v128 = vld [vmem:[%s0 + $0x350] sm:$0x33]
  %v129 = vld [vmem:[%s0 + $0x358] sm:$0x33]
  %v130 = vld [vmem:[%s0 + $0x360] sm:$0x33]
  %v131 = vld [vmem:[%s0 + $0x368] sm:$0x33]
  %v132 = vld [vmem:[%s0 + $0x370] sm:$0x33]
  %v133 = vld [vmem:[%s0 + $0x378] sm:$0x33]
  %v134 = vld [vmem:[%s0 + $0x380] sm:$0x33]
  %v135 = vld [vmem:[%s0 + $0x388] sm:$0x33]
  %v136 = vld [vmem:[%s0 + $0x390] sm:$0x33]
  %v137 = vld [vmem:[%s0 + $0x398] sm:$0x33]
  %v138 = vld [vmem:[%s0 + $0x3a0] sm:$0x33]
  %v139 = vld [vmem:[%s0 + $0x3a8] sm:$0x33]
  %v140 = vld [vmem:[%s0 + $0x3b0] sm:$0x33]
  %v141 = vld [vmem:[%s0 + $0x3b8] sm:$0x33]
  %v142 = vld [vmem:[%s0 + $0x3c0] sm:$0x33]
  %v143 = vld [vmem:[%s0 + $0x3c8] sm:$0x33]
  %v144 = vld [vmem:[%s0 + $0x3d0] sm:$0x33]
  %v145 = vld [vmem:[%s0 + $0x3d8] sm:$0x33]
  %v146 = vld [vmem:[%s0 + $0x3e0] sm:$0x33]
  %v147 = vld [vmem:[%s0 + $0x3e8] sm:$0x33]
  %v148 = vld [vmem:[%s0 + $0x3f0] sm:$0x33]
  %v149 = vld [vmem:[%s0 + $0x3f8] sm:$0x33]
  %v150 = vld [vmem:[%s2] sm:$0xff]
  %152 = vset.pattern.permute.xlu0 0
  %153 = vperm.xlu0 %152, %v150
  %v154 = vpop.permute.xlu0 %153
  %v284 = vunpack.c.l.b16 %v22
  %v285 = vunpack.c.h.b16 %v22
  %v286 = vunpack.c.l.b16 %v23
  %v287 = vunpack.c.h.b16 %v23
  %v288 = vunpack.c.l.b16 %v24
  %v289 = vunpack.c.h.b16 %v24
  %v290 = vunpack.c.l.b16 %v25
  %v291 = vunpack.c.h.b16 %v25
  %v292 = vunpack.c.l.b16 %v26
  %v293 = vunpack.c.h.b16 %v26
  %v294 = vunpack.c.l.b16 %v27
  %v295 = vunpack.c.h.b16 %v27
  %v296 = vunpack.c.l.b16 %v28
  %v297 = vunpack.c.h.b16 %v28
  %v298 = vunpack.c.l.b16 %v29
  %v299 = vunpack.c.h.b16 %v29
  %v300 = vunpack.c.l.b16 %v30
  %v301 = vunpack.c.h.b16 %v30
  %v302 = vunpack.c.l.b16 %v31
  %v303 = vunpack.c.h.b16 %v31
  %v304 = vunpack.c.l.b16 %v32
  %v305 = vunpack.c.h.b16 %v32
  %v306 = vunpack.c.l.b16 %v33
  %v307 = vunpack.c.h.b16 %v33
  %v308 = vunpack.c.l.b16 %v34
  %v309 = vunpack.c.h.b16 %v34
  %v310 = vunpack.c.l.b16 %v35
  %v311 = vunpack.c.h.b16 %v35
  %v312 = vunpack.c.l.b16 %v36
  %v313 = vunpack.c.h.b16 %v36
  %v314 = vunpack.c.l.b16 %v37
  %v315 = vunpack.c.h.b16 %v37
  %v316 = vunpack.c.l.b16 %v38
  %v317 = vunpack.c.h.b16 %v38
  %v318 = vunpack.c.l.b16 %v39
  %v319 = vunpack.c.h.b16 %v39
  %v320 = vunpack.c.l.b16 %v40
  %v321 = vunpack.c.h.b16 %v40
  %v322 = vunpack.c.l.b16 %v41
  %v323 = vunpack.c.h.b16 %v41
  %v324 = vunpack.c.l.b16 %v42
  %v325 = vunpack.c.h.b16 %v42
  %v326 = vunpack.c.l.b16 %v43
  %v327 = vunpack.c.h.b16 %v43
  %v328 = vunpack.c.l.b16 %v44
  %v329 = vunpack.c.h.b16 %v44
  %v330 = vunpack.c.l.b16 %v45
  %v331 = vunpack.c.h.b16 %v45
  %v332 = vunpack.c.l.b16 %v46
  %v333 = vunpack.c.h.b16 %v46
  %v334 = vunpack.c.l.b16 %v47
  %v335 = vunpack.c.h.b16 %v47
  %v336 = vunpack.c.l.b16 %v48
  %v337 = vunpack.c.h.b16 %v48
  %v338 = vunpack.c.l.b16 %v49
  %v339 = vunpack.c.h.b16 %v49
  %v340 = vunpack.c.l.b16 %v50
  %v341 = vunpack.c.h.b16 %v50
  %v342 = vunpack.c.l.b16 %v51
  %v343 = vunpack.c.h.b16 %v51
  %v344 = vunpack.c.l.b16 %v52
  %v345 = vunpack.c.h.b16 %v52
  %v346 = vunpack.c.l.b16 %v53
  %v347 = vunpack.c.h.b16 %v53
  %v348 = vunpack.c.l.b16 %v54
  %v349 = vunpack.c.h.b16 %v54
  %v350 = vunpack.c.l.b16 %v55
  %v351 = vunpack.c.h.b16 %v55
  %v352 = vunpack.c.l.b16 %v56
  %v353 = vunpack.c.h.b16 %v56
  %v354 = vunpack.c.l.b16 %v57
  %v355 = vunpack.c.h.b16 %v57
  %v356 = vunpack.c.l.b16 %v58
  %v357 = vunpack.c.h.b16 %v58
  %v358 = vunpack.c.l.b16 %v59
  %v359 = vunpack.c.h.b16 %v59
  %v360 = vunpack.c.l.b16 %v60
  %v361 = vunpack.c.h.b16 %v60
  %v362 = vunpack.c.l.b16 %v61
  %v363 = vunpack.c.h.b16 %v61
  %v364 = vunpack.c.l.b16 %v62
  %v365 = vunpack.c.h.b16 %v62
  %v366 = vunpack.c.l.b16 %v63
  %v367 = vunpack.c.h.b16 %v63
  %v368 = vunpack.c.l.b16 %v64
  %v369 = vunpack.c.h.b16 %v64
  %v370 = vunpack.c.l.b16 %v65
  %v371 = vunpack.c.h.b16 %v65
  %v372 = vunpack.c.l.b16 %v66
  %v373 = vunpack.c.h.b16 %v66
  %v374 = vunpack.c.l.b16 %v67
  %v375 = vunpack.c.h.b16 %v67
  %v376 = vunpack.c.l.b16 %v68
  %v377 = vunpack.c.h.b16 %v68
  %v378 = vunpack.c.l.b16 %v69
  %v379 = vunpack.c.h.b16 %v69
  %v380 = vunpack.c.l.b16 %v70
  %v381 = vunpack.c.h.b16 %v70
  %v382 = vunpack.c.l.b16 %v71
  %v383 = vunpack.c.h.b16 %v71
  %v384 = vunpack.c.l.b16 %v72
  %v385 = vunpack.c.h.b16 %v72
  %v386 = vunpack.c.l.b16 %v73
  %v387 = vunpack.c.h.b16 %v73
  %v388 = vunpack.c.l.b16 %v74
  %v389 = vunpack.c.h.b16 %v74
  %v390 = vunpack.c.l.b16 %v75
  %v391 = vunpack.c.h.b16 %v75
  %v392 = vunpack.c.l.b16 %v76
  %v393 = vunpack.c.h.b16 %v76
  %v394 = vunpack.c.l.b16 %v77
  %v395 = vunpack.c.h.b16 %v77
  %v396 = vunpack.c.l.b16 %v78
  %v397 = vunpack.c.h.b16 %v78
  %v398 = vunpack.c.l.b16 %v79
  %v399 = vunpack.c.h.b16 %v79
  %v400 = vunpack.c.l.b16 %v80
  %v401 = vunpack.c.h.b16 %v80
  %v402 = vunpack.c.l.b16 %v81
  %v403 = vunpack.c.h.b16 %v81
  %v404 = vunpack.c.l.b16 %v82
  %v405 = vunpack.c.h.b16 %v82
  %v406 = vunpack.c.l.b16 %v83
  %v407 = vunpack.c.h.b16 %v83
  %v408 = vunpack.c.l.b16 %v84
  %v409 = vunpack.c.h.b16 %v84
  %v410 = vunpack.c.l.b16 %v85
  %v411 = vunpack.c.h.b16 %v85
  %v412 = vunpack.c.l.b16 %v86
  %v413 = vunpack.c.h.b16 %v86
  %v414 = vunpack.c.l.b16 %v87
  %v415 = vunpack.c.h.b16 %v87
  %v416 = vunpack.c.l.b16 %v88
  %v417 = vunpack.c.h.b16 %v88
  %v418 = vunpack.c.l.b16 %v89
  %v419 = vunpack.c.h.b16 %v89
  %v420 = vunpack.c.l.b16 %v90
  %v421 = vunpack.c.h.b16 %v90
  %v422 = vunpack.c.l.b16 %v91
  %v423 = vunpack.c.h.b16 %v91
  %v424 = vunpack.c.l.b16 %v92
  %v425 = vunpack.c.h.b16 %v92
  %v426 = vunpack.c.l.b16 %v93
  %v427 = vunpack.c.h.b16 %v93
  %v428 = vunpack.c.l.b16 %v94
  %v429 = vunpack.c.h.b16 %v94
  %v430 = vunpack.c.l.b16 %v95
  %v431 = vunpack.c.h.b16 %v95
  %v432 = vunpack.c.l.b16 %v96
  %v433 = vunpack.c.h.b16 %v96
  %v434 = vunpack.c.l.b16 %v97
  %v435 = vunpack.c.h.b16 %v97
  %v436 = vunpack.c.l.b16 %v98
  %v437 = vunpack.c.h.b16 %v98
  %v438 = vunpack.c.l.b16 %v99
  %v439 = vunpack.c.h.b16 %v99
  %v440 = vunpack.c.l.b16 %v100
  %v441 = vunpack.c.h.b16 %v100
  %v442 = vunpack.c.l.b16 %v101
  %v443 = vunpack.c.h.b16 %v101
  %v444 = vunpack.c.l.b16 %v102
  %v445 = vunpack.c.h.b16 %v102
  %v446 = vunpack.c.l.b16 %v103
  %v447 = vunpack.c.h.b16 %v103
  %v448 = vunpack.c.l.b16 %v104
  %v449 = vunpack.c.h.b16 %v104
  %v450 = vunpack.c.l.b16 %v105
  %v451 = vunpack.c.h.b16 %v105
  %v452 = vunpack.c.l.b16 %v106
  %v453 = vunpack.c.h.b16 %v106
  %v454 = vunpack.c.l.b16 %v107
  %v455 = vunpack.c.h.b16 %v107
  %v456 = vunpack.c.l.b16 %v108
  %v457 = vunpack.c.h.b16 %v108
  %v458 = vunpack.c.l.b16 %v109
  %v459 = vunpack.c.h.b16 %v109
  %v460 = vunpack.c.l.b16 %v110
  %v461 = vunpack.c.h.b16 %v110
  %v462 = vunpack.c.l.b16 %v111
  %v463 = vunpack.c.h.b16 %v111
  %v464 = vunpack.c.l.b16 %v112
  %v465 = vunpack.c.h.b16 %v112
  %v466 = vunpack.c.l.b16 %v113
  %v467 = vunpack.c.h.b16 %v113
  %v468 = vunpack.c.l.b16 %v114
  %v469 = vunpack.c.h.b16 %v114
  %v470 = vunpack.c.l.b16 %v115
  %v471 = vunpack.c.h.b16 %v115
  %v472 = vunpack.c.l.b16 %v116
  %v473 = vunpack.c.h.b16 %v116
  %v474 = vunpack.c.l.b16 %v117
  %v475 = vunpack.c.h.b16 %v117
  %v476 = vunpack.c.l.b16 %v118
  %v477 = vunpack.c.h.b16 %v118
  %v478 = vunpack.c.l.b16 %v119
  %v479 = vunpack.c.h.b16 %v119
  %v480 = vunpack.c.l.b16 %v120
  %v481 = vunpack.c.h.b16 %v120
  %v482 = vunpack.c.l.b16 %v121
  %v483 = vunpack.c.h.b16 %v121
  %v484 = vunpack.c.l.b16 %v122
  %v485 = vunpack.c.h.b16 %v122
  %v486 = vunpack.c.l.b16 %v123
  %v487 = vunpack.c.h.b16 %v123
  %v488 = vunpack.c.l.b16 %v124
  %v489 = vunpack.c.h.b16 %v124
  %v490 = vunpack.c.l.b16 %v125
  %v491 = vunpack.c.h.b16 %v125
  %v492 = vunpack.c.l.b16 %v126
  %v493 = vunpack.c.h.b16 %v126
  %v494 = vunpack.c.l.b16 %v127
  %v495 = vunpack.c.h.b16 %v127
  %v496 = vunpack.c.l.b16 %v128
  %v497 = vunpack.c.h.b16 %v128
  %v498 = vunpack.c.l.b16 %v129
  %v499 = vunpack.c.h.b16 %v129
  %v500 = vunpack.c.l.b16 %v130
  %v501 = vunpack.c.h.b16 %v130
  %v502 = vunpack.c.l.b16 %v131
  %v503 = vunpack.c.h.b16 %v131
  %v504 = vunpack.c.l.b16 %v132
  %v505 = vunpack.c.h.b16 %v132
  %v506 = vunpack.c.l.b16 %v133
  %v507 = vunpack.c.h.b16 %v133
  %v508 = vunpack.c.l.b16 %v134
  %v509 = vunpack.c.h.b16 %v134
  %v510 = vunpack.c.l.b16 %v135
  %v511 = vunpack.c.h.b16 %v135
  %v512 = vunpack.c.l.b16 %v136
  %v513 = vunpack.c.h.b16 %v136
  %v514 = vunpack.c.l.b16 %v137
  %v515 = vunpack.c.h.b16 %v137
  %v516 = vunpack.c.l.b16 %v138
  %v517 = vunpack.c.h.b16 %v138
  %v518 = vunpack.c.l.b16 %v139
  %v519 = vunpack.c.h.b16 %v139
  %v520 = vunpack.c.l.b16 %v140
  %v521 = vunpack.c.h.b16 %v140
  %v522 = vunpack.c.l.b16 %v141
  %v523 = vunpack.c.h.b16 %v141
  %v524 = vunpack.c.l.b16 %v142
  %v525 = vunpack.c.h.b16 %v142
  %v526 = vunpack.c.l.b16 %v143
  %v527 = vunpack.c.h.b16 %v143
  %v528 = vunpack.c.l.b16 %v144
  %v529 = vunpack.c.h.b16 %v144
  %v530 = vunpack.c.l.b16 %v145
  %v531 = vunpack.c.h.b16 %v145
  %v532 = vunpack.c.l.b16 %v146
  %v533 = vunpack.c.h.b16 %v146
  %v534 = vunpack.c.l.b16 %v147
  %v535 = vunpack.c.h.b16 %v147
  %v536 = vunpack.c.l.b16 %v148
  %v537 = vunpack.c.h.b16 %v148
  %v538 = vunpack.c.l.b16 %v149
  %v539 = vunpack.c.h.b16 %v149
  %v540 = vpack.c.b16 %v348, %v284
  %v541 = vpack.c.b16 %v349, %v285
  %v542 = vpack.c.b16 %v350, %v286
  %v543 = vpack.c.b16 %v351, %v287
  %v544 = vpack.c.b16 %v352, %v288
  %v545 = vpack.c.b16 %v353, %v289
  %v546 = vpack.c.b16 %v354, %v290
  %v547 = vpack.c.b16 %v355, %v291
  %v548 = vpack.c.b16 %v356, %v292
  %v549 = vpack.c.b16 %v357, %v293
  %v550 = vpack.c.b16 %v358, %v294
  %v551 = vpack.c.b16 %v359, %v295
  %v552 = vpack.c.b16 %v360, %v296
  %v553 = vpack.c.b16 %v361, %v297
  %v554 = vpack.c.b16 %v362, %v298
  %v555 = vpack.c.b16 %v363, %v299
  %v556 = vpack.c.b16 %v364, %v300
  %v557 = vpack.c.b16 %v365, %v301
  %v558 = vpack.c.b16 %v366, %v302
  %v559 = vpack.c.b16 %v367, %v303
  %v560 = vpack.c.b16 %v368, %v304
  %v561 = vpack.c.b16 %v369, %v305
  %v562 = vpack.c.b16 %v370, %v306
  %v563 = vpack.c.b16 %v371, %v307
  %v564 = vpack.c.b16 %v372, %v308
  %v565 = vpack.c.b16 %v373, %v309
  %v566 = vpack.c.b16 %v374, %v310
  %v567 = vpack.c.b16 %v375, %v311
  %v568 = vpack.c.b16 %v376, %v312
  %v569 = vpack.c.b16 %v377, %v313
  %v570 = vpack.c.b16 %v378, %v314
  %v571 = vpack.c.b16 %v379, %v315
  %v572 = vpack.c.b16 %v380, %v316
  %v573 = vpack.c.b16 %v381, %v317
  %v574 = vpack.c.b16 %v382, %v318
  %v575 = vpack.c.b16 %v383, %v319
  %v576 = vpack.c.b16 %v384, %v320
  %v577 = vpack.c.b16 %v385, %v321
  %v578 = vpack.c.b16 %v386, %v322
  %v579 = vpack.c.b16 %v387, %v323
  %v580 = vpack.c.b16 %v388, %v324
  %v581 = vpack.c.b16 %v389, %v325
  %v582 = vpack.c.b16 %v390, %v326
  %v583 = vpack.c.b16 %v391, %v327
  %v584 = vpack.c.b16 %v392, %v328
  %v585 = vpack.c.b16 %v393, %v329
  %v586 = vpack.c.b16 %v394, %v330
  %v587 = vpack.c.b16 %v395, %v331
  %v588 = vpack.c.b16 %v396, %v332
  %v589 = vpack.c.b16 %v397, %v333
  %v590 = vpack.c.b16 %v398, %v334
  %v591 = vpack.c.b16 %v399, %v335
  %v592 = vpack.c.b16 %v400, %v336
  %v593 = vpack.c.b16 %v401, %v337
  %v594 = vpack.c.b16 %v402, %v338
  %v595 = vpack.c.b16 %v403, %v339
  %v596 = vpack.c.b16 %v404, %v340
  %v597 = vpack.c.b16 %v405, %v341
  %v598 = vpack.c.b16 %v406, %v342
  %v599 = vpack.c.b16 %v407, %v343
  %v600 = vpack.c.b16 %v408, %v344
  %v601 = vpack.c.b16 %v409, %v345
  %v602 = vpack.c.b16 %v410, %v346
  %v603 = vpack.c.b16 %v411, %v347
  %v604 = vpack.c.b16 %v476, %v412
  %v605 = vpack.c.b16 %v477, %v413
  %v606 = vpack.c.b16 %v478, %v414
  %v607 = vpack.c.b16 %v479, %v415
  %v608 = vpack.c.b16 %v480, %v416
  %v609 = vpack.c.b16 %v481, %v417
  %v610 = vpack.c.b16 %v482, %v418
  %v611 = vpack.c.b16 %v483, %v419
  %v612 = vpack.c.b16 %v484, %v420
  %v613 = vpack.c.b16 %v485, %v421
  %v614 = vpack.c.b16 %v486, %v422
  %v615 = vpack.c.b16 %v487, %v423
  %v616 = vpack.c.b16 %v488, %v424
  %v617 = vpack.c.b16 %v489, %v425
  %v618 = vpack.c.b16 %v490, %v426
  %v619 = vpack.c.b16 %v491, %v427
  %v620 = vpack.c.b16 %v492, %v428
  %v621 = vpack.c.b16 %v493, %v429
  %v622 = vpack.c.b16 %v494, %v430
  %v623 = vpack.c.b16 %v495, %v431
  %v624 = vpack.c.b16 %v496, %v432
  %v625 = vpack.c.b16 %v497, %v433
  %v626 = vpack.c.b16 %v498, %v434
  %v627 = vpack.c.b16 %v499, %v435
  %v628 = vpack.c.b16 %v500, %v436
  %v629 = vpack.c.b16 %v501, %v437
  %v630 = vpack.c.b16 %v502, %v438
  %v631 = vpack.c.b16 %v503, %v439
  %v632 = vpack.c.b16 %v504, %v440
  %v633 = vpack.c.b16 %v505, %v441
  %v634 = vpack.c.b16 %v506, %v442
  %v635 = vpack.c.b16 %v507, %v443
  %v636 = vpack.c.b16 %v508, %v444
  %v637 = vpack.c.b16 %v509, %v445
  %v638 = vpack.c.b16 %v510, %v446
  %v639 = vpack.c.b16 %v511, %v447
  %v640 = vpack.c.b16 %v512, %v448
  %v641 = vpack.c.b16 %v513, %v449
  %v642 = vpack.c.b16 %v514, %v450
  %v643 = vpack.c.b16 %v515, %v451
  %v644 = vpack.c.b16 %v516, %v452
  %v645 = vpack.c.b16 %v517, %v453
  %v646 = vpack.c.b16 %v518, %v454
  %v647 = vpack.c.b16 %v519, %v455
  %v648 = vpack.c.b16 %v520, %v456
  %v649 = vpack.c.b16 %v521, %v457
  %v650 = vpack.c.b16 %v522, %v458
  %v651 = vpack.c.b16 %v523, %v459
  %v652 = vpack.c.b16 %v524, %v460
  %v653 = vpack.c.b16 %v525, %v461
  %v654 = vpack.c.b16 %v526, %v462
  %v655 = vpack.c.b16 %v527, %v463
  %v656 = vpack.c.b16 %v528, %v464
  %v657 = vpack.c.b16 %v529, %v465
  %v658 = vpack.c.b16 %v530, %v466
  %v659 = vpack.c.b16 %v531, %v467
  %v660 = vpack.c.b16 %v532, %v468
  %v661 = vpack.c.b16 %v533, %v469
  %v662 = vpack.c.b16 %v534, %v470
  %v663 = vpack.c.b16 %v535, %v471
  %v664 = vpack.c.b16 %v536, %v472
  %v665 = vpack.c.b16 %v537, %v473
  %v666 = vpack.c.b16 %v538, %v474
  %v667 = vpack.c.b16 %v539, %v475
  %vm732 = vcmask 220160
  %v734 = vsel %vm732, %v21, 0
  %vm736 = vcmask 1044480
  %vm737 = vcmask 1045504
  %v738 = vsel %vm736, 4294967295, 65535
  %v739 = vsel %vm737, %v738, 0
  %v741 = vand.u32 %v604, %v739
  %v744 = vand.u32 %v605, %v739
  %v747 = vand.u32 %v606, %v739
  %v750 = vand.u32 %v607, %v739
  %v753 = vand.u32 %v608, %v739
  %v756 = vand.u32 %v609, %v739
  %v759 = vand.u32 %v610, %v739
  %v762 = vand.u32 %v611, %v739
  %v765 = vand.u32 %v612, %v739
  %v768 = vand.u32 %v613, %v739
  %v771 = vand.u32 %v614, %v739
  %v774 = vand.u32 %v615, %v739
  %v777 = vand.u32 %v616, %v739
  %v780 = vand.u32 %v617, %v739
  %v783 = vand.u32 %v618, %v739
  %v786 = vand.u32 %v619, %v739
  %v789 = vand.u32 %v620, %v739
  %v792 = vand.u32 %v621, %v739
  %v795 = vand.u32 %v622, %v739
  %v798 = vand.u32 %v623, %v739
  %v801 = vand.u32 %v624, %v739
  %v804 = vand.u32 %v625, %v739
  %v807 = vand.u32 %v626, %v739
  %v810 = vand.u32 %v627, %v739
  %v813 = vand.u32 %v628, %v739
  %v816 = vand.u32 %v629, %v739
  %v819 = vand.u32 %v630, %v739
  %v822 = vand.u32 %v631, %v739
  %v825 = vand.u32 %v632, %v739
  %v828 = vand.u32 %v633, %v739
  %v831 = vand.u32 %v634, %v739
  %v834 = vand.u32 %v635, %v739
  %v837 = vand.u32 %v636, %v739
  %v840 = vand.u32 %v637, %v739
  %v843 = vand.u32 %v638, %v739
  %v846 = vand.u32 %v639, %v739
  %v849 = vand.u32 %v640, %v739
  %v852 = vand.u32 %v641, %v739
  %v855 = vand.u32 %v642, %v739
  %v858 = vand.u32 %v643, %v739
  %v861 = vand.u32 %v644, %v739
  %v864 = vand.u32 %v645, %v739
  %v867 = vand.u32 %v646, %v739
  %v870 = vand.u32 %v647, %v739
  %v873 = vand.u32 %v648, %v739
  %v876 = vand.u32 %v649, %v739
  %v879 = vand.u32 %v650, %v739
  %v882 = vand.u32 %v651, %v739
  %v885 = vand.u32 %v652, %v739
  %v888 = vand.u32 %v653, %v739
  %v891 = vand.u32 %v654, %v739
  %v894 = vand.u32 %v655, %v739
  %v897 = vand.u32 %v656, %v739
  %v900 = vand.u32 %v657, %v739
  %v903 = vand.u32 %v658, %v739
  %v906 = vand.u32 %v659, %v739
  %v909 = vand.u32 %v660, %v739
  %v912 = vand.u32 %v661, %v739
  %v915 = vand.u32 %v662, %v739
  %v918 = vand.u32 %v663, %v739
  %v921 = vand.u32 %v664, %v739
  %v924 = vand.u32 %v665, %v739
  %v927 = vand.u32 %v666, %v739
  %v930 = vand.u32 %v667, %v739
  %932 = vmatprep.subr.bf16.mxu0 0
  %933 = vmatpush1.bf16.msra.mxu0 0
  %934 = vmatprep.subr.bf16.mxu0 0
  %935 = vmatpush1.bf16.msra.mxu0 0
  %936 = vmatprep.subr.bf16.mxu0 0
  %937 = vmatpush1.bf16.msra.mxu0 0
  %938 = vmatprep.subr.bf16.mxu0 0
  %939 = vmatpush1.bf16.msra.mxu0 0
  %940 = vmatprep.subr.bf16.mxu0 0
  %941 = vmatpush1.bf16.msra.mxu0 0
  %942 = vmatprep.subr.bf16.mxu0 0
  %943 = vmatpush1.bf16.msra.mxu0 0
  %944 = vmatprep.subr.bf16.mxu0 %v744
  %945 = vmatpush1.bf16.msra.mxu0 %v741
  %946 = vmatprep.subr.bf16.mxu0 %v541
  %947 = vmatpush1.bf16.msra.mxu0 %v540
  %948 = vmatprep.subr.bf16.mxu0 0
  %949 = vmatpush2.bf16.msra.mxu0 0
  %950 = vmatprep.subr.bf16.mxu0 0
  %951 = vmatpush2.bf16.msra.mxu0 0
  %952 = vmatprep.subr.bf16.mxu0 0
  %953 = vmatpush2.bf16.msra.mxu0 0
  %954 = vmatprep.subr.bf16.mxu0 0
  %955 = vmatpush2.bf16.msra.mxu0 0
  %956 = vmatprep.subr.bf16.mxu0 0
  %957 = vmatpush2.bf16.msra.mxu0 0
  %958 = vmatprep.subr.bf16.mxu0 0
  %959 = vmatpush2.bf16.msra.mxu0 0
  %960 = vmatprep.subr.bf16.mxu0 0
  %961 = vmatpush2.bf16.msra.mxu0 0
  %962 = vmatprep.subr.bf16.mxu0 0
  %963 = vmatpush2.bf16.msra.mxu0 0
  %964 = vmatprep.mubr.bf16.mxu0 0
  %965 = vmatmul.mubr.bf16.gmra.mxu0 %v734
  %v966 = vpop.f32.mrf.mxu0
  %v967 = vadd.f32 %v154, %v966
  %v968 = vpop.f32.mrf.mxu0
  %v969 = vadd.f32 %v154, %v968
  %v970 = vpop.f32.mrf.mxu0
  %v971 = vpop.f32.mrf.mxu0
  %972 = vdwg.mxu0
  %973 = vmatprep.subr.bf16.mxu0 0
  %974 = vmatpush1.bf16.msra.mxu0 0
  %975 = vmatprep.subr.bf16.mxu0 0
  %976 = vmatpush1.bf16.msra.mxu0 0
  %977 = vmatprep.subr.bf16.mxu0 0
  %978 = vmatpush1.bf16.msra.mxu0 0
  %979 = vmatprep.subr.bf16.mxu0 0
  %980 = vmatpush1.bf16.msra.mxu0 0
  %981 = vmatprep.subr.bf16.mxu0 0
  %982 = vmatpush1.bf16.msra.mxu0 0
  %983 = vmatprep.subr.bf16.mxu0 0
  %984 = vmatpush1.bf16.msra.mxu0 0
  %985 = vmatprep.subr.bf16.mxu0 %v750
  %986 = vmatpush1.bf16.msra.mxu0 %v747
  %987 = vmatprep.subr.bf16.mxu0 %v543
  %988 = vmatpush1.bf16.msra.mxu0 %v542
  %989 = vmatprep.subr.bf16.mxu0 0
  %990 = vmatpush2.bf16.msra.mxu0 0
  %991 = vmatprep.subr.bf16.mxu0 0
  %992 = vmatpush2.bf16.msra.mxu0 0
  %993 = vmatprep.subr.bf16.mxu0 0
  %994 = vmatpush2.bf16.msra.mxu0 0
  %995 = vmatprep.subr.bf16.mxu0 0
  %996 = vmatpush2.bf16.msra.mxu0 0
  %997 = vmatprep.subr.bf16.mxu0 0
  %998 = vmatpush2.bf16.msra.mxu0 0
  %999 = vmatprep.subr.bf16.mxu0 0
  %1000 = vmatpush2.bf16.msra.mxu0 0
  %1001 = vmatprep.subr.bf16.mxu0 0
  %1002 = vmatpush2.bf16.msra.mxu0 0
  %1003 = vmatprep.subr.bf16.mxu0 0
  %1004 = vmatpush2.bf16.msra.mxu0 0
  %1005 = vmatprep.mubr.bf16.mxu0 0
  %1006 = vmatmul.mubr.bf16.gmra.mxu0 %v734
  %v1007 = vpop.f32.mrf.mxu0
  %v1008 = vadd.f32 %v154, %v1007
  %v1009 = vpop.f32.mrf.mxu0
  %v1010 = vadd.f32 %v154, %v1009
  %v1011 = vpop.f32.mrf.mxu0
  %v1012 = vpop.f32.mrf.mxu0
  %1013 = vdwg.mxu0
  %1014 = vmatprep.subr.bf16.mxu0 0
  %1015 = vmatpush1.bf16.msra.mxu0 0
  %1016 = vmatprep.subr.bf16.mxu0 0
  %1017 = vmatpush1.bf16.msra.mxu0 0
  %1018 = vmatprep.subr.bf16.mxu0 0
  %1019 = vmatpush1.bf16.msra.mxu0 0
  %1020 = vmatprep.subr.bf16.mxu0 0
  %1021 = vmatpush1.bf16.msra.mxu0 0
  %1022 = vmatprep.subr.bf16.mxu0 0
  %1023 = vmatpush1.bf16.msra.mxu0 0
  %1024 = vmatprep.subr.bf16.mxu0 0
  %1025 = vmatpush1.bf16.msra.mxu0 0
  %1026 = vmatprep.subr.bf16.mxu0 %v756
  %1027 = vmatpush1.bf16.msra.mxu0 %v753
  %1028 = vmatprep.subr.bf16.mxu0 %v545
  %1029 = vmatpush1.bf16.msra.mxu0 %v544
  %1030 = vmatprep.subr.bf16.mxu0 0
  %1031 = vmatpush2.bf16.msra.mxu0 0
  %1032 = vmatprep.subr.bf16.mxu0 0
  %1033 = vmatpush2.bf16.msra.mxu0 0
  %1034 = vmatprep.subr.bf16.mxu0 0
  %1035 = vmatpush2.bf16.msra.mxu0 0
  %1036 = vmatprep.subr.bf16.mxu0 0
  %1037 = vmatpush2.bf16.msra.mxu0 0
  %1038 = vmatprep.subr.bf16.mxu0 0
  %1039 = vmatpush2.bf16.msra.mxu0 0
  %1040 = vmatprep.subr.bf16.mxu0 0
  %1041 = vmatpush2.bf16.msra.mxu0 0
  %1042 = vmatprep.subr.bf16.mxu0 0
  %1043 = vmatpush2.bf16.msra.mxu0 0
  %1044 = vmatprep.subr.bf16.mxu0 0
  %1045 = vmatpush2.bf16.msra.mxu0 0
  %1046 = vmatprep.mubr.bf16.mxu0 0
  %1047 = vmatmul.mubr.bf16.gmra.mxu0 %v734
  %v1048 = vpop.f32.mrf.mxu0
  %v1049 = vadd.f32 %v154, %v1048
  %v1050 = vpop.f32.mrf.mxu0
  %v1051 = vadd.f32 %v154, %v1050
  %v1052 = vpop.f32.mrf.mxu0
  %v1053 = vpop.f32.mrf.mxu0
  %1054 = vdwg.mxu0
  %1055 = vmatprep.subr.bf16.mxu0 0
  %1056 = vmatpush1.bf16.msra.mxu0 0
  %1057 = vmatprep.subr.bf16.mxu0 0
  %1058 = vmatpush1.bf16.msra.mxu0 0
  %1059 = vmatprep.subr.bf16.mxu0 0
  %1060 = vmatpush1.bf16.msra.mxu0 0
  %1061 = vmatprep.subr.bf16.mxu0 0
  %1062 = vmatpush1.bf16.msra.mxu0 0
  %1063 = vmatprep.subr.bf16.mxu0 0
  %1064 = vmatpush1.bf16.msra.mxu0 0
  %1065 = vmatprep.subr.bf16.mxu0 0
  %1066 = vmatpush1.bf16.msra.mxu0 0
  %1067 = vmatprep.subr.bf16.mxu0 %v762
  %1068 = vmatpush1.bf16.msra.mxu0 %v759
  %1069 = vmatprep.subr.bf16.mxu0 %v547
  %1070 = vmatpush1.bf16.msra.mxu0 %v546
  %1071 = vmatprep.subr.bf16.mxu0 0
  %1072 = vmatpush2.bf16.msra.mxu0 0
  %1073 = vmatprep.subr.bf16.mxu0 0
  %1074 = vmatpush2.bf16.msra.mxu0 0
  %1075 = vmatprep.subr.bf16.mxu0 0
  %1076 = vmatpush2.bf16.msra.mxu0 0
  %1077 = vmatprep.subr.bf16.mxu0 0
  %1078 = vmatpush2.bf16.msra.mxu0 0
  %1079 = vmatprep.subr.bf16.mxu0 0
  %1080 = vmatpush2.bf16.msra.mxu0 0
  %1081 = vmatprep.subr.bf16.mxu0 0
  %1082 = vmatpush2.bf16.msra.mxu0 0
  %1083 = vmatprep.subr.bf16.mxu0 0
  %1084 = vmatpush2.bf16.msra.mxu0 0
  %1085 = vmatprep.subr.bf16.mxu0 0
  %1086 = vmatpush2.bf16.msra.mxu0 0
  %1087 = vmatprep.mubr.bf16.mxu0 0
  %1088 = vmatmul.mubr.bf16.gmra.mxu0 %v734
  %v1089 = vpop.f32.mrf.mxu0
  %v1090 = vadd.f32 %v154, %v1089
  %v1091 = vpop.f32.mrf.mxu0
  %v1092 = vadd.f32 %v154, %v1091
  %v1093 = vpop.f32.mrf.mxu0
  %v1094 = vpop.f32.mrf.mxu0
  %1095 = vdwg.mxu0
  %1096 = vmatprep.subr.bf16.mxu0 0
  %1097 = vmatpush1.bf16.msra.mxu0 0
  %1098 = vmatprep.subr.bf16.mxu0 0
  %1099 = vmatpush1.bf16.msra.mxu0 0
  %1100 = vmatprep.subr.bf16.mxu0 0
  %1101 = vmatpush1.bf16.msra.mxu0 0
  %1102 = vmatprep.subr.bf16.mxu0 0
  %1103 = vmatpush1.bf16.msra.mxu0 0
  %1104 = vmatprep.subr.bf16.mxu0 0
  %1105 = vmatpush1.bf16.msra.mxu0 0
  %1106 = vmatprep.subr.bf16.mxu0 0
  %1107 = vmatpush1.bf16.msra.mxu0 0
  %1108 = vmatprep.subr.bf16.mxu0 %v768
  %1109 = vmatpush1.bf16.msra.mxu0 %v765
  %1110 = vmatprep.subr.bf16.mxu0 %v549
  %1111 = vmatpush1.bf16.msra.mxu0 %v548
  %1112 = vmatprep.subr.bf16.mxu0 0
  %1113 = vmatpush2.bf16.msra.mxu0 0
  %1114 = vmatprep.subr.bf16.mxu0 0
  %1115 = vmatpush2.bf16.msra.mxu0 0
  %1116 = vmatprep.subr.bf16.mxu0 0
  %1117 = vmatpush2.bf16.msra.mxu0 0
  %1118 = vmatprep.subr.bf16.mxu0 0
  %1119 = vmatpush2.bf16.msra.mxu0 0
  %1120 = vmatprep.subr.bf16.mxu0 0
  %1121 = vmatpush2.bf16.msra.mxu0 0
  %1122 = vmatprep.subr.bf16.mxu0 0
  %1123 = vmatpush2.bf16.msra.mxu0 0
  %1124 = vmatprep.subr.bf16.mxu0 0
  %1125 = vmatpush2.bf16.msra.mxu0 0
  %1126 = vmatprep.subr.bf16.mxu0 0
  %1127 = vmatpush2.bf16.msra.mxu0 0
  %1128 = vmatprep.mubr.bf16.mxu0 0
  %1129 = vmatmul.mubr.bf16.gmra.mxu0 %v734
  %v1130 = vpop.f32.mrf.mxu0
  %v1131 = vadd.f32 %v154, %v1130
  %v1132 = vpop.f32.mrf.mxu0
  %v1133 = vadd.f32 %v154, %v1132
  %v1134 = vpop.f32.mrf.mxu0
  %v1135 = vpop.f32.mrf.mxu0
  %1136 = vdwg.mxu0
  %1137 = vmatprep.subr.bf16.mxu0 0
  %1138 = vmatpush1.bf16.msra.mxu0 0
  %1139 = vmatprep.subr.bf16.mxu0 0
  %1140 = vmatpush1.bf16.msra.mxu0 0
  %1141 = vmatprep.subr.bf16.mxu0 0
  %1142 = vmatpush1.bf16.msra.mxu0 0
  %1143 = vmatprep.subr.bf16.mxu0 0
  %1144 = vmatpush1.bf16.msra.mxu0 0
  %1145 = vmatprep.subr.bf16.mxu0 0
  %1146 = vmatpush1.bf16.msra.mxu0 0
  %1147 = vmatprep.subr.bf16.mxu0 0
  %1148 = vmatpush1.bf16.msra.mxu0 0
  %1149 = vmatprep.subr.bf16.mxu0 %v774
  %1150 = vmatpush1.bf16.msra.mxu0 %v771
  %1151 = vmatprep.subr.bf16.mxu0 %v551
  %1152 = vmatpush1.bf16.msra.mxu0 %v550
  %1153 = vmatprep.subr.bf16.mxu0 0
  %1154 = vmatpush2.bf16.msra.mxu0 0
  %1155 = vmatprep.subr.bf16.mxu0 0
  %1156 = vmatpush2.bf16.msra.mxu0 0
  %1157 = vmatprep.subr.bf16.mxu0 0
  %1158 = vmatpush2.bf16.msra.mxu0 0
  %1159 = vmatprep.subr.bf16.mxu0 0
  %1160 = vmatpush2.bf16.msra.mxu0 0
  %1161 = vmatprep.subr.bf16.mxu0 0
  %1162 = vmatpush2.bf16.msra.mxu0 0
  %1163 = vmatprep.subr.bf16.mxu0 0
  %1164 = vmatpush2.bf16.msra.mxu0 0
  %1165 = vmatprep.subr.bf16.mxu0 0
  %1166 = vmatpush2.bf16.msra.mxu0 0
  %1167 = vmatprep.subr.bf16.mxu0 0
  %1168 = vmatpush2.bf16.msra.mxu0 0
  %1169 = vmatprep.mubr.bf16.mxu0 0
  %1170 = vmatmul.mubr.bf16.gmra.mxu0 %v734
  %v1171 = vpop.f32.mrf.mxu0
  %v1172 = vadd.f32 %v154, %v1171
  %v1173 = vpop.f32.mrf.mxu0
  %v1174 = vadd.f32 %v154, %v1173
  %v1175 = vpop.f32.mrf.mxu0
  %v1176 = vpop.f32.mrf.mxu0
  %1177 = vdwg.mxu0
  %1178 = vmatprep.subr.bf16.mxu0 0
  %1179 = vmatpush1.bf16.msra.mxu0 0
  %1180 = vmatprep.subr.bf16.mxu0 0
  %1181 = vmatpush1.bf16.msra.mxu0 0
  %1182 = vmatprep.subr.bf16.mxu0 0
  %1183 = vmatpush1.bf16.msra.mxu0 0
  %1184 = vmatprep.subr.bf16.mxu0 0
  %1185 = vmatpush1.bf16.msra.mxu0 0
  %1186 = vmatprep.subr.bf16.mxu0 0
  %1187 = vmatpush1.bf16.msra.mxu0 0
  %1188 = vmatprep.subr.bf16.mxu0 0
  %1189 = vmatpush1.bf16.msra.mxu0 0
  %1190 = vmatprep.subr.bf16.mxu0 %v780
  %1191 = vmatpush1.bf16.msra.mxu0 %v777
  %1192 = vmatprep.subr.bf16.mxu0 %v553
  %1193 = vmatpush1.bf16.msra.mxu0 %v552
  %1194 = vmatprep.subr.bf16.mxu0 0
  %1195 = vmatpush2.bf16.msra.mxu0 0
  %1196 = vmatprep.subr.bf16.mxu0 0
  %1197 = vmatpush2.bf16.msra.mxu0 0
  %1198 = vmatprep.subr.bf16.mxu0 0
  %1199 = vmatpush2.bf16.msra.mxu0 0
  %1200 = vmatprep.subr.bf16.mxu0 0
  %1201 = vmatpush2.bf16.msra.mxu0 0
  %1202 = vmatprep.subr.bf16.mxu0 0
  %1203 = vmatpush2.bf16.msra.mxu0 0
  %1204 = vmatprep.subr.bf16.mxu0 0
  %1205 = vmatpush2.bf16.msra.mxu0 0
  %1206 = vmatprep.subr.bf16.mxu0 0
  %1207 = vmatpush2.bf16.msra.mxu0 0
  %1208 = vmatprep.subr.bf16.mxu0 0
  %1209 = vmatpush2.bf16.msra.mxu0 0
  %1210 = vmatprep.mubr.bf16.mxu0 0
  %1211 = vmatmul.mubr.bf16.gmra.mxu0 %v734
  %v1212 = vpop.f32.mrf.mxu0
  %v1213 = vadd.f32 %v154, %v1212
  %v1214 = vpop.f32.mrf.mxu0
  %v1215 = vadd.f32 %v154, %v1214
  %v1216 = vpop.f32.mrf.mxu0
  %v1217 = vpop.f32.mrf.mxu0
  %1218 = vdwg.mxu0
  %1219 = vmatprep.subr.bf16.mxu0 0
  %1220 = vmatpush1.bf16.msra.mxu0 0
  %1221 = vmatprep.subr.bf16.mxu0 0
  %1222 = vmatpush1.bf16.msra.mxu0 0
  %1223 = vmatprep.subr.bf16.mxu0 0
  %1224 = vmatpush1.bf16.msra.mxu0 0
  %1225 = vmatprep.subr.bf16.mxu0 0
  %1226 = vmatpush1.bf16.msra.mxu0 0
  %1227 = vmatprep.subr.bf16.mxu0 0
  %1228 = vmatpush1.bf16.msra.mxu0 0
  %1229 = vmatprep.subr.bf16.mxu0 0
  %1230 = vmatpush1.bf16.msra.mxu0 0
  %1231 = vmatprep.subr.bf16.mxu0 %v786
  %1232 = vmatpush1.bf16.msra.mxu0 %v783
  %1233 = vmatprep.subr.bf16.mxu0 %v555
  %1234 = vmatpush1.bf16.msra.mxu0 %v554
  %1235 = vmatprep.subr.bf16.mxu0 0
  %1236 = vmatpush2.bf16.msra.mxu0 0
  %1237 = vmatprep.subr.bf16.mxu0 0
  %1238 = vmatpush2.bf16.msra.mxu0 0
  %1239 = vmatprep.subr.bf16.mxu0 0
  %1240 = vmatpush2.bf16.msra.mxu0 0
  %1241 = vmatprep.subr.bf16.mxu0 0
  %1242 = vmatpush2.bf16.msra.mxu0 0
  %1243 = vmatprep.subr.bf16.mxu0 0
  %1244 = vmatpush2.bf16.msra.mxu0 0
  %1245 = vmatprep.subr.bf16.mxu0 0
  %1246 = vmatpush2.bf16.msra.mxu0 0
  %1247 = vmatprep.subr.bf16.mxu0 0
  %1248 = vmatpush2.bf16.msra.mxu0 0
  %1249 = vmatprep.subr.bf16.mxu0 0
  %1250 = vmatpush2.bf16.msra.mxu0 0
  %1251 = vmatprep.mubr.bf16.mxu0 0
  %1252 = vmatmul.mubr.bf16.gmra.mxu0 %v734
  %v1253 = vpop.f32.mrf.mxu0
  %v1254 = vadd.f32 %v154, %v1253
  %v1255 = vpop.f32.mrf.mxu0
  %v1256 = vadd.f32 %v154, %v1255
  %v1257 = vpop.f32.mrf.mxu0
  %v1258 = vpop.f32.mrf.mxu0
  %1259 = vdwg.mxu0
  %1260 = vmatprep.subr.bf16.mxu0 0
  %1261 = vmatpush1.bf16.msra.mxu0 0
  %1262 = vmatprep.subr.bf16.mxu0 0
  %1263 = vmatpush1.bf16.msra.mxu0 0
  %1264 = vmatprep.subr.bf16.mxu0 0
  %1265 = vmatpush1.bf16.msra.mxu0 0
  %1266 = vmatprep.subr.bf16.mxu0 0
  %1267 = vmatpush1.bf16.msra.mxu0 0
  %1268 = vmatprep.subr.bf16.mxu0 0
  %1269 = vmatpush1.bf16.msra.mxu0 0
  %1270 = vmatprep.subr.bf16.mxu0 0
  %1271 = vmatpush1.bf16.msra.mxu0 0
  %1272 = vmatprep.subr.bf16.mxu0 %v792
  %1273 = vmatpush1.bf16.msra.mxu0 %v789
  %1274 = vmatprep.subr.bf16.mxu0 %v557
  %1275 = vmatpush1.bf16.msra.mxu0 %v556
  %1276 = vmatprep.subr.bf16.mxu0 0
  %1277 = vmatpush2.bf16.msra.mxu0 0
  %1278 = vmatprep.subr.bf16.mxu0 0
  %1279 = vmatpush2.bf16.msra.mxu0 0
  %1280 = vmatprep.subr.bf16.mxu0 0
  %1281 = vmatpush2.bf16.msra.mxu0 0
  %1282 = vmatprep.subr.bf16.mxu0 0
  %1283 = vmatpush2.bf16.msra.mxu0 0
  %1284 = vmatprep.subr.bf16.mxu0 0
  %1285 = vmatpush2.bf16.msra.mxu0 0
  %1286 = vmatprep.subr.bf16.mxu0 0
  %1287 = vmatpush2.bf16.msra.mxu0 0
  %1288 = vmatprep.subr.bf16.mxu0 0
  %1289 = vmatpush2.bf16.msra.mxu0 0
  %1290 = vmatprep.subr.bf16.mxu0 0
  %1291 = vmatpush2.bf16.msra.mxu0 0
  %1292 = vmatprep.mubr.bf16.mxu0 0
  %1293 = vmatmul.mubr.bf16.gmra.mxu0 %v734
  %v1294 = vpop.f32.mrf.mxu0
  %v1295 = vadd.f32 %v154, %v1294
  %v1296 = vpop.f32.mrf.mxu0
  %v1297 = vadd.f32 %v154, %v1296
  %v1298 = vpop.f32.mrf.mxu0
  %v1299 = vpop.f32.mrf.mxu0
  %1300 = vdwg.mxu0
  %1301 = vmatprep.subr.bf16.mxu0 0
  %1302 = vmatpush1.bf16.msra.mxu0 0
  %1303 = vmatprep.subr.bf16.mxu0 0
  %1304 = vmatpush1.bf16.msra.mxu0 0
  %1305 = vmatprep.subr.bf16.mxu0 0
  %1306 = vmatpush1.bf16.msra.mxu0 0
  %1307 = vmatprep.subr.bf16.mxu0 0
  %1308 = vmatpush1.bf16.msra.mxu0 0
  %1309 = vmatprep.subr.bf16.mxu0 0
  %1310 = vmatpush1.bf16.msra.mxu0 0
  %1311 = vmatprep.subr.bf16.mxu0 0
  %1312 = vmatpush1.bf16.msra.mxu0 0
  %1313 = vmatprep.subr.bf16.mxu0 %v798
  %1314 = vmatpush1.bf16.msra.mxu0 %v795
  %1315 = vmatprep.subr.bf16.mxu0 %v559
  %1316 = vmatpush1.bf16.msra.mxu0 %v558
  %1317 = vmatprep.subr.bf16.mxu0 0
  %1318 = vmatpush2.bf16.msra.mxu0 0
  %1319 = vmatprep.subr.bf16.mxu0 0
  %1320 = vmatpush2.bf16.msra.mxu0 0
  %1321 = vmatprep.subr.bf16.mxu0 0
  %1322 = vmatpush2.bf16.msra.mxu0 0
  %1323 = vmatprep.subr.bf16.mxu0 0
  %1324 = vmatpush2.bf16.msra.mxu0 0
  %1325 = vmatprep.subr.bf16.mxu0 0
  %1326 = vmatpush2.bf16.msra.mxu0 0
  %1327 = vmatprep.subr.bf16.mxu0 0
  %1328 = vmatpush2.bf16.msra.mxu0 0
  %1329 = vmatprep.subr.bf16.mxu0 0
  %1330 = vmatpush2.bf16.msra.mxu0 0
  %1331 = vmatprep.subr.bf16.mxu0 0
  %1332 = vmatpush2.bf16.msra.mxu0 0
  %1333 = vmatprep.mubr.bf16.mxu0 0
  %1334 = vmatmul.mubr.bf16.gmra.mxu0 %v734
  %v1335 = vpop.f32.mrf.mxu0
  %v1336 = vadd.f32 %v154, %v1335
  %v1337 = vpop.f32.mrf.mxu0
  %v1338 = vadd.f32 %v154, %v1337
  %v1339 = vpop.f32.mrf.mxu0
  %v1340 = vpop.f32.mrf.mxu0
  %1341 = vdwg.mxu0
  %1342 = vmatprep.subr.bf16.mxu0 0
  %1343 = vmatpush1.bf16.msra.mxu0 0
  %1344 = vmatprep.subr.bf16.mxu0 0
  %1345 = vmatpush1.bf16.msra.mxu0 0
  %1346 = vmatprep.subr.bf16.mxu0 0
  %1347 = vmatpush1.bf16.msra.mxu0 0
  %1348 = vmatprep.subr.bf16.mxu0 0
  %1349 = vmatpush1.bf16.msra.mxu0 0
  %1350 = vmatprep.subr.bf16.mxu0 0
  %1351 = vmatpush1.bf16.msra.mxu0 0
  %1352 = vmatprep.subr.bf16.mxu0 0
  %1353 = vmatpush1.bf16.msra.mxu0 0
  %1354 = vmatprep.subr.bf16.mxu0 %v804
  %1355 = vmatpush1.bf16.msra.mxu0 %v801
  %1356 = vmatprep.subr.bf16.mxu0 %v561
  %1357 = vmatpush1.bf16.msra.mxu0 %v560
  %1358 = vmatprep.subr.bf16.mxu0 0
  %1359 = vmatpush2.bf16.msra.mxu0 0
  %1360 = vmatprep.subr.bf16.mxu0 0
  %1361 = vmatpush2.bf16.msra.mxu0 0
  %1362 = vmatprep.subr.bf16.mxu0 0
  %1363 = vmatpush2.bf16.msra.mxu0 0
  %1364 = vmatprep.subr.bf16.mxu0 0
  %1365 = vmatpush2.bf16.msra.mxu0 0
  %1366 = vmatprep.subr.bf16.mxu0 0
  %1367 = vmatpush2.bf16.msra.mxu0 0
  %1368 = vmatprep.subr.bf16.mxu0 0
  %1369 = vmatpush2.bf16.msra.mxu0 0
  %1370 = vmatprep.subr.bf16.mxu0 0
  %1371 = vmatpush2.bf16.msra.mxu0 0
  %1372 = vmatprep.subr.bf16.mxu0 0
  %1373 = vmatpush2.bf16.msra.mxu0 0
  %1374 = vmatprep.mubr.bf16.mxu0 0
  %1375 = vmatmul.mubr.bf16.gmra.mxu0 %v734
  %v1376 = vpop.f32.mrf.mxu0
  %v1377 = vadd.f32 %v154, %v1376
  %v1378 = vpop.f32.mrf.mxu0
  %v1379 = vadd.f32 %v154, %v1378
  %v1380 = vpop.f32.mrf.mxu0
  %v1381 = vpop.f32.mrf.mxu0
  %1382 = vdwg.mxu0
  %1383 = vmatprep.subr.bf16.mxu0 0
  %1384 = vmatpush1.bf16.msra.mxu0 0
  %1385 = vmatprep.subr.bf16.mxu0 0
  %1386 = vmatpush1.bf16.msra.mxu0 0
  %1387 = vmatprep.subr.bf16.mxu0 0
  %1388 = vmatpush1.bf16.msra.mxu0 0
  %1389 = vmatprep.subr.bf16.mxu0 0
  %1390 = vmatpush1.bf16.msra.mxu0 0
  %1391 = vmatprep.subr.bf16.mxu0 0
  %1392 = vmatpush1.bf16.msra.mxu0 0
  %1393 = vmatprep.subr.bf16.mxu0 0
  %1394 = vmatpush1.bf16.msra.mxu0 0
  %1395 = vmatprep.subr.bf16.mxu0 %v810
  %1396 = vmatpush1.bf16.msra.mxu0 %v807
  %1397 = vmatprep.subr.bf16.mxu0 %v563
  %1398 = vmatpush1.bf16.msra.mxu0 %v562
  %1399 = vmatprep.subr.bf16.mxu0 0
  %1400 = vmatpush2.bf16.msra.mxu0 0
  %1401 = vmatprep.subr.bf16.mxu0 0
  %1402 = vmatpush2.bf16.msra.mxu0 0
  %1403 = vmatprep.subr.bf16.mxu0 0
  %1404 = vmatpush2.bf16.msra.mxu0 0
  %1405 = vmatprep.subr.bf16.mxu0 0
  %1406 = vmatpush2.bf16.msra.mxu0 0
  %1407 = vmatprep.subr.bf16.mxu0 0
  %1408 = vmatpush2.bf16.msra.mxu0 0
  %1409 = vmatprep.subr.bf16.mxu0 0
  %1410 = vmatpush2.bf16.msra.mxu0 0
  %1411 = vmatprep.subr.bf16.mxu0 0
  %1412 = vmatpush2.bf16.msra.mxu0 0
  %1413 = vmatprep.subr.bf16.mxu0 0
  %1414 = vmatpush2.bf16.msra.mxu0 0
  %1415 = vmatprep.mubr.bf16.mxu0 0
  %1416 = vmatmul.mubr.bf16.gmra.mxu0 %v734
  %v1417 = vpop.f32.mrf.mxu0
  %v1418 = vadd.f32 %v154, %v1417
  %v1419 = vpop.f32.mrf.mxu0
  %v1420 = vadd.f32 %v154, %v1419
  %v1421 = vpop.f32.mrf.mxu0
  %v1422 = vpop.f32.mrf.mxu0
  %1423 = vdwg.mxu0
  %1424 = vmatprep.subr.bf16.mxu0 0
  %1425 = vmatpush1.bf16.msra.mxu0 0
  %1426 = vmatprep.subr.bf16.mxu0 0
  %1427 = vmatpush1.bf16.msra.mxu0 0
  %1428 = vmatprep.subr.bf16.mxu0 0
  %1429 = vmatpush1.bf16.msra.mxu0 0
  %1430 = vmatprep.subr.bf16.mxu0 0
  %1431 = vmatpush1.bf16.msra.mxu0 0
  %1432 = vmatprep.subr.bf16.mxu0 0
  %1433 = vmatpush1.bf16.msra.mxu0 0
  %1434 = vmatprep.subr.bf16.mxu0 0
  %1435 = vmatpush1.bf16.msra.mxu0 0
  %1436 = vmatprep.subr.bf16.mxu0 %v816
  %1437 = vmatpush1.bf16.msra.mxu0 %v813
  %1438 = vmatprep.subr.bf16.mxu0 %v565
  %1439 = vmatpush1.bf16.msra.mxu0 %v564
  %1440 = vmatprep.subr.bf16.mxu0 0
  %1441 = vmatpush2.bf16.msra.mxu0 0
  %1442 = vmatprep.subr.bf16.mxu0 0
  %1443 = vmatpush2.bf16.msra.mxu0 0
  %1444 = vmatprep.subr.bf16.mxu0 0
  %1445 = vmatpush2.bf16.msra.mxu0 0
  %1446 = vmatprep.subr.bf16.mxu0 0
  %1447 = vmatpush2.bf16.msra.mxu0 0
  %1448 = vmatprep.subr.bf16.mxu0 0
  %1449 = vmatpush2.bf16.msra.mxu0 0
  %1450 = vmatprep.subr.bf16.mxu0 0
  %1451 = vmatpush2.bf16.msra.mxu0 0
  %1452 = vmatprep.subr.bf16.mxu0 0
  %1453 = vmatpush2.bf16.msra.mxu0 0
  %1454 = vmatprep.subr.bf16.mxu0 0
  %1455 = vmatpush2.bf16.msra.mxu0 0
  %1456 = vmatprep.mubr.bf16.mxu0 0
  %1457 = vmatmul.mubr.bf16.gmra.mxu0 %v734
  %v1458 = vpop.f32.mrf.mxu0
  %v1459 = vadd.f32 %v154, %v1458
  %v1460 = vpop.f32.mrf.mxu0
  %v1461 = vadd.f32 %v154, %v1460
  %v1462 = vpop.f32.mrf.mxu0
  %v1463 = vpop.f32.mrf.mxu0
  %1464 = vdwg.mxu0
  %1465 = vmatprep.subr.bf16.mxu0 0
  %1466 = vmatpush1.bf16.msra.mxu0 0
  %1467 = vmatprep.subr.bf16.mxu0 0
  %1468 = vmatpush1.bf16.msra.mxu0 0
  %1469 = vmatprep.subr.bf16.mxu0 0
  %1470 = vmatpush1.bf16.msra.mxu0 0
  %1471 = vmatprep.subr.bf16.mxu0 0
  %1472 = vmatpush1.bf16.msra.mxu0 0
  %1473 = vmatprep.subr.bf16.mxu0 0
  %1474 = vmatpush1.bf16.msra.mxu0 0
  %1475 = vmatprep.subr.bf16.mxu0 0
  %1476 = vmatpush1.bf16.msra.mxu0 0
  %1477 = vmatprep.subr.bf16.mxu0 %v822
  %1478 = vmatpush1.bf16.msra.mxu0 %v819
  %1479 = vmatprep.subr.bf16.mxu0 %v567
  %1480 = vmatpush1.bf16.msra.mxu0 %v566
  %1481 = vmatprep.subr.bf16.mxu0 0
  %1482 = vmatpush2.bf16.msra.mxu0 0
  %1483 = vmatprep.subr.bf16.mxu0 0
  %1484 = vmatpush2.bf16.msra.mxu0 0
  %1485 = vmatprep.subr.bf16.mxu0 0
  %1486 = vmatpush2.bf16.msra.mxu0 0
  %1487 = vmatprep.subr.bf16.mxu0 0
  %1488 = vmatpush2.bf16.msra.mxu0 0
  %1489 = vmatprep.subr.bf16.mxu0 0
  %1490 = vmatpush2.bf16.msra.mxu0 0
  %1491 = vmatprep.subr.bf16.mxu0 0
  %1492 = vmatpush2.bf16.msra.mxu0 0
  %1493 = vmatprep.subr.bf16.mxu0 0
  %1494 = vmatpush2.bf16.msra.mxu0 0
  %1495 = vmatprep.subr.bf16.mxu0 0
  %1496 = vmatpush2.bf16.msra.mxu0 0
  %1497 = vmatprep.mubr.bf16.mxu0 0
  %1498 = vmatmul.mubr.bf16.gmra.mxu0 %v734
  %v1499 = vpop.f32.mrf.mxu0
  %v1500 = vadd.f32 %v154, %v1499
  %v1501 = vpop.f32.mrf.mxu0
  %v1502 = vadd.f32 %v154, %v1501
  %v1503 = vpop.f32.mrf.mxu0
  %v1504 = vpop.f32.mrf.mxu0
  %1505 = vdwg.mxu0
  %1506 = vmatprep.subr.bf16.mxu0 0
  %1507 = vmatpush1.bf16.msra.mxu0 0
  %1508 = vmatprep.subr.bf16.mxu0 0
  %1509 = vmatpush1.bf16.msra.mxu0 0
  %1510 = vmatprep.subr.bf16.mxu0 0
  %1511 = vmatpush1.bf16.msra.mxu0 0
  %1512 = vmatprep.subr.bf16.mxu0 0
  %1513 = vmatpush1.bf16.msra.mxu0 0
  %1514 = vmatprep.subr.bf16.mxu0 0
  %1515 = vmatpush1.bf16.msra.mxu0 0
  %1516 = vmatprep.subr.bf16.mxu0 0
  %1517 = vmatpush1.bf16.msra.mxu0 0
  %1518 = vmatprep.subr.bf16.mxu0 %v828
  %1519 = vmatpush1.bf16.msra.mxu0 %v825
  %1520 = vmatprep.subr.bf16.mxu0 %v569
  %1521 = vmatpush1.bf16.msra.mxu0 %v568
  %1522 = vmatprep.subr.bf16.mxu0 0
  %1523 = vmatpush2.bf16.msra.mxu0 0
  %1524 = vmatprep.subr.bf16.mxu0 0
  %1525 = vmatpush2.bf16.msra.mxu0 0
  %1526 = vmatprep.subr.bf16.mxu0 0
  %1527 = vmatpush2.bf16.msra.mxu0 0
  %1528 = vmatprep.subr.bf16.mxu0 0
  %1529 = vmatpush2.bf16.msra.mxu0 0
  %1530 = vmatprep.subr.bf16.mxu0 0
  %1531 = vmatpush2.bf16.msra.mxu0 0
  %1532 = vmatprep.subr.bf16.mxu0 0
  %1533 = vmatpush2.bf16.msra.mxu0 0
  %1534 = vmatprep.subr.bf16.mxu0 0
  %1535 = vmatpush2.bf16.msra.mxu0 0
  %1536 = vmatprep.subr.bf16.mxu0 0
  %1537 = vmatpush2.bf16.msra.mxu0 0
  %1538 = vmatprep.mubr.bf16.mxu0 0
  %1539 = vmatmul.mubr.bf16.gmra.mxu0 %v734
  %v1540 = vpop.f32.mrf.mxu0
  %v1541 = vadd.f32 %v154, %v1540
  %v1542 = vpop.f32.mrf.mxu0
  %v1543 = vadd.f32 %v154, %v1542
  %v1544 = vpop.f32.mrf.mxu0
  %v1545 = vpop.f32.mrf.mxu0
  %1546 = vdwg.mxu0
  %1547 = vmatprep.subr.bf16.mxu0 0
  %1548 = vmatpush1.bf16.msra.mxu0 0
  %1549 = vmatprep.subr.bf16.mxu0 0
  %1550 = vmatpush1.bf16.msra.mxu0 0
  %1551 = vmatprep.subr.bf16.mxu0 0
  %1552 = vmatpush1.bf16.msra.mxu0 0
  %1553 = vmatprep.subr.bf16.mxu0 0
  %1554 = vmatpush1.bf16.msra.mxu0 0
  %1555 = vmatprep.subr.bf16.mxu0 0
  %1556 = vmatpush1.bf16.msra.mxu0 0
  %1557 = vmatprep.subr.bf16.mxu0 0
  %1558 = vmatpush1.bf16.msra.mxu0 0
  %1559 = vmatprep.subr.bf16.mxu0 %v834
  %1560 = vmatpush1.bf16.msra.mxu0 %v831
  %1561 = vmatprep.subr.bf16.mxu0 %v571
  %1562 = vmatpush1.bf16.msra.mxu0 %v570
  %1563 = vmatprep.subr.bf16.mxu0 0
  %1564 = vmatpush2.bf16.msra.mxu0 0
  %1565 = vmatprep.subr.bf16.mxu0 0
  %1566 = vmatpush2.bf16.msra.mxu0 0
  %1567 = vmatprep.subr.bf16.mxu0 0
  %1568 = vmatpush2.bf16.msra.mxu0 0
  %1569 = vmatprep.subr.bf16.mxu0 0
  %1570 = vmatpush2.bf16.msra.mxu0 0
  %1571 = vmatprep.subr.bf16.mxu0 0
  %1572 = vmatpush2.bf16.msra.mxu0 0
  %1573 = vmatprep.subr.bf16.mxu0 0
  %1574 = vmatpush2.bf16.msra.mxu0 0
  %1575 = vmatprep.subr.bf16.mxu0 0
  %1576 = vmatpush2.bf16.msra.mxu0 0
  %1577 = vmatprep.subr.bf16.mxu0 0
  %1578 = vmatpush2.bf16.msra.mxu0 0
  %1579 = vmatprep.mubr.bf16.mxu0 0
  %1580 = vmatmul.mubr.bf16.gmra.mxu0 %v734
  %v1581 = vpop.f32.mrf.mxu0
  %v1582 = vadd.f32 %v154, %v1581
  %v1583 = vpop.f32.mrf.mxu0
  %v1584 = vadd.f32 %v154, %v1583
  %v1585 = vpop.f32.mrf.mxu0
  %v1586 = vpop.f32.mrf.mxu0
  %1587 = vdwg.mxu0
  %1588 = vmatprep.subr.bf16.mxu0 0
  %1589 = vmatpush1.bf16.msra.mxu0 0
  %1590 = vmatprep.subr.bf16.mxu0 0
  %1591 = vmatpush1.bf16.msra.mxu0 0
  %1592 = vmatprep.subr.bf16.mxu0 0
  %1593 = vmatpush1.bf16.msra.mxu0 0
  %1594 = vmatprep.subr.bf16.mxu0 0
  %1595 = vmatpush1.bf16.msra.mxu0 0
  %1596 = vmatprep.subr.bf16.mxu0 0
  %1597 = vmatpush1.bf16.msra.mxu0 0
  %1598 = vmatprep.subr.bf16.mxu0 0
  %1599 = vmatpush1.bf16.msra.mxu0 0
  %1600 = vmatprep.subr.bf16.mxu0 %v840
  %1601 = vmatpush1.bf16.msra.mxu0 %v837
  %1602 = vmatprep.subr.bf16.mxu0 %v573
  %1603 = vmatpush1.bf16.msra.mxu0 %v572
  %1604 = vmatprep.subr.bf16.mxu0 0
  %1605 = vmatpush2.bf16.msra.mxu0 0
  %1606 = vmatprep.subr.bf16.mxu0 0
  %1607 = vmatpush2.bf16.msra.mxu0 0
  %1608 = vmatprep.subr.bf16.mxu0 0
  %1609 = vmatpush2.bf16.msra.mxu0 0
  %1610 = vmatprep.subr.bf16.mxu0 0
  %1611 = vmatpush2.bf16.msra.mxu0 0
  %1612 = vmatprep.subr.bf16.mxu0 0
  %1613 = vmatpush2.bf16.msra.mxu0 0
  %1614 = vmatprep.subr.bf16.mxu0 0
  %1615 = vmatpush2.bf16.msra.mxu0 0
  %1616 = vmatprep.subr.bf16.mxu0 0
  %1617 = vmatpush2.bf16.msra.mxu0 0
  %1618 = vmatprep.subr.bf16.mxu0 0
  %1619 = vmatpush2.bf16.msra.mxu0 0
  %1620 = vmatprep.mubr.bf16.mxu0 0
  %1621 = vmatmul.mubr.bf16.gmra.mxu0 %v734
  %v1622 = vpop.f32.mrf.mxu0
  %v1623 = vadd.f32 %v154, %v1622
  %v1624 = vpop.f32.mrf.mxu0
  %v1625 = vadd.f32 %v154, %v1624
  %v1626 = vpop.f32.mrf.mxu0
  %v1627 = vpop.f32.mrf.mxu0
  %1628 = vdwg.mxu0
  %1629 = vmatprep.subr.bf16.mxu0 0
  %1630 = vmatpush1.bf16.msra.mxu0 0
  %1631 = vmatprep.subr.bf16.mxu0 0
  %1632 = vmatpush1.bf16.msra.mxu0 0
  %1633 = vmatprep.subr.bf16.mxu0 0
  %1634 = vmatpush1.bf16.msra.mxu0 0
  %1635 = vmatprep.subr.bf16.mxu0 0
  %1636 = vmatpush1.bf16.msra.mxu0 0
  %1637 = vmatprep.subr.bf16.mxu0 0
  %1638 = vmatpush1.bf16.msra.mxu0 0
  %1639 = vmatprep.subr.bf16.mxu0 0
  %1640 = vmatpush1.bf16.msra.mxu0 0
  %1641 = vmatprep.subr.bf16.mxu0 %v846
  %1642 = vmatpush1.bf16.msra.mxu0 %v843
  %1643 = vmatprep.subr.bf16.mxu0 %v575
  %1644 = vmatpush1.bf16.msra.mxu0 %v574
  %1645 = vmatprep.subr.bf16.mxu0 0
  %1646 = vmatpush2.bf16.msra.mxu0 0
  %1647 = vmatprep.subr.bf16.mxu0 0
  %1648 = vmatpush2.bf16.msra.mxu0 0
  %1649 = vmatprep.subr.bf16.mxu0 0
  %1650 = vmatpush2.bf16.msra.mxu0 0
  %1651 = vmatprep.subr.bf16.mxu0 0
  %1652 = vmatpush2.bf16.msra.mxu0 0
  %1653 = vmatprep.subr.bf16.mxu0 0
  %1654 = vmatpush2.bf16.msra.mxu0 0
  %1655 = vmatprep.subr.bf16.mxu0 0
  %1656 = vmatpush2.bf16.msra.mxu0 0
  %1657 = vmatprep.subr.bf16.mxu0 0
  %1658 = vmatpush2.bf16.msra.mxu0 0
  %1659 = vmatprep.subr.bf16.mxu0 0
  %1660 = vmatpush2.bf16.msra.mxu0 0
  %1661 = vmatprep.mubr.bf16.mxu0 0
  %1662 = vmatmul.mubr.bf16.gmra.mxu0 %v734
  %v1663 = vpop.f32.mrf.mxu0
  %v1664 = vadd.f32 %v154, %v1663
  %v1665 = vpop.f32.mrf.mxu0
  %v1666 = vadd.f32 %v154, %v1665
  %v1667 = vpop.f32.mrf.mxu0
  %v1668 = vpop.f32.mrf.mxu0
  %1669 = vdwg.mxu0
  %1670 = vmatprep.subr.bf16.mxu0 0
  %1671 = vmatpush1.bf16.msra.mxu0 0
  %1672 = vmatprep.subr.bf16.mxu0 0
  %1673 = vmatpush1.bf16.msra.mxu0 0
  %1674 = vmatprep.subr.bf16.mxu0 0
  %1675 = vmatpush1.bf16.msra.mxu0 0
  %1676 = vmatprep.subr.bf16.mxu0 0
  %1677 = vmatpush1.bf16.msra.mxu0 0
  %1678 = vmatprep.subr.bf16.mxu0 0
  %1679 = vmatpush1.bf16.msra.mxu0 0
  %1680 = vmatprep.subr.bf16.mxu0 0
  %1681 = vmatpush1.bf16.msra.mxu0 0
  %1682 = vmatprep.subr.bf16.mxu0 %v852
  %1683 = vmatpush1.bf16.msra.mxu0 %v849
  %1684 = vmatprep.subr.bf16.mxu0 %v577
  %1685 = vmatpush1.bf16.msra.mxu0 %v576
  %1686 = vmatprep.subr.bf16.mxu0 0
  %1687 = vmatpush2.bf16.msra.mxu0 0
  %1688 = vmatprep.subr.bf16.mxu0 0
  %1689 = vmatpush2.bf16.msra.mxu0 0
  %1690 = vmatprep.subr.bf16.mxu0 0
  %1691 = vmatpush2.bf16.msra.mxu0 0
  %1692 = vmatprep.subr.bf16.mxu0 0
  %1693 = vmatpush2.bf16.msra.mxu0 0
  %1694 = vmatprep.subr.bf16.mxu0 0
  %1695 = vmatpush2.bf16.msra.mxu0 0
  %1696 = vmatprep.subr.bf16.mxu0 0
  %1697 = vmatpush2.bf16.msra.mxu0 0
  %1698 = vmatprep.subr.bf16.mxu0 0
  %1699 = vmatpush2.bf16.msra.mxu0 0
  %1700 = vmatprep.subr.bf16.mxu0 0
  %1701 = vmatpush2.bf16.msra.mxu0 0
  %1702 = vmatprep.mubr.bf16.mxu0 0
  %1703 = vmatmul.mubr.bf16.gmra.mxu0 %v734
  %v1704 = vpop.f32.mrf.mxu0
  %v1705 = vadd.f32 %v154, %v1704
  %v1706 = vpop.f32.mrf.mxu0
  %v1707 = vadd.f32 %v154, %v1706
  %v1708 = vpop.f32.mrf.mxu0
  %v1709 = vpop.f32.mrf.mxu0
  %1710 = vdwg.mxu0
  %1711 = vmatprep.subr.bf16.mxu0 0
  %1712 = vmatpush1.bf16.msra.mxu0 0
  %1713 = vmatprep.subr.bf16.mxu0 0
  %1714 = vmatpush1.bf16.msra.mxu0 0
  %1715 = vmatprep.subr.bf16.mxu0 0
  %1716 = vmatpush1.bf16.msra.mxu0 0
  %1717 = vmatprep.subr.bf16.mxu0 0
  %1718 = vmatpush1.bf16.msra.mxu0 0
  %1719 = vmatprep.subr.bf16.mxu0 0
  %1720 = vmatpush1.bf16.msra.mxu0 0
  %1721 = vmatprep.subr.bf16.mxu0 0
  %1722 = vmatpush1.bf16.msra.mxu0 0
  %1723 = vmatprep.subr.bf16.mxu0 %v858
  %1724 = vmatpush1.bf16.msra.mxu0 %v855
  %1725 = vmatprep.subr.bf16.mxu0 %v579
  %1726 = vmatpush1.bf16.msra.mxu0 %v578
  %1727 = vmatprep.subr.bf16.mxu0 0
  %1728 = vmatpush2.bf16.msra.mxu0 0
  %1729 = vmatprep.subr.bf16.mxu0 0
  %1730 = vmatpush2.bf16.msra.mxu0 0
  %1731 = vmatprep.subr.bf16.mxu0 0
  %1732 = vmatpush2.bf16.msra.mxu0 0
  %1733 = vmatprep.subr.bf16.mxu0 0
  %1734 = vmatpush2.bf16.msra.mxu0 0
  %1735 = vmatprep.subr.bf16.mxu0 0
  %1736 = vmatpush2.bf16.msra.mxu0 0
  %1737 = vmatprep.subr.bf16.mxu0 0
  %1738 = vmatpush2.bf16.msra.mxu0 0
  %1739 = vmatprep.subr.bf16.mxu0 0
  %1740 = vmatpush2.bf16.msra.mxu0 0
  %1741 = vmatprep.subr.bf16.mxu0 0
  %1742 = vmatpush2.bf16.msra.mxu0 0
  %1743 = vmatprep.mubr.bf16.mxu0 0
  %1744 = vmatmul.mubr.bf16.gmra.mxu0 %v734
  %v1745 = vpop.f32.mrf.mxu0
  %v1746 = vadd.f32 %v154, %v1745
  %v1747 = vpop.f32.mrf.mxu0
  %v1748 = vadd.f32 %v154, %v1747
  %v1749 = vpop.f32.mrf.mxu0
  %v1750 = vpop.f32.mrf.mxu0
  %1751 = vdwg.mxu0
  %1752 = vmatprep.subr.bf16.mxu0 0
  %1753 = vmatpush1.bf16.msra.mxu0 0
  %1754 = vmatprep.subr.bf16.mxu0 0
  %1755 = vmatpush1.bf16.msra.mxu0 0
  %1756 = vmatprep.subr.bf16.mxu0 0
  %1757 = vmatpush1.bf16.msra.mxu0 0
  %1758 = vmatprep.subr.bf16.mxu0 0
  %1759 = vmatpush1.bf16.msra.mxu0 0
  %1760 = vmatprep.subr.bf16.mxu0 0
  %1761 = vmatpush1.bf16.msra.mxu0 0
  %1762 = vmatprep.subr.bf16.mxu0 0
  %1763 = vmatpush1.bf16.msra.mxu0 0
  %1764 = vmatprep.subr.bf16.mxu0 %v864
  %1765 = vmatpush1.bf16.msra.mxu0 %v861
  %1766 = vmatprep.subr.bf16.mxu0 %v581
  %1767 = vmatpush1.bf16.msra.mxu0 %v580
  %1768 = vmatprep.subr.bf16.mxu0 0
  %1769 = vmatpush2.bf16.msra.mxu0 0
  %1770 = vmatprep.subr.bf16.mxu0 0
  %1771 = vmatpush2.bf16.msra.mxu0 0
  %1772 = vmatprep.subr.bf16.mxu0 0
  %1773 = vmatpush2.bf16.msra.mxu0 0
  %1774 = vmatprep.subr.bf16.mxu0 0
  %1775 = vmatpush2.bf16.msra.mxu0 0
  %1776 = vmatprep.subr.bf16.mxu0 0
  %1777 = vmatpush2.bf16.msra.mxu0 0
  %1778 = vmatprep.subr.bf16.mxu0 0
  %1779 = vmatpush2.bf16.msra.mxu0 0
  %1780 = vmatprep.subr.bf16.mxu0 0
  %1781 = vmatpush2.bf16.msra.mxu0 0
  %1782 = vmatprep.subr.bf16.mxu0 0
  %1783 = vmatpush2.bf16.msra.mxu0 0
  %1784 = vmatprep.mubr.bf16.mxu0 0
  %1785 = vmatmul.mubr.bf16.gmra.mxu0 %v734
  %v1786 = vpop.f32.mrf.mxu0
  %v1787 = vadd.f32 %v154, %v1786
  %v1788 = vpop.f32.mrf.mxu0
  %v1789 = vadd.f32 %v154, %v1788
  %v1790 = vpop.f32.mrf.mxu0
  %v1791 = vpop.f32.mrf.mxu0
  %1792 = vdwg.mxu0
  %1793 = vmatprep.subr.bf16.mxu0 0
  %1794 = vmatpush1.bf16.msra.mxu0 0
  %1795 = vmatprep.subr.bf16.mxu0 0
  %1796 = vmatpush1.bf16.msra.mxu0 0
  %1797 = vmatprep.subr.bf16.mxu0 0
  %1798 = vmatpush1.bf16.msra.mxu0 0
  %1799 = vmatprep.subr.bf16.mxu0 0
  %1800 = vmatpush1.bf16.msra.mxu0 0
  %1801 = vmatprep.subr.bf16.mxu0 0
  %1802 = vmatpush1.bf16.msra.mxu0 0
  %1803 = vmatprep.subr.bf16.mxu0 0
  %1804 = vmatpush1.bf16.msra.mxu0 0
  %1805 = vmatprep.subr.bf16.mxu0 %v870
  %1806 = vmatpush1.bf16.msra.mxu0 %v867
  %1807 = vmatprep.subr.bf16.mxu0 %v583
  %1808 = vmatpush1.bf16.msra.mxu0 %v582
  %1809 = vmatprep.subr.bf16.mxu0 0
  %1810 = vmatpush2.bf16.msra.mxu0 0
  %1811 = vmatprep.subr.bf16.mxu0 0
  %1812 = vmatpush2.bf16.msra.mxu0 0
  %1813 = vmatprep.subr.bf16.mxu0 0
  %1814 = vmatpush2.bf16.msra.mxu0 0
  %1815 = vmatprep.subr.bf16.mxu0 0
  %1816 = vmatpush2.bf16.msra.mxu0 0
  %1817 = vmatprep.subr.bf16.mxu0 0
  %1818 = vmatpush2.bf16.msra.mxu0 0
  %1819 = vmatprep.subr.bf16.mxu0 0
  %1820 = vmatpush2.bf16.msra.mxu0 0
  %1821 = vmatprep.subr.bf16.mxu0 0
  %1822 = vmatpush2.bf16.msra.mxu0 0
  %1823 = vmatprep.subr.bf16.mxu0 0
  %1824 = vmatpush2.bf16.msra.mxu0 0
  %1825 = vmatprep.mubr.bf16.mxu0 0
  %1826 = vmatmul.mubr.bf16.gmra.mxu0 %v734
  %v1827 = vpop.f32.mrf.mxu0
  %v1828 = vadd.f32 %v154, %v1827
  %v1829 = vpop.f32.mrf.mxu0
  %v1830 = vadd.f32 %v154, %v1829
  %v1831 = vpop.f32.mrf.mxu0
  %v1832 = vpop.f32.mrf.mxu0
  %1833 = vdwg.mxu0
  %1834 = vmatprep.subr.bf16.mxu0 0
  %1835 = vmatpush1.bf16.msra.mxu0 0
  %1836 = vmatprep.subr.bf16.mxu0 0
  %1837 = vmatpush1.bf16.msra.mxu0 0
  %1838 = vmatprep.subr.bf16.mxu0 0
  %1839 = vmatpush1.bf16.msra.mxu0 0
  %1840 = vmatprep.subr.bf16.mxu0 0
  %1841 = vmatpush1.bf16.msra.mxu0 0
  %1842 = vmatprep.subr.bf16.mxu0 0
  %1843 = vmatpush1.bf16.msra.mxu0 0
  %1844 = vmatprep.subr.bf16.mxu0 0
  %1845 = vmatpush1.bf16.msra.mxu0 0
  %1846 = vmatprep.subr.bf16.mxu0 %v876
  %1847 = vmatpush1.bf16.msra.mxu0 %v873
  %1848 = vmatprep.subr.bf16.mxu0 %v585
  %1849 = vmatpush1.bf16.msra.mxu0 %v584
  %1850 = vmatprep.subr.bf16.mxu0 0
  %1851 = vmatpush2.bf16.msra.mxu0 0
  %1852 = vmatprep.subr.bf16.mxu0 0
  %1853 = vmatpush2.bf16.msra.mxu0 0
  %1854 = vmatprep.subr.bf16.mxu0 0
  %1855 = vmatpush2.bf16.msra.mxu0 0
  %1856 = vmatprep.subr.bf16.mxu0 0
  %1857 = vmatpush2.bf16.msra.mxu0 0
  %1858 = vmatprep.subr.bf16.mxu0 0
  %1859 = vmatpush2.bf16.msra.mxu0 0
  %1860 = vmatprep.subr.bf16.mxu0 0
  %1861 = vmatpush2.bf16.msra.mxu0 0
  %1862 = vmatprep.subr.bf16.mxu0 0
  %1863 = vmatpush2.bf16.msra.mxu0 0
  %1864 = vmatprep.subr.bf16.mxu0 0
  %1865 = vmatpush2.bf16.msra.mxu0 0
  %1866 = vmatprep.mubr.bf16.mxu0 0
  %1867 = vmatmul.mubr.bf16.gmra.mxu0 %v734
  %v1868 = vpop.f32.mrf.mxu0
  %v1869 = vadd.f32 %v154, %v1868
  %v1870 = vpop.f32.mrf.mxu0
  %v1871 = vadd.f32 %v154, %v1870
  %v1872 = vpop.f32.mrf.mxu0
  %v1873 = vpop.f32.mrf.mxu0
  %1874 = vdwg.mxu0
  %1875 = vmatprep.subr.bf16.mxu0 0
  %1876 = vmatpush1.bf16.msra.mxu0 0
  %1877 = vmatprep.subr.bf16.mxu0 0
  %1878 = vmatpush1.bf16.msra.mxu0 0
  %1879 = vmatprep.subr.bf16.mxu0 0
  %1880 = vmatpush1.bf16.msra.mxu0 0
  %1881 = vmatprep.subr.bf16.mxu0 0
  %1882 = vmatpush1.bf16.msra.mxu0 0
  %1883 = vmatprep.subr.bf16.mxu0 0
  %1884 = vmatpush1.bf16.msra.mxu0 0
  %1885 = vmatprep.subr.bf16.mxu0 0
  %1886 = vmatpush1.bf16.msra.mxu0 0
  %1887 = vmatprep.subr.bf16.mxu0 %v882
  %1888 = vmatpush1.bf16.msra.mxu0 %v879
  %1889 = vmatprep.subr.bf16.mxu0 %v587
  %1890 = vmatpush1.bf16.msra.mxu0 %v586
  %1891 = vmatprep.subr.bf16.mxu0 0
  %1892 = vmatpush2.bf16.msra.mxu0 0
  %1893 = vmatprep.subr.bf16.mxu0 0
  %1894 = vmatpush2.bf16.msra.mxu0 0
  %1895 = vmatprep.subr.bf16.mxu0 0
  %1896 = vmatpush2.bf16.msra.mxu0 0
  %1897 = vmatprep.subr.bf16.mxu0 0
  %1898 = vmatpush2.bf16.msra.mxu0 0
  %1899 = vmatprep.subr.bf16.mxu0 0
  %1900 = vmatpush2.bf16.msra.mxu0 0
  %1901 = vmatprep.subr.bf16.mxu0 0
  %1902 = vmatpush2.bf16.msra.mxu0 0
  %1903 = vmatprep.subr.bf16.mxu0 0
  %1904 = vmatpush2.bf16.msra.mxu0 0
  %1905 = vmatprep.subr.bf16.mxu0 0
  %1906 = vmatpush2.bf16.msra.mxu0 0
  %1907 = vmatprep.mubr.bf16.mxu0 0
  %1908 = vmatmul.mubr.bf16.gmra.mxu0 %v734
  %v1909 = vpop.f32.mrf.mxu0
  %v1910 = vadd.f32 %v154, %v1909
  %v1911 = vpop.f32.mrf.mxu0
  %v1912 = vadd.f32 %v154, %v1911
  %v1913 = vpop.f32.mrf.mxu0
  %v1914 = vpop.f32.mrf.mxu0
  %1915 = vdwg.mxu0
  %1916 = vmatprep.subr.bf16.mxu0 0
  %1917 = vmatpush1.bf16.msra.mxu0 0
  %1918 = vmatprep.subr.bf16.mxu0 0
  %1919 = vmatpush1.bf16.msra.mxu0 0
  %1920 = vmatprep.subr.bf16.mxu0 0
  %1921 = vmatpush1.bf16.msra.mxu0 0
  %1922 = vmatprep.subr.bf16.mxu0 0
  %1923 = vmatpush1.bf16.msra.mxu0 0
  %1924 = vmatprep.subr.bf16.mxu0 0
  %1925 = vmatpush1.bf16.msra.mxu0 0
  %1926 = vmatprep.subr.bf16.mxu0 0
  %1927 = vmatpush1.bf16.msra.mxu0 0
  %1928 = vmatprep.subr.bf16.mxu0 %v888
  %1929 = vmatpush1.bf16.msra.mxu0 %v885
  %1930 = vmatprep.subr.bf16.mxu0 %v589
  %1931 = vmatpush1.bf16.msra.mxu0 %v588
  %1932 = vmatprep.subr.bf16.mxu0 0
  %1933 = vmatpush2.bf16.msra.mxu0 0
  %1934 = vmatprep.subr.bf16.mxu0 0
  %1935 = vmatpush2.bf16.msra.mxu0 0
  %1936 = vmatprep.subr.bf16.mxu0 0
  %1937 = vmatpush2.bf16.msra.mxu0 0
  %1938 = vmatprep.subr.bf16.mxu0 0
  %1939 = vmatpush2.bf16.msra.mxu0 0
  %1940 = vmatprep.subr.bf16.mxu0 0
  %1941 = vmatpush2.bf16.msra.mxu0 0
  %1942 = vmatprep.subr.bf16.mxu0 0
  %1943 = vmatpush2.bf16.msra.mxu0 0
  %1944 = vmatprep.subr.bf16.mxu0 0
  %1945 = vmatpush2.bf16.msra.mxu0 0
  %1946 = vmatprep.subr.bf16.mxu0 0
  %1947 = vmatpush2.bf16.msra.mxu0 0
  %1948 = vmatprep.mubr.bf16.mxu0 0
  %1949 = vmatmul.mubr.bf16.gmra.mxu0 %v734
  %v1950 = vpop.f32.mrf.mxu0
  %v1951 = vadd.f32 %v154, %v1950
  %v1952 = vpop.f32.mrf.mxu0
  %v1953 = vadd.f32 %v154, %v1952
  %v1954 = vpop.f32.mrf.mxu0
  %v1955 = vpop.f32.mrf.mxu0
  %1956 = vdwg.mxu0
  %1957 = vmatprep.subr.bf16.mxu0 0
  %1958 = vmatpush1.bf16.msra.mxu0 0
  %1959 = vmatprep.subr.bf16.mxu0 0
  %1960 = vmatpush1.bf16.msra.mxu0 0
  %1961 = vmatprep.subr.bf16.mxu0 0
  %1962 = vmatpush1.bf16.msra.mxu0 0
  %1963 = vmatprep.subr.bf16.mxu0 0
  %1964 = vmatpush1.bf16.msra.mxu0 0
  %1965 = vmatprep.subr.bf16.mxu0 0
  %1966 = vmatpush1.bf16.msra.mxu0 0
  %1967 = vmatprep.subr.bf16.mxu0 0
  %1968 = vmatpush1.bf16.msra.mxu0 0
  %1969 = vmatprep.subr.bf16.mxu0 %v894
  %1970 = vmatpush1.bf16.msra.mxu0 %v891
  %1971 = vmatprep.subr.bf16.mxu0 %v591
  %1972 = vmatpush1.bf16.msra.mxu0 %v590
  %1973 = vmatprep.subr.bf16.mxu0 0
  %1974 = vmatpush2.bf16.msra.mxu0 0
  %1975 = vmatprep.subr.bf16.mxu0 0
  %1976 = vmatpush2.bf16.msra.mxu0 0
  %1977 = vmatprep.subr.bf16.mxu0 0
  %1978 = vmatpush2.bf16.msra.mxu0 0
  %1979 = vmatprep.subr.bf16.mxu0 0
  %1980 = vmatpush2.bf16.msra.mxu0 0
  %1981 = vmatprep.subr.bf16.mxu0 0
  %1982 = vmatpush2.bf16.msra.mxu0 0
  %1983 = vmatprep.subr.bf16.mxu0 0
  %1984 = vmatpush2.bf16.msra.mxu0 0
  %1985 = vmatprep.subr.bf16.mxu0 0
  %1986 = vmatpush2.bf16.msra.mxu0 0
  %1987 = vmatprep.subr.bf16.mxu0 0
  %1988 = vmatpush2.bf16.msra.mxu0 0
  %1989 = vmatprep.mubr.bf16.mxu0 0
  %1990 = vmatmul.mubr.bf16.gmra.mxu0 %v734
  %v1991 = vpop.f32.mrf.mxu0
  %v1992 = vadd.f32 %v154, %v1991
  %v1993 = vpop.f32.mrf.mxu0
  %v1994 = vadd.f32 %v154, %v1993
  %v1995 = vpop.f32.mrf.mxu0
  %v1996 = vpop.f32.mrf.mxu0
  %1997 = vdwg.mxu0
  %1998 = vmatprep.subr.bf16.mxu0 0
  %1999 = vmatpush1.bf16.msra.mxu0 0
  %2000 = vmatprep.subr.bf16.mxu0 0
  %2001 = vmatpush1.bf16.msra.mxu0 0
  %2002 = vmatprep.subr.bf16.mxu0 0
  %2003 = vmatpush1.bf16.msra.mxu0 0
  %2004 = vmatprep.subr.bf16.mxu0 0
  %2005 = vmatpush1.bf16.msra.mxu0 0
  %2006 = vmatprep.subr.bf16.mxu0 0
  %2007 = vmatpush1.bf16.msra.mxu0 0
  %2008 = vmatprep.subr.bf16.mxu0 0
  %2009 = vmatpush1.bf16.msra.mxu0 0
  %2010 = vmatprep.subr.bf16.mxu0 %v900
  %2011 = vmatpush1.bf16.msra.mxu0 %v897
  %2012 = vmatprep.subr.bf16.mxu0 %v593
  %2013 = vmatpush1.bf16.msra.mxu0 %v592
  %2014 = vmatprep.subr.bf16.mxu0 0
  %2015 = vmatpush2.bf16.msra.mxu0 0
  %2016 = vmatprep.subr.bf16.mxu0 0
  %2017 = vmatpush2.bf16.msra.mxu0 0
  %2018 = vmatprep.subr.bf16.mxu0 0
  %2019 = vmatpush2.bf16.msra.mxu0 0
  %2020 = vmatprep.subr.bf16.mxu0 0
  %2021 = vmatpush2.bf16.msra.mxu0 0
  %2022 = vmatprep.subr.bf16.mxu0 0
  %2023 = vmatpush2.bf16.msra.mxu0 0
  %2024 = vmatprep.subr.bf16.mxu0 0
  %2025 = vmatpush2.bf16.msra.mxu0 0
  %2026 = vmatprep.subr.bf16.mxu0 0
  %2027 = vmatpush2.bf16.msra.mxu0 0
  %2028 = vmatprep.subr.bf16.mxu0 0
  %2029 = vmatpush2.bf16.msra.mxu0 0
  %2030 = vmatprep.mubr.bf16.mxu0 0
  %2031 = vmatmul.mubr.bf16.gmra.mxu0 %v734
  %v2032 = vpop.f32.mrf.mxu0
  %v2033 = vadd.f32 %v154, %v2032
  %v2034 = vpop.f32.mrf.mxu0
  %v2035 = vadd.f32 %v154, %v2034
  %v2036 = vpop.f32.mrf.mxu0
  %v2037 = vpop.f32.mrf.mxu0
  %2038 = vdwg.mxu0
  %2039 = vmatprep.subr.bf16.mxu0 0
  %2040 = vmatpush1.bf16.msra.mxu0 0
  %2041 = vmatprep.subr.bf16.mxu0 0
  %2042 = vmatpush1.bf16.msra.mxu0 0
  %2043 = vmatprep.subr.bf16.mxu0 0
  %2044 = vmatpush1.bf16.msra.mxu0 0
  %2045 = vmatprep.subr.bf16.mxu0 0
  %2046 = vmatpush1.bf16.msra.mxu0 0
  %2047 = vmatprep.subr.bf16.mxu0 0
  %2048 = vmatpush1.bf16.msra.mxu0 0
  %2049 = vmatprep.subr.bf16.mxu0 0
  %2050 = vmatpush1.bf16.msra.mxu0 0
  %2051 = vmatprep.subr.bf16.mxu0 %v906
  %2052 = vmatpush1.bf16.msra.mxu0 %v903
  %2053 = vmatprep.subr.bf16.mxu0 %v595
  %2054 = vmatpush1.bf16.msra.mxu0 %v594
  %2055 = vmatprep.subr.bf16.mxu0 0
  %2056 = vmatpush2.bf16.msra.mxu0 0
  %2057 = vmatprep.subr.bf16.mxu0 0
  %2058 = vmatpush2.bf16.msra.mxu0 0
  %2059 = vmatprep.subr.bf16.mxu0 0
  %2060 = vmatpush2.bf16.msra.mxu0 0
  %2061 = vmatprep.subr.bf16.mxu0 0
  %2062 = vmatpush2.bf16.msra.mxu0 0
  %2063 = vmatprep.subr.bf16.mxu0 0
  %2064 = vmatpush2.bf16.msra.mxu0 0
  %2065 = vmatprep.subr.bf16.mxu0 0
  %2066 = vmatpush2.bf16.msra.mxu0 0
  %2067 = vmatprep.subr.bf16.mxu0 0
  %2068 = vmatpush2.bf16.msra.mxu0 0
  %2069 = vmatprep.subr.bf16.mxu0 0
  %2070 = vmatpush2.bf16.msra.mxu0 0
  %2071 = vmatprep.mubr.bf16.mxu0 0
  %2072 = vmatmul.mubr.bf16.gmra.mxu0 %v734
  %v2073 = vpop.f32.mrf.mxu0
  %v2074 = vadd.f32 %v154, %v2073
  %v2075 = vpop.f32.mrf.mxu0
  %v2076 = vadd.f32 %v154, %v2075
  %v2077 = vpop.f32.mrf.mxu0
  %v2078 = vpop.f32.mrf.mxu0
  %2079 = vdwg.mxu0
  %2080 = vmatprep.subr.bf16.mxu0 0
  %2081 = vmatpush1.bf16.msra.mxu0 0
  %2082 = vmatprep.subr.bf16.mxu0 0
  %2083 = vmatpush1.bf16.msra.mxu0 0
  %2084 = vmatprep.subr.bf16.mxu0 0
  %2085 = vmatpush1.bf16.msra.mxu0 0
  %2086 = vmatprep.subr.bf16.mxu0 0
  %2087 = vmatpush1.bf16.msra.mxu0 0
  %2088 = vmatprep.subr.bf16.mxu0 0
  %2089 = vmatpush1.bf16.msra.mxu0 0
  %2090 = vmatprep.subr.bf16.mxu0 0
  %2091 = vmatpush1.bf16.msra.mxu0 0
  %2092 = vmatprep.subr.bf16.mxu0 %v912
  %2093 = vmatpush1.bf16.msra.mxu0 %v909
  %2094 = vmatprep.subr.bf16.mxu0 %v597
  %2095 = vmatpush1.bf16.msra.mxu0 %v596
  %2096 = vmatprep.subr.bf16.mxu0 0
  %2097 = vmatpush2.bf16.msra.mxu0 0
  %2098 = vmatprep.subr.bf16.mxu0 0
  %2099 = vmatpush2.bf16.msra.mxu0 0
  %2100 = vmatprep.subr.bf16.mxu0 0
  %2101 = vmatpush2.bf16.msra.mxu0 0
  %2102 = vmatprep.subr.bf16.mxu0 0
  %2103 = vmatpush2.bf16.msra.mxu0 0
  %2104 = vmatprep.subr.bf16.mxu0 0
  %2105 = vmatpush2.bf16.msra.mxu0 0
  %2106 = vmatprep.subr.bf16.mxu0 0
  %2107 = vmatpush2.bf16.msra.mxu0 0
  %2108 = vmatprep.subr.bf16.mxu0 0
  %2109 = vmatpush2.bf16.msra.mxu0 0
  %2110 = vmatprep.subr.bf16.mxu0 0
  %2111 = vmatpush2.bf16.msra.mxu0 0
  %2112 = vmatprep.mubr.bf16.mxu0 0
  %2113 = vmatmul.mubr.bf16.gmra.mxu0 %v734
  %v2114 = vpop.f32.mrf.mxu0
  %v2115 = vadd.f32 %v154, %v2114
  %v2116 = vpop.f32.mrf.mxu0
  %v2117 = vadd.f32 %v154, %v2116
  %v2118 = vpop.f32.mrf.mxu0
  %v2119 = vpop.f32.mrf.mxu0
  %2120 = vdwg.mxu0
  %2121 = vmatprep.subr.bf16.mxu0 0
  %2122 = vmatpush1.bf16.msra.mxu0 0
  %2123 = vmatprep.subr.bf16.mxu0 0
  %2124 = vmatpush1.bf16.msra.mxu0 0
  %2125 = vmatprep.subr.bf16.mxu0 0
  %2126 = vmatpush1.bf16.msra.mxu0 0
  %2127 = vmatprep.subr.bf16.mxu0 0
  %2128 = vmatpush1.bf16.msra.mxu0 0
  %2129 = vmatprep.subr.bf16.mxu0 0
  %2130 = vmatpush1.bf16.msra.mxu0 0
  %2131 = vmatprep.subr.bf16.mxu0 0
  %2132 = vmatpush1.bf16.msra.mxu0 0
  %2133 = vmatprep.subr.bf16.mxu0 %v918
  %2134 = vmatpush1.bf16.msra.mxu0 %v915
  %2135 = vmatprep.subr.bf16.mxu0 %v599
  %2136 = vmatpush1.bf16.msra.mxu0 %v598
  %2137 = vmatprep.subr.bf16.mxu0 0
  %2138 = vmatpush2.bf16.msra.mxu0 0
  %2139 = vmatprep.subr.bf16.mxu0 0
  %2140 = vmatpush2.bf16.msra.mxu0 0
  %2141 = vmatprep.subr.bf16.mxu0 0
  %2142 = vmatpush2.bf16.msra.mxu0 0
  %2143 = vmatprep.subr.bf16.mxu0 0
  %2144 = vmatpush2.bf16.msra.mxu0 0
  %2145 = vmatprep.subr.bf16.mxu0 0
  %2146 = vmatpush2.bf16.msra.mxu0 0
  %2147 = vmatprep.subr.bf16.mxu0 0
  %2148 = vmatpush2.bf16.msra.mxu0 0
  %2149 = vmatprep.subr.bf16.mxu0 0
  %2150 = vmatpush2.bf16.msra.mxu0 0
  %2151 = vmatprep.subr.bf16.mxu0 0
  %2152 = vmatpush2.bf16.msra.mxu0 0
  %2153 = vmatprep.mubr.bf16.mxu0 0
  %2154 = vmatmul.mubr.bf16.gmra.mxu0 %v734
  %v2155 = vpop.f32.mrf.mxu0
  %v2156 = vadd.f32 %v154, %v2155
  %v2157 = vpop.f32.mrf.mxu0
  %v2158 = vadd.f32 %v154, %v2157
  %v2159 = vpop.f32.mrf.mxu0
  %v2160 = vpop.f32.mrf.mxu0
  %2161 = vdwg.mxu0
  %2162 = vmatprep.subr.bf16.mxu0 0
  %2163 = vmatpush1.bf16.msra.mxu0 0
  %2164 = vmatprep.subr.bf16.mxu0 0
  %2165 = vmatpush1.bf16.msra.mxu0 0
  %2166 = vmatprep.subr.bf16.mxu0 0
  %2167 = vmatpush1.bf16.msra.mxu0 0
  %2168 = vmatprep.subr.bf16.mxu0 0
  %2169 = vmatpush1.bf16.msra.mxu0 0
  %2170 = vmatprep.subr.bf16.mxu0 0
  %2171 = vmatpush1.bf16.msra.mxu0 0
  %2172 = vmatprep.subr.bf16.mxu0 0
  %2173 = vmatpush1.bf16.msra.mxu0 0
  %2174 = vmatprep.subr.bf16.mxu0 %v924
  %2175 = vmatpush1.bf16.msra.mxu0 %v921
  %2176 = vmatprep.subr.bf16.mxu0 %v601
  %2177 = vmatpush1.bf16.msra.mxu0 %v600
  %2178 = vmatprep.subr.bf16.mxu0 0
  %2179 = vmatpush2.bf16.msra.mxu0 0
  %2180 = vmatprep.subr.bf16.mxu0 0
  %2181 = vmatpush2.bf16.msra.mxu0 0
  %2182 = vmatprep.subr.bf16.mxu0 0
  %2183 = vmatpush2.bf16.msra.mxu0 0
  %2184 = vmatprep.subr.bf16.mxu0 0
  %2185 = vmatpush2.bf16.msra.mxu0 0
  %2186 = vmatprep.subr.bf16.mxu0 0
  %2187 = vmatpush2.bf16.msra.mxu0 0
  %2188 = vmatprep.subr.bf16.mxu0 0
  %2189 = vmatpush2.bf16.msra.mxu0 0
  %2190 = vmatprep.subr.bf16.mxu0 0
  %2191 = vmatpush2.bf16.msra.mxu0 0
  %2192 = vmatprep.subr.bf16.mxu0 0
  %2193 = vmatpush2.bf16.msra.mxu0 0
  %2194 = vmatprep.mubr.bf16.mxu0 0
  %2195 = vmatmul.mubr.bf16.gmra.mxu0 %v734
  %v2196 = vpop.f32.mrf.mxu0
  %v2197 = vadd.f32 %v154, %v2196
  %v2198 = vpop.f32.mrf.mxu0
  %v2199 = vadd.f32 %v154, %v2198
  %v2200 = vpop.f32.mrf.mxu0
  %v2201 = vpop.f32.mrf.mxu0
  %2202 = vdwg.mxu0
  %2203 = vmatprep.subr.bf16.mxu0 0
  %2204 = vmatpush1.bf16.msra.mxu0 0
  %2205 = vmatprep.subr.bf16.mxu0 0
  %2206 = vmatpush1.bf16.msra.mxu0 0
  %2207 = vmatprep.subr.bf16.mxu0 0
  %2208 = vmatpush1.bf16.msra.mxu0 0
  %2209 = vmatprep.subr.bf16.mxu0 0
  %2210 = vmatpush1.bf16.msra.mxu0 0
  %2211 = vmatprep.subr.bf16.mxu0 0
  %2212 = vmatpush1.bf16.msra.mxu0 0
  %2213 = vmatprep.subr.bf16.mxu0 0
  %2214 = vmatpush1.bf16.msra.mxu0 0
  %2215 = vmatprep.subr.bf16.mxu0 %v930
  %2216 = vmatpush1.bf16.msra.mxu0 %v927
  %2217 = vmatprep.subr.bf16.mxu0 %v603
  %2218 = vmatpush1.bf16.msra.mxu0 %v602
  %2219 = vmatprep.subr.bf16.mxu0 0
  %2220 = vmatpush2.bf16.msra.mxu0 0
  %2221 = vmatprep.subr.bf16.mxu0 0
  %2222 = vmatpush2.bf16.msra.mxu0 0
  %2223 = vmatprep.subr.bf16.mxu0 0
  %2224 = vmatpush2.bf16.msra.mxu0 0
  %2225 = vmatprep.subr.bf16.mxu0 0
  %2226 = vmatpush2.bf16.msra.mxu0 0
  %2227 = vmatprep.subr.bf16.mxu0 0
  %2228 = vmatpush2.bf16.msra.mxu0 0
  %2229 = vmatprep.subr.bf16.mxu0 0
  %2230 = vmatpush2.bf16.msra.mxu0 0
  %2231 = vmatprep.subr.bf16.mxu0 0
  %2232 = vmatpush2.bf16.msra.mxu0 0
  %2233 = vmatprep.subr.bf16.mxu0 0
  %2234 = vmatpush2.bf16.msra.mxu0 0
  %2235 = vmatprep.mubr.bf16.mxu0 0
  %2236 = vmatmul.mubr.bf16.gmra.mxu0 %v734
  %v2237 = vpop.f32.mrf.mxu0
  %v2238 = vadd.f32 %v154, %v2237
  %v2239 = vpop.f32.mrf.mxu0
  %v2240 = vadd.f32 %v154, %v2239
  %v2241 = vpop.f32.mrf.mxu0
  %v2242 = vpop.f32.mrf.mxu0
  %2243 = vdwg.mxu0
  %v2244 = vmax.f32 %v967, 0.0
  %v2245 = vmax.f32 %v969, 0.0
  %v2246 = vmax.f32 %v1008, 0.0
  %v2247 = vmax.f32 %v1010, 0.0
  %v2248 = vmax.f32 %v1049, 0.0
  %v2249 = vmax.f32 %v1051, 0.0
  %v2250 = vmax.f32 %v1090, 0.0
  %v2251 = vmax.f32 %v1092, 0.0
  %v2252 = vmax.f32 %v1131, 0.0
  %v2253 = vmax.f32 %v1133, 0.0
  %v2254 = vmax.f32 %v1172, 0.0
  %v2255 = vmax.f32 %v1174, 0.0
  %v2256 = vmax.f32 %v1213, 0.0
  %v2257 = vmax.f32 %v1215, 0.0
  %v2258 = vmax.f32 %v1254, 0.0
  %v2259 = vmax.f32 %v1256, 0.0
  %v2260 = vmax.f32 %v1295, 0.0
  %v2261 = vmax.f32 %v1297, 0.0
  %v2262 = vmax.f32 %v1336, 0.0
  %v2263 = vmax.f32 %v1338, 0.0
  %v2264 = vmax.f32 %v1377, 0.0
  %v2265 = vmax.f32 %v1379, 0.0
  %v2266 = vmax.f32 %v1418, 0.0
  %v2267 = vmax.f32 %v1420, 0.0
  %v2268 = vmax.f32 %v1459, 0.0
  %v2269 = vmax.f32 %v1461, 0.0
  %v2270 = vmax.f32 %v1500, 0.0
  %v2271 = vmax.f32 %v1502, 0.0
  %v2272 = vmax.f32 %v1541, 0.0
  %v2273 = vmax.f32 %v1543, 0.0
  %v2274 = vmax.f32 %v1582, 0.0
  %v2275 = vmax.f32 %v1584, 0.0
  %v2276 = vmax.f32 %v1623, 0.0
  %v2277 = vmax.f32 %v1625, 0.0
  %v2278 = vmax.f32 %v1664, 0.0
  %v2279 = vmax.f32 %v1666, 0.0
  %v2280 = vmax.f32 %v1705, 0.0
  %v2281 = vmax.f32 %v1707, 0.0
  %v2282 = vmax.f32 %v1746, 0.0
  %v2283 = vmax.f32 %v1748, 0.0
  %v2284 = vmax.f32 %v1787, 0.0
  %v2285 = vmax.f32 %v1789, 0.0
  %v2286 = vmax.f32 %v1828, 0.0
  %v2287 = vmax.f32 %v1830, 0.0
  %v2288 = vmax.f32 %v1869, 0.0
  %v2289 = vmax.f32 %v1871, 0.0
  %v2290 = vmax.f32 %v1910, 0.0
  %v2291 = vmax.f32 %v1912, 0.0
  %v2292 = vmax.f32 %v1951, 0.0
  %v2293 = vmax.f32 %v1953, 0.0
  %v2294 = vmax.f32 %v1992, 0.0
  %v2295 = vmax.f32 %v1994, 0.0
  %v2296 = vmax.f32 %v2033, 0.0
  %v2297 = vmax.f32 %v2035, 0.0
  %v2298 = vmax.f32 %v2074, 0.0
  %v2299 = vmax.f32 %v2076, 0.0
  %v2300 = vmax.f32 %v2115, 0.0
  %v2301 = vmax.f32 %v2117, 0.0
  %v2302 = vmax.f32 %v2156, 0.0
  %v2303 = vmax.f32 %v2158, 0.0
  %v2304 = vmax.f32 %v2197, 0.0
  %v2305 = vmax.f32 %v2199, 0.0
  %v2306 = vmax.f32 %v2238, 0.0
  %v2307 = vmax.f32 %v2240, 0.0
  %v2308 = vadd.f32 %v2244, %v2245
  %v2309 = vadd.f32 %v2308, %v2246
  %v2310 = vadd.f32 %v2309, %v2247
  %v2311 = vadd.f32 %v2310, %v2248
  %v2312 = vadd.f32 %v2311, %v2249
  %v2313 = vadd.f32 %v2312, %v2250
  %v2314 = vadd.f32 %v2313, %v2251
  %v2315 = vadd.f32 %v2314, %v2252
  %v2316 = vadd.f32 %v2315, %v2253
  %v2317 = vadd.f32 %v2316, %v2254
  %v2318 = vadd.f32 %v2317, %v2255
  %v2319 = vadd.f32 %v2318, %v2256
  %v2320 = vadd.f32 %v2319, %v2257
  %v2321 = vadd.f32 %v2320, %v2258
  %v2322 = vadd.f32 %v2321, %v2259
  %v2323 = vadd.f32 %v2322, %v2260
  %v2324 = vadd.f32 %v2323, %v2261
  %v2325 = vadd.f32 %v2324, %v2262
  %v2326 = vadd.f32 %v2325, %v2263
  %v2327 = vadd.f32 %v2326, %v2264
  %v2328 = vadd.f32 %v2327, %v2265
  %v2329 = vadd.f32 %v2328, %v2266
  %v2330 = vadd.f32 %v2329, %v2267
  %v2331 = vadd.f32 %v2330, %v2268
  %v2332 = vadd.f32 %v2331, %v2269
  %v2333 = vadd.f32 %v2332, %v2270
  %v2334 = vadd.f32 %v2333, %v2271
  %v2335 = vadd.f32 %v2334, %v2272
  %v2336 = vadd.f32 %v2335, %v2273
  %v2337 = vadd.f32 %v2336, %v2274
  %v2338 = vadd.f32 %v2337, %v2275
  %v2339 = vadd.f32 %v2338, %v2276
  %v2340 = vadd.f32 %v2339, %v2277
  %v2341 = vadd.f32 %v2340, %v2278
  %v2342 = vadd.f32 %v2341, %v2279
  %v2343 = vadd.f32 %v2342, %v2280
  %v2344 = vadd.f32 %v2343, %v2281
  %v2345 = vadd.f32 %v2344, %v2282
  %v2346 = vadd.f32 %v2345, %v2283
  %v2347 = vadd.f32 %v2346, %v2284
  %v2348 = vadd.f32 %v2347, %v2285
  %v2349 = vadd.f32 %v2348, %v2286
  %v2350 = vadd.f32 %v2349, %v2287
  %v2351 = vadd.f32 %v2350, %v2288
  %v2352 = vadd.f32 %v2351, %v2289
  %v2353 = vadd.f32 %v2352, %v2290
  %v2354 = vadd.f32 %v2353, %v2291
  %v2355 = vadd.f32 %v2354, %v2292
  %v2356 = vadd.f32 %v2355, %v2293
  %v2357 = vadd.f32 %v2356, %v2294
  %v2358 = vadd.f32 %v2357, %v2295
  %v2359 = vadd.f32 %v2358, %v2296
  %v2360 = vadd.f32 %v2359, %v2297
  %v2361 = vadd.f32 %v2360, %v2298
  %v2362 = vadd.f32 %v2361, %v2299
  %v2363 = vadd.f32 %v2362, %v2300
  %v2364 = vadd.f32 %v2363, %v2301
  %v2365 = vadd.f32 %v2364, %v2302
  %v2366 = vadd.f32 %v2365, %v2303
  %v2367 = vadd.f32 %v2366, %v2304
  %v2368 = vadd.f32 %v2367, %v2305
  %v2369 = vadd.f32 %v2368, %v2306
  %v2370 = vadd.f32 %v2369, %v2307
  %2371 = vadd.xlane.f32.xlu0 %v2370
  %v2372 = vpop.xlane.xlu0 %2371
  %v2373 = vmul.f32 %v2372, 0.00012207031
  %v2374 = vsub.f32 %v2244, %v2373
  %v2375 = vsub.f32 %v2245, %v2373
  %v2376 = vsub.f32 %v2246, %v2373
  %v2377 = vsub.f32 %v2247, %v2373
  %v2378 = vsub.f32 %v2248, %v2373
  %v2379 = vsub.f32 %v2249, %v2373
  %v2380 = vsub.f32 %v2250, %v2373
  %v2381 = vsub.f32 %v2251, %v2373
  %v2382 = vsub.f32 %v2252, %v2373
  %v2383 = vsub.f32 %v2253, %v2373
  %v2384 = vsub.f32 %v2254, %v2373
  %v2385 = vsub.f32 %v2255, %v2373
  %v2386 = vsub.f32 %v2256, %v2373
  %v2387 = vsub.f32 %v2257, %v2373
  %v2388 = vsub.f32 %v2258, %v2373
  %v2389 = vsub.f32 %v2259, %v2373
  %v2390 = vsub.f32 %v2260, %v2373
  %v2391 = vsub.f32 %v2261, %v2373
  %v2392 = vsub.f32 %v2262, %v2373
  %v2393 = vsub.f32 %v2263, %v2373
  %v2394 = vsub.f32 %v2264, %v2373
  %v2395 = vsub.f32 %v2265, %v2373
  %v2396 = vsub.f32 %v2266, %v2373
  %v2397 = vsub.f32 %v2267, %v2373
  %v2398 = vsub.f32 %v2268, %v2373
  %v2399 = vsub.f32 %v2269, %v2373
  %v2400 = vsub.f32 %v2270, %v2373
  %v2401 = vsub.f32 %v2271, %v2373
  %v2402 = vsub.f32 %v2272, %v2373
  %v2403 = vsub.f32 %v2273, %v2373
  %v2404 = vsub.f32 %v2274, %v2373
  %v2405 = vsub.f32 %v2275, %v2373
  %v2406 = vsub.f32 %v2276, %v2373
  %v2407 = vsub.f32 %v2277, %v2373
  %v2408 = vsub.f32 %v2278, %v2373
  %v2409 = vsub.f32 %v2279, %v2373
  %v2410 = vsub.f32 %v2280, %v2373
  %v2411 = vsub.f32 %v2281, %v2373
  %v2412 = vsub.f32 %v2282, %v2373
  %v2413 = vsub.f32 %v2283, %v2373
  %v2414 = vsub.f32 %v2284, %v2373
  %v2415 = vsub.f32 %v2285, %v2373
  %v2416 = vsub.f32 %v2286, %v2373
  %v2417 = vsub.f32 %v2287, %v2373
  %v2418 = vsub.f32 %v2288, %v2373
  %v2419 = vsub.f32 %v2289, %v2373
  %v2420 = vsub.f32 %v2290, %v2373
  %v2421 = vsub.f32 %v2291, %v2373
  %v2422 = vsub.f32 %v2292, %v2373
  %v2423 = vsub.f32 %v2293, %v2373
  %v2424 = vsub.f32 %v2294, %v2373
  %v2425 = vsub.f32 %v2295, %v2373
  %v2426 = vsub.f32 %v2296, %v2373
  %v2427 = vsub.f32 %v2297, %v2373
  %v2428 = vsub.f32 %v2298, %v2373
  %v2429 = vsub.f32 %v2299, %v2373
  %v2430 = vsub.f32 %v2300, %v2373
  %v2431 = vsub.f32 %v2301, %v2373
  %v2432 = vsub.f32 %v2302, %v2373
  %v2433 = vsub.f32 %v2303, %v2373
  %v2434 = vsub.f32 %v2304, %v2373
  %v2435 = vsub.f32 %v2305, %v2373
  %v2436 = vsub.f32 %v2306, %v2373
  %v2437 = vsub.f32 %v2307, %v2373
  %v2438 = vmul.f32 %v2374, %v2374
  %v2439 = vmul.f32 %v2375, %v2375
  %v2440 = vmul.f32 %v2376, %v2376
  %v2441 = vmul.f32 %v2377, %v2377
  %v2442 = vmul.f32 %v2378, %v2378
  %v2443 = vmul.f32 %v2379, %v2379
  %v2444 = vmul.f32 %v2380, %v2380
  %v2445 = vmul.f32 %v2381, %v2381
  %v2446 = vmul.f32 %v2382, %v2382
  %v2447 = vmul.f32 %v2383, %v2383
  %v2448 = vmul.f32 %v2384, %v2384
  %v2449 = vmul.f32 %v2385, %v2385
  %v2450 = vmul.f32 %v2386, %v2386
  %v2451 = vmul.f32 %v2387, %v2387
  %v2452 = vmul.f32 %v2388, %v2388
  %v2453 = vmul.f32 %v2389, %v2389
  %v2454 = vmul.f32 %v2390, %v2390
  %v2455 = vmul.f32 %v2391, %v2391
  %v2456 = vmul.f32 %v2392, %v2392
  %v2457 = vmul.f32 %v2393, %v2393
  %v2458 = vmul.f32 %v2394, %v2394
  %v2459 = vmul.f32 %v2395, %v2395
  %v2460 = vmul.f32 %v2396, %v2396
  %v2461 = vmul.f32 %v2397, %v2397
  %v2462 = vmul.f32 %v2398, %v2398
  %v2463 = vmul.f32 %v2399, %v2399
  %v2464 = vmul.f32 %v2400, %v2400
  %v2465 = vmul.f32 %v2401, %v2401
  %v2466 = vmul.f32 %v2402, %v2402
  %v2467 = vmul.f32 %v2403, %v2403
  %v2468 = vmul.f32 %v2404, %v2404
  %v2469 = vmul.f32 %v2405, %v2405
  %v2470 = vmul.f32 %v2406, %v2406
  %v2471 = vmul.f32 %v2407, %v2407
  %v2472 = vmul.f32 %v2408, %v2408
  %v2473 = vmul.f32 %v2409, %v2409
  %v2474 = vmul.f32 %v2410, %v2410
  %v2475 = vmul.f32 %v2411, %v2411
  %v2476 = vmul.f32 %v2412, %v2412
  %v2477 = vmul.f32 %v2413, %v2413
  %v2478 = vmul.f32 %v2414, %v2414
  %v2479 = vmul.f32 %v2415, %v2415
  %v2480 = vmul.f32 %v2416, %v2416
  %v2481 = vmul.f32 %v2417, %v2417
  %v2482 = vmul.f32 %v2418, %v2418
  %v2483 = vmul.f32 %v2419, %v2419
  %v2484 = vmul.f32 %v2420, %v2420
  %v2485 = vmul.f32 %v2421, %v2421
  %v2486 = vmul.f32 %v2422, %v2422
  %v2487 = vmul.f32 %v2423, %v2423
  %v2488 = vmul.f32 %v2424, %v2424
  %v2489 = vmul.f32 %v2425, %v2425
  %v2490 = vmul.f32 %v2426, %v2426
  %v2491 = vmul.f32 %v2427, %v2427
  %v2492 = vmul.f32 %v2428, %v2428
  %v2493 = vmul.f32 %v2429, %v2429
  %v2494 = vmul.f32 %v2430, %v2430
  %v2495 = vmul.f32 %v2431, %v2431
  %v2496 = vmul.f32 %v2432, %v2432
  %v2497 = vmul.f32 %v2433, %v2433
  %v2498 = vmul.f32 %v2434, %v2434
  %v2499 = vmul.f32 %v2435, %v2435
  %v2500 = vmul.f32 %v2436, %v2436
  %v2501 = vmul.f32 %v2437, %v2437
  %v2502 = vadd.f32 %v2438, %v2439
  %v2503 = vadd.f32 %v2502, %v2440
  %v2504 = vadd.f32 %v2503, %v2441
  %v2505 = vadd.f32 %v2504, %v2442
  %v2506 = vadd.f32 %v2505, %v2443
  %v2507 = vadd.f32 %v2506, %v2444
  %v2508 = vadd.f32 %v2507, %v2445
  %v2509 = vadd.f32 %v2508, %v2446
  %v2510 = vadd.f32 %v2509, %v2447
  %v2511 = vadd.f32 %v2510, %v2448
  %v2512 = vadd.f32 %v2511, %v2449
  %v2513 = vadd.f32 %v2512, %v2450
  %v2514 = vadd.f32 %v2513, %v2451
  %v2515 = vadd.f32 %v2514, %v2452
  %v2516 = vadd.f32 %v2515, %v2453
  %v2517 = vadd.f32 %v2516, %v2454
  %v2518 = vadd.f32 %v2517, %v2455
  %v2519 = vadd.f32 %v2518, %v2456
  %v2520 = vadd.f32 %v2519, %v2457
  %v2521 = vadd.f32 %v2520, %v2458
  %v2522 = vadd.f32 %v2521, %v2459
  %v2523 = vadd.f32 %v2522, %v2460
  %v2524 = vadd.f32 %v2523, %v2461
  %v2525 = vadd.f32 %v2524, %v2462
  %v2526 = vadd.f32 %v2525, %v2463
  %v2527 = vadd.f32 %v2526, %v2464
  %v2528 = vadd.f32 %v2527, %v2465
  %v2529 = vadd.f32 %v2528, %v2466
  %v2530 = vadd.f32 %v2529, %v2467
  %v2531 = vadd.f32 %v2530, %v2468
  %v2532 = vadd.f32 %v2531, %v2469
  %v2533 = vadd.f32 %v2532, %v2470
  %v2534 = vadd.f32 %v2533, %v2471
  %v2535 = vadd.f32 %v2534, %v2472
  %v2536 = vadd.f32 %v2535, %v2473
  %v2537 = vadd.f32 %v2536, %v2474
  %v2538 = vadd.f32 %v2537, %v2475
  %v2539 = vadd.f32 %v2538, %v2476
  %v2540 = vadd.f32 %v2539, %v2477
  %v2541 = vadd.f32 %v2540, %v2478
  %v2542 = vadd.f32 %v2541, %v2479
  %v2543 = vadd.f32 %v2542, %v2480
  %v2544 = vadd.f32 %v2543, %v2481
  %v2545 = vadd.f32 %v2544, %v2482
  %v2546 = vadd.f32 %v2545, %v2483
  %v2547 = vadd.f32 %v2546, %v2484
  %v2548 = vadd.f32 %v2547, %v2485
  %v2549 = vadd.f32 %v2548, %v2486
  %v2550 = vadd.f32 %v2549, %v2487
  %v2551 = vadd.f32 %v2550, %v2488
  %v2552 = vadd.f32 %v2551, %v2489
  %v2553 = vadd.f32 %v2552, %v2490
  %v2554 = vadd.f32 %v2553, %v2491
  %v2555 = vadd.f32 %v2554, %v2492
  %v2556 = vadd.f32 %v2555, %v2493
  %v2557 = vadd.f32 %v2556, %v2494
  %v2558 = vadd.f32 %v2557, %v2495
  %v2559 = vadd.f32 %v2558, %v2496
  %v2560 = vadd.f32 %v2559, %v2497
  %v2561 = vadd.f32 %v2560, %v2498
  %v2562 = vadd.f32 %v2561, %v2499
  %v2563 = vadd.f32 %v2562, %v2500
  %v2564 = vadd.f32 %v2563, %v2501
  %2565 = vadd.xlane.f32.xlu0 %v2564
  %v2566 = vpop.xlane.xlu0 %2565
  %v2567 = vmul.f32 %v2566, 0.00012207031
  %v2568 = vadd.f32 %v2567, 1e-05
  %v2569 = vrsqrt.pop %v2568
  %v2570 = vmul.f32 %v2374, %v2569
  %v2571 = vmul.f32 %v2375, %v2569
  %v2572 = vmul.f32 %v2376, %v2569
  %v2573 = vmul.f32 %v2377, %v2569
  %v2574 = vmul.f32 %v2378, %v2569
  %v2575 = vmul.f32 %v2379, %v2569
  %v2576 = vmul.f32 %v2380, %v2569
  %v2577 = vmul.f32 %v2381, %v2569
  %v2578 = vmul.f32 %v2382, %v2569
  %v2579 = vmul.f32 %v2383, %v2569
  %v2580 = vmul.f32 %v2384, %v2569
  %v2581 = vmul.f32 %v2385, %v2569
  %v2582 = vmul.f32 %v2386, %v2569
  %v2583 = vmul.f32 %v2387, %v2569
  %v2584 = vmul.f32 %v2388, %v2569
  %v2585 = vmul.f32 %v2389, %v2569
  %v2586 = vmul.f32 %v2390, %v2569
  %v2587 = vmul.f32 %v2391, %v2569
  %v2588 = vmul.f32 %v2392, %v2569
  %v2589 = vmul.f32 %v2393, %v2569
  %v2590 = vmul.f32 %v2394, %v2569
  %v2591 = vmul.f32 %v2395, %v2569
  %v2592 = vmul.f32 %v2396, %v2569
  %v2593 = vmul.f32 %v2397, %v2569
  %v2594 = vmul.f32 %v2398, %v2569
  %v2595 = vmul.f32 %v2399, %v2569
  %v2596 = vmul.f32 %v2400, %v2569
  %v2597 = vmul.f32 %v2401, %v2569
  %v2598 = vmul.f32 %v2402, %v2569
  %v2599 = vmul.f32 %v2403, %v2569
  %v2600 = vmul.f32 %v2404, %v2569
  %v2601 = vmul.f32 %v2405, %v2569
  %v2602 = vmul.f32 %v2406, %v2569
  %v2603 = vmul.f32 %v2407, %v2569
  %v2604 = vmul.f32 %v2408, %v2569
  %v2605 = vmul.f32 %v2409, %v2569
  %v2606 = vmul.f32 %v2410, %v2569
  %v2607 = vmul.f32 %v2411, %v2569
  %v2608 = vmul.f32 %v2412, %v2569
  %v2609 = vmul.f32 %v2413, %v2569
  %v2610 = vmul.f32 %v2414, %v2569
  %v2611 = vmul.f32 %v2415, %v2569
  %v2612 = vmul.f32 %v2416, %v2569
  %v2613 = vmul.f32 %v2417, %v2569
  %v2614 = vmul.f32 %v2418, %v2569
  %v2615 = vmul.f32 %v2419, %v2569
  %v2616 = vmul.f32 %v2420, %v2569
  %v2617 = vmul.f32 %v2421, %v2569
  %v2618 = vmul.f32 %v2422, %v2569
  %v2619 = vmul.f32 %v2423, %v2569
  %v2620 = vmul.f32 %v2424, %v2569
  %v2621 = vmul.f32 %v2425, %v2569
  %v2622 = vmul.f32 %v2426, %v2569
  %v2623 = vmul.f32 %v2427, %v2569
  %v2624 = vmul.f32 %v2428, %v2569
  %v2625 = vmul.f32 %v2429, %v2569
  %v2626 = vmul.f32 %v2430, %v2569
  %v2627 = vmul.f32 %v2431, %v2569
  %v2628 = vmul.f32 %v2432, %v2569
  %v2629 = vmul.f32 %v2433, %v2569
  %v2630 = vmul.f32 %v2434, %v2569
  %v2631 = vmul.f32 %v2435, %v2569
  %v2632 = vmul.f32 %v2436, %v2569
  %v2633 = vmul.f32 %v2437, %v2569
  %v2634 = vld [vmem:[%s3] sm:$0xff]
  %2636 = vset.pattern.permute.xlu0 0
  %2637 = vperm.xlu0 %2636, %v2634
  %v2638 = vpop.permute.xlu0 %2637
  %v2640 = vmul.f32 %v2570, %v2638
  %v2641 = vmul.f32 %v2571, %v2638
  %v2642 = vmul.f32 %v2572, %v2638
  %v2643 = vmul.f32 %v2573, %v2638
  %v2644 = vmul.f32 %v2574, %v2638
  %v2645 = vmul.f32 %v2575, %v2638
  %v2646 = vmul.f32 %v2576, %v2638
  %v2647 = vmul.f32 %v2577, %v2638
  %v2648 = vmul.f32 %v2578, %v2638
  %v2649 = vmul.f32 %v2579, %v2638
  %v2650 = vmul.f32 %v2580, %v2638
  %v2651 = vmul.f32 %v2581, %v2638
  %v2652 = vmul.f32 %v2582, %v2638
  %v2653 = vmul.f32 %v2583, %v2638
  %v2654 = vmul.f32 %v2584, %v2638
  %v2655 = vmul.f32 %v2585, %v2638
  %v2656 = vmul.f32 %v2586, %v2638
  %v2657 = vmul.f32 %v2587, %v2638
  %v2658 = vmul.f32 %v2588, %v2638
  %v2659 = vmul.f32 %v2589, %v2638
  %v2660 = vmul.f32 %v2590, %v2638
  %v2661 = vmul.f32 %v2591, %v2638
  %v2662 = vmul.f32 %v2592, %v2638
  %v2663 = vmul.f32 %v2593, %v2638
  %v2664 = vmul.f32 %v2594, %v2638
  %v2665 = vmul.f32 %v2595, %v2638
  %v2666 = vmul.f32 %v2596, %v2638
  %v2667 = vmul.f32 %v2597, %v2638
  %v2668 = vmul.f32 %v2598, %v2638
  %v2669 = vmul.f32 %v2599, %v2638
  %v2670 = vmul.f32 %v2600, %v2638
  %v2671 = vmul.f32 %v2601, %v2638
  %v2672 = vmul.f32 %v2602, %v2638
  %v2673 = vmul.f32 %v2603, %v2638
  %v2674 = vmul.f32 %v2604, %v2638
  %v2675 = vmul.f32 %v2605, %v2638
  %v2676 = vmul.f32 %v2606, %v2638
  %v2677 = vmul.f32 %v2607, %v2638
  %v2678 = vmul.f32 %v2608, %v2638
  %v2679 = vmul.f32 %v2609, %v2638
  %v2680 = vmul.f32 %v2610, %v2638
  %v2681 = vmul.f32 %v2611, %v2638
  %v2682 = vmul.f32 %v2612, %v2638
  %v2683 = vmul.f32 %v2613, %v2638
  %v2684 = vmul.f32 %v2614, %v2638
  %v2685 = vmul.f32 %v2615, %v2638
  %v2686 = vmul.f32 %v2616, %v2638
  %v2687 = vmul.f32 %v2617, %v2638
  %v2688 = vmul.f32 %v2618, %v2638
  %v2689 = vmul.f32 %v2619, %v2638
  %v2690 = vmul.f32 %v2620, %v2638
  %v2691 = vmul.f32 %v2621, %v2638
  %v2692 = vmul.f32 %v2622, %v2638
  %v2693 = vmul.f32 %v2623, %v2638
  %v2694 = vmul.f32 %v2624, %v2638
  %v2695 = vmul.f32 %v2625, %v2638
  %v2696 = vmul.f32 %v2626, %v2638
  %v2697 = vmul.f32 %v2627, %v2638
  %v2698 = vmul.f32 %v2628, %v2638
  %v2699 = vmul.f32 %v2629, %v2638
  %v2700 = vmul.f32 %v2630, %v2638
  %v2701 = vmul.f32 %v2631, %v2638
  %v2702 = vmul.f32 %v2632, %v2638
  %v2703 = vmul.f32 %v2633, %v2638
  %v2704 = vld [vmem:[%s4] sm:$0xff]
  %2706 = vset.pattern.permute.xlu0 0
  %2707 = vperm.xlu0 %2706, %v2704
  %v2708 = vpop.permute.xlu0 %2707
  %v2710 = vadd.f32 %v2640, %v2708
  %v2711 = vadd.f32 %v2641, %v2708
  %v2712 = vadd.f32 %v2642, %v2708
  %v2713 = vadd.f32 %v2643, %v2708
  %v2714 = vadd.f32 %v2644, %v2708
  %v2715 = vadd.f32 %v2645, %v2708
  %v2716 = vadd.f32 %v2646, %v2708
  %v2717 = vadd.f32 %v2647, %v2708
  %v2718 = vadd.f32 %v2648, %v2708
  %v2719 = vadd.f32 %v2649, %v2708
  %v2720 = vadd.f32 %v2650, %v2708
  %v2721 = vadd.f32 %v2651, %v2708
  %v2722 = vadd.f32 %v2652, %v2708
  %v2723 = vadd.f32 %v2653, %v2708
  %v2724 = vadd.f32 %v2654, %v2708
  %v2725 = vadd.f32 %v2655, %v2708
  %v2726 = vadd.f32 %v2656, %v2708
  %v2727 = vadd.f32 %v2657, %v2708
  %v2728 = vadd.f32 %v2658, %v2708
  %v2729 = vadd.f32 %v2659, %v2708
  %v2730 = vadd.f32 %v2660, %v2708
  %v2731 = vadd.f32 %v2661, %v2708
  %v2732 = vadd.f32 %v2662, %v2708
  %v2733 = vadd.f32 %v2663, %v2708
  %v2734 = vadd.f32 %v2664, %v2708
  %v2735 = vadd.f32 %v2665, %v2708
  %v2736 = vadd.f32 %v2666, %v2708
  %v2737 = vadd.f32 %v2667, %v2708
  %v2738 = vadd.f32 %v2668, %v2708
  %v2739 = vadd.f32 %v2669, %v2708
  %v2740 = vadd.f32 %v2670, %v2708
  %v2741 = vadd.f32 %v2671, %v2708
  %v2742 = vadd.f32 %v2672, %v2708
  %v2743 = vadd.f32 %v2673, %v2708
  %v2744 = vadd.f32 %v2674, %v2708
  %v2745 = vadd.f32 %v2675, %v2708
  %v2746 = vadd.f32 %v2676, %v2708
  %v2747 = vadd.f32 %v2677, %v2708
  %v2748 = vadd.f32 %v2678, %v2708
  %v2749 = vadd.f32 %v2679, %v2708
  %v2750 = vadd.f32 %v2680, %v2708
  %v2751 = vadd.f32 %v2681, %v2708
  %v2752 = vadd.f32 %v2682, %v2708
  %v2753 = vadd.f32 %v2683, %v2708
  %v2754 = vadd.f32 %v2684, %v2708
  %v2755 = vadd.f32 %v2685, %v2708
  %v2756 = vadd.f32 %v2686, %v2708
  %v2757 = vadd.f32 %v2687, %v2708
  %v2758 = vadd.f32 %v2688, %v2708
  %v2759 = vadd.f32 %v2689, %v2708
  %v2760 = vadd.f32 %v2690, %v2708
  %v2761 = vadd.f32 %v2691, %v2708
  %v2762 = vadd.f32 %v2692, %v2708
  %v2763 = vadd.f32 %v2693, %v2708
  %v2764 = vadd.f32 %v2694, %v2708
  %v2765 = vadd.f32 %v2695, %v2708
  %v2766 = vadd.f32 %v2696, %v2708
  %v2767 = vadd.f32 %v2697, %v2708
  %v2768 = vadd.f32 %v2698, %v2708
  %v2769 = vadd.f32 %v2699, %v2708
  %v2770 = vadd.f32 %v2700, %v2708
  %v2771 = vadd.f32 %v2701, %v2708
  %v2772 = vadd.f32 %v2702, %v2708
  %v2773 = vadd.f32 %v2703, %v2708
  %2774 = vst [vmem:[%s5] sm:$0xff] %v2710
  %2775 = vst [vmem:[%s5 + $0x8] sm:$0xff] %v2711
  %2776 = vst [vmem:[%s5 + $0x10] sm:$0xff] %v2712
  %2777 = vst [vmem:[%s5 + $0x18] sm:$0xff] %v2713
  %2778 = vst [vmem:[%s5 + $0x20] sm:$0xff] %v2714
  %2779 = vst [vmem:[%s5 + $0x28] sm:$0xff] %v2715
  %2780 = vst [vmem:[%s5 + $0x30] sm:$0xff] %v2716
  %2781 = vst [vmem:[%s5 + $0x38] sm:$0xff] %v2717
  %2782 = vst [vmem:[%s5 + $0x40] sm:$0xff] %v2718
  %2783 = vst [vmem:[%s5 + $0x48] sm:$0xff] %v2719
  %2784 = vst [vmem:[%s5 + $0x50] sm:$0xff] %v2720
  %2785 = vst [vmem:[%s5 + $0x58] sm:$0xff] %v2721
  %2786 = vst [vmem:[%s5 + $0x60] sm:$0xff] %v2722
  %2787 = vst [vmem:[%s5 + $0x68] sm:$0xff] %v2723
  %2788 = vst [vmem:[%s5 + $0x70] sm:$0xff] %v2724
  %2789 = vst [vmem:[%s5 + $0x78] sm:$0xff] %v2725
  %2790 = vst [vmem:[%s5 + $0x80] sm:$0xff] %v2726
  %2791 = vst [vmem:[%s5 + $0x88] sm:$0xff] %v2727
  %2792 = vst [vmem:[%s5 + $0x90] sm:$0xff] %v2728
  %2793 = vst [vmem:[%s5 + $0x98] sm:$0xff] %v2729
  %2794 = vst [vmem:[%s5 + $0xa0] sm:$0xff] %v2730
  %2795 = vst [vmem:[%s5 + $0xa8] sm:$0xff] %v2731
  %2796 = vst [vmem:[%s5 + $0xb0] sm:$0xff] %v2732
  %2797 = vst [vmem:[%s5 + $0xb8] sm:$0xff] %v2733
  %2798 = vst [vmem:[%s5 + $0xc0] sm:$0xff] %v2734
  %2799 = vst [vmem:[%s5 + $0xc8] sm:$0xff] %v2735
  %2800 = vst [vmem:[%s5 + $0xd0] sm:$0xff] %v2736
  %2801 = vst [vmem:[%s5 + $0xd8] sm:$0xff] %v2737
  %2802 = vst [vmem:[%s5 + $0xe0] sm:$0xff] %v2738
  %2803 = vst [vmem:[%s5 + $0xe8] sm:$0xff] %v2739
  %2804 = vst [vmem:[%s5 + $0xf0] sm:$0xff] %v2740
  %2805 = vst [vmem:[%s5 + $0xf8] sm:$0xff] %v2741
  %2806 = vst [vmem:[%s5 + $0x100] sm:$0xff] %v2742
  %2807 = vst [vmem:[%s5 + $0x108] sm:$0xff] %v2743
  %2808 = vst [vmem:[%s5 + $0x110] sm:$0xff] %v2744
  %2809 = vst [vmem:[%s5 + $0x118] sm:$0xff] %v2745
  %2810 = vst [vmem:[%s5 + $0x120] sm:$0xff] %v2746
  %2811 = vst [vmem:[%s5 + $0x128] sm:$0xff] %v2747
  %2812 = vst [vmem:[%s5 + $0x130] sm:$0xff] %v2748
  %2813 = vst [vmem:[%s5 + $0x138] sm:$0xff] %v2749
  %2814 = vst [vmem:[%s5 + $0x140] sm:$0xff] %v2750
  %2815 = vst [vmem:[%s5 + $0x148] sm:$0xff] %v2751
  %2816 = vst [vmem:[%s5 + $0x150] sm:$0xff] %v2752
  %2817 = vst [vmem:[%s5 + $0x158] sm:$0xff] %v2753
  %2818 = vst [vmem:[%s5 + $0x160] sm:$0xff] %v2754
  %2819 = vst [vmem:[%s5 + $0x168] sm:$0xff] %v2755
  %2820 = vst [vmem:[%s5 + $0x170] sm:$0xff] %v2756
  %2821 = vst [vmem:[%s5 + $0x178] sm:$0xff] %v2757
  %2822 = vst [vmem:[%s5 + $0x180] sm:$0xff] %v2758
  %2823 = vst [vmem:[%s5 + $0x188] sm:$0xff] %v2759
  %2824 = vst [vmem:[%s5 + $0x190] sm:$0xff] %v2760
  %2825 = vst [vmem:[%s5 + $0x198] sm:$0xff] %v2761
  %2826 = vst [vmem:[%s5 + $0x1a0] sm:$0xff] %v2762
  %2827 = vst [vmem:[%s5 + $0x1a8] sm:$0xff] %v2763
  %2828 = vst [vmem:[%s5 + $0x1b0] sm:$0xff] %v2764
  %2829 = vst [vmem:[%s5 + $0x1b8] sm:$0xff] %v2765
  %2830 = vst [vmem:[%s5 + $0x1c0] sm:$0xff] %v2766
  %2831 = vst [vmem:[%s5 + $0x1c8] sm:$0xff] %v2767
  %2832 = vst [vmem:[%s5 + $0x1d0] sm:$0xff] %v2768
  %2833 = vst [vmem:[%s5 + $0x1d8] sm:$0xff] %v2769
  %2834 = vst [vmem:[%s5 + $0x1e0] sm:$0xff] %v2770
  %2835 = vst [vmem:[%s5 + $0x1e8] sm:$0xff] %v2771
  %2836 = vst [vmem:[%s5 + $0x1f0] sm:$0xff] %v2772
  %2837 = vst [vmem:[%s5 + $0x1f8] sm:$0xff] %v2773
  // Predicated region
  $region22: #{_lambda_.5} parent=0 // pred_check
    _
  $region23: #{_lambda_.5} parent=0 // pred_check_branch
    %2839 = sbr.rel (0) target = $region25
  $region24: #{_lambda_.5} parent=0 // pred_region
    _
  $region25: #{_lambda_.5} parent=0 // pred_fallthru
    _
  // Predicated region
  $region26: #{_lambda_.5} parent=0 // pred_check
    _
  $region27: #{_lambda_.5} parent=0 // pred_check_branch
    %2841 = sbr.rel (0) target = $region29
  $region28: #{_lambda_.5} parent=0 // pred_region
    _
  $region29: #{_lambda_.5} parent=0 // pred_fallthru
    _

// kernel: _lambda_.6
$region0: #{_lambda_.6}
  #allocation0 [shape = 'u32[]', space=smem, size = 0x4, offset = 0x4, fixed_abs, tag = 'smem constant byte address 0x4 - core index']
  #allocation1 [shape = 'u32[144,128]{1,0:T(1,128)}', space=vmem, size = 0x12000, scoped, tag = 'internal scratch']
  %s0 = inlined_call_operand.vmem [shape: bf16[216,1024], index: 0, kind: input, shape index: {}]
  %s1 = inlined_call_operand.vmem [shape: bf16[8,216], index: 1, kind: input, shape index: {}]
  %s2 = inlined_call_operand.vmem [shape: f32[8,1], index: 2, kind: input, shape index: {}, may-alias: {2,4}]
  %s3 = inlined_call_operand.vmem [shape: f32[8,1], index: 3, kind: input, shape index: {}]
  %s4 = inlined_call_operand.vmem [shape: f32[8,1], index: 4, kind: input, shape index: {}, may-alias: {2,4}]
  %s5 = inlined_call_operand.vmem [shape: f32[8,1024], index: 5, kind: output, shape index: {}]
  %s6 = sld [smem:[#allocation0]]
  $region30: #{_lambda_.6} parent=0
    _
  %s8 = ssub.s32 1, %s6
  %s9 = scalar_select 0, %s8, %s6
  // Predicated region
  $region2: #{_lambda_.6} parent=0 // pred_check
    _
  $region3: #{_lambda_.6} parent=0 // pred_check_branch
    %11 = sbr.rel (0) target = $region5
  $region4: #{_lambda_.6} parent=0 // pred_region
    _
  $region5: #{_lambda_.6} parent=0 // pred_fallthru
    _
  // Predicated region
  $region6: #{_lambda_.6} parent=0 // pred_check
    _
  $region7: #{_lambda_.6} parent=0 // pred_check_branch
    %13 = sbr.rel (0) target = $region9
  $region8: #{_lambda_.6} parent=0 // pred_region
    _
  $region9: #{_lambda_.6} parent=0 // pred_fallthru
    _
  // Predicated region
  $region10: #{_lambda_.6} parent=0 // pred_check
    _
  $region11: #{_lambda_.6} parent=0 // pred_check_branch
    %15 = sbr.rel (0) target = $region13
  $region12: #{_lambda_.6} parent=0 // pred_region
    _
  $region13: #{_lambda_.6} parent=0 // pred_fallthru
    _
  // Predicated region
  $region14: #{_lambda_.6} parent=0 // pred_check
    _
  $region15: #{_lambda_.6} parent=0 // pred_check_branch
    %17 = sbr.rel (0) target = $region17
  $region16: #{_lambda_.6} parent=0 // pred_region
    _
  $region17: #{_lambda_.6} parent=0 // pred_fallthru
    _
  // Predicated region
  $region18: #{_lambda_.6} parent=0 // pred_check
    _
  $region19: #{_lambda_.6} parent=0 // pred_check_branch
    %19 = sbr.rel (0) target = $region21
  $region20: #{_lambda_.6} parent=0 // pred_region
    _
  $region21: #{_lambda_.6} parent=0 // pred_fallthru
    _
  %v21 = vld [vmem:[%s1] sm:$0xff]
  %v22 = vld [vmem:[%s0] sm:$0xff]
  %v23 = vld [vmem:[%s0 + $0x8] sm:$0xff]
  %v24 = vld [vmem:[%s0 + $0x10] sm:$0xff]
  %v25 = vld [vmem:[%s0 + $0x18] sm:$0xff]
  %v26 = vld [vmem:[%s0 + $0x20] sm:$0xff]
  %v27 = vld [vmem:[%s0 + $0x28] sm:$0xff]
  %v28 = vld [vmem:[%s0 + $0x30] sm:$0xff]
  %v29 = vld [vmem:[%s0 + $0x38] sm:$0xff]
  %v30 = vld [vmem:[%s0 + $0x40] sm:$0xff]
  %v31 = vld [vmem:[%s0 + $0x48] sm:$0xff]
  %v32 = vld [vmem:[%s0 + $0x50] sm:$0xff]
  %v33 = vld [vmem:[%s0 + $0x58] sm:$0xff]
  %v34 = vld [vmem:[%s0 + $0x60] sm:$0xff]
  %v35 = vld [vmem:[%s0 + $0x68] sm:$0xff]
  %v36 = vld [vmem:[%s0 + $0x70] sm:$0xff]
  %v37 = vld [vmem:[%s0 + $0x78] sm:$0xff]
  %v38 = vld [vmem:[%s0 + $0x80] sm:$0xff]
  %v39 = vld [vmem:[%s0 + $0x88] sm:$0xff]
  %v40 = vld [vmem:[%s0 + $0x90] sm:$0xff]
  %v41 = vld [vmem:[%s0 + $0x98] sm:$0xff]
  %v42 = vld [vmem:[%s0 + $0xa0] sm:$0xff]
  %v43 = vld [vmem:[%s0 + $0xa8] sm:$0xff]
  %v44 = vld [vmem:[%s0 + $0xb0] sm:$0xff]
  %v45 = vld [vmem:[%s0 + $0xb8] sm:$0xff]
  %v46 = vld [vmem:[%s0 + $0xc0] sm:$0xff]
  %v47 = vld [vmem:[%s0 + $0xc8] sm:$0xff]
  %v48 = vld [vmem:[%s0 + $0xd0] sm:$0xff]
  %v49 = vld [vmem:[%s0 + $0xd8] sm:$0xff]
  %v50 = vld [vmem:[%s0 + $0xe0] sm:$0xff]
  %v51 = vld [vmem:[%s0 + $0xe8] sm:$0xff]
  %v52 = vld [vmem:[%s0 + $0xf0] sm:$0xff]
  %v53 = vld [vmem:[%s0 + $0xf8] sm:$0xff]
  %v54 = vld [vmem:[%s0 + $0x100] sm:$0xff]
  %v55 = vld [vmem:[%s0 + $0x108] sm:$0xff]
  %v56 = vld [vmem:[%s0 + $0x110] sm:$0xff]
  %v57 = vld [vmem:[%s0 + $0x118] sm:$0xff]
  %v58 = vld [vmem:[%s0 + $0x120] sm:$0xff]
  %v59 = vld [vmem:[%s0 + $0x128] sm:$0xff]
  %v60 = vld [vmem:[%s0 + $0x130] sm:$0xff]
  %v61 = vld [vmem:[%s0 + $0x138] sm:$0xff]
  %v62 = vld [vmem:[%s0 + $0x140] sm:$0xff]
  %v63 = vld [vmem:[%s0 + $0x148] sm:$0xff]
  %v64 = vld [vmem:[%s0 + $0x150] sm:$0xff]
  %v65 = vld [vmem:[%s0 + $0x158] sm:$0xff]
  %v66 = vld [vmem:[%s0 + $0x160] sm:$0xff]
  %v67 = vld [vmem:[%s0 + $0x168] sm:$0xff]
  %v68 = vld [vmem:[%s0 + $0x170] sm:$0xff]
  %v69 = vld [vmem:[%s0 + $0x178] sm:$0xff]
  %v70 = vld [vmem:[%s0 + $0x180] sm:$0xff]
  %v71 = vld [vmem:[%s0 + $0x188] sm:$0xff]
  %v72 = vld [vmem:[%s0 + $0x190] sm:$0xff]
  %v73 = vld [vmem:[%s0 + $0x198] sm:$0xff]
  %v74 = vld [vmem:[%s0 + $0x1a0] sm:$0xff]
  %v75 = vld [vmem:[%s0 + $0x1a8] sm:$0xff]
  %v76 = vld [vmem:[%s0 + $0x1b0] sm:$0xff]
  %v77 = vld [vmem:[%s0 + $0x1b8] sm:$0xff]
  %v78 = vld [vmem:[%s0 + $0x1c0] sm:$0xff]
  %v79 = vld [vmem:[%s0 + $0x1c8] sm:$0xff]
  %v80 = vld [vmem:[%s0 + $0x1d0] sm:$0xff]
  %v81 = vld [vmem:[%s0 + $0x1d8] sm:$0xff]
  %v82 = vld [vmem:[%s0 + $0x1e0] sm:$0xff]
  %v83 = vld [vmem:[%s0 + $0x1e8] sm:$0xff]
  %v84 = vld [vmem:[%s0 + $0x1f0] sm:$0xff]
  %v85 = vld [vmem:[%s0 + $0x1f8] sm:$0xff]
  %v86 = vld [vmem:[%s0 + $0x200] sm:$0xff]
  %v87 = vld [vmem:[%s0 + $0x208] sm:$0xff]
  %v88 = vld [vmem:[%s0 + $0x210] sm:$0xff]
  %v89 = vld [vmem:[%s0 + $0x218] sm:$0xff]
  %v90 = vld [vmem:[%s0 + $0x220] sm:$0xff]
  %v91 = vld [vmem:[%s0 + $0x228] sm:$0xff]
  %v92 = vld [vmem:[%s0 + $0x230] sm:$0xff]
  %v93 = vld [vmem:[%s0 + $0x238] sm:$0xff]
  %v94 = vld [vmem:[%s0 + $0x240] sm:$0xff]
  %v95 = vld [vmem:[%s0 + $0x248] sm:$0xff]
  %v96 = vld [vmem:[%s0 + $0x250] sm:$0xff]
  %v97 = vld [vmem:[%s0 + $0x258] sm:$0xff]
  %v98 = vld [vmem:[%s0 + $0x260] sm:$0xff]
  %v99 = vld [vmem:[%s0 + $0x268] sm:$0xff]
  %v100 = vld [vmem:[%s0 + $0x270] sm:$0xff]
  %v101 = vld [vmem:[%s0 + $0x278] sm:$0xff]
  %v102 = vld [vmem:[%s0 + $0x280] sm:$0xff]
  %v103 = vld [vmem:[%s0 + $0x288] sm:$0xff]
  %v104 = vld [vmem:[%s0 + $0x290] sm:$0xff]
  %v105 = vld [vmem:[%s0 + $0x298] sm:$0xff]
  %v106 = vld [vmem:[%s0 + $0x2a0] sm:$0xff]
  %v107 = vld [vmem:[%s0 + $0x2a8] sm:$0xff]
  %v108 = vld [vmem:[%s0 + $0x2b0] sm:$0xff]
  %v109 = vld [vmem:[%s0 + $0x2b8] sm:$0xff]
  %v110 = vld [vmem:[%s0 + $0x2c0] sm:$0xff]
  %v111 = vld [vmem:[%s0 + $0x2c8] sm:$0xff]
  %v112 = vld [vmem:[%s0 + $0x2d0] sm:$0xff]
  %v113 = vld [vmem:[%s0 + $0x2d8] sm:$0xff]
  %v114 = vld [vmem:[%s0 + $0x2e0] sm:$0xff]
  %v115 = vld [vmem:[%s0 + $0x2e8] sm:$0xff]
  %v116 = vld [vmem:[%s0 + $0x2f0] sm:$0xff]
  %v117 = vld [vmem:[%s0 + $0x2f8] sm:$0xff]
  %v118 = vld [vmem:[%s0 + $0x300] sm:$0xff]
  %v119 = vld [vmem:[%s0 + $0x308] sm:$0xff]
  %v120 = vld [vmem:[%s0 + $0x310] sm:$0xff]
  %v121 = vld [vmem:[%s0 + $0x318] sm:$0xff]
  %v122 = vld [vmem:[%s0 + $0x320] sm:$0xff]
  %v123 = vld [vmem:[%s0 + $0x328] sm:$0xff]
  %v124 = vld [vmem:[%s0 + $0x330] sm:$0xff]
  %v125 = vld [vmem:[%s0 + $0x338] sm:$0xff]
  %v126 = vld [vmem:[%s0 + $0x340] sm:$0xff]
  %v127 = vld [vmem:[%s0 + $0x348] sm:$0xff]
  %v128 = vld [vmem:[%s0 + $0x350] sm:$0xff]
  %v129 = vld [vmem:[%s0 + $0x358] sm:$0xff]
  %v130 = vld [vmem:[%s2] sm:$0xff]
  %132 = vset.pattern.permute.xlu0 0
  %133 = vperm.xlu0 %132, %v130
  %v134 = vpop.permute.xlu0 %133
  %v137 = vunpack.c.l.b16 %v21
  %v138 = vunpack.c.h.b16 %v21
  %v139 = vpack.c.b16 %v137, %v137
  %v140 = vpack.c.b16 %v138, %v138
  %v250 = vunpack.c.l.b16 %v22
  %v251 = vunpack.c.h.b16 %v22
  %v252 = vunpack.c.l.b16 %v23
  %v253 = vunpack.c.h.b16 %v23
  %v254 = vunpack.c.l.b16 %v24
  %v255 = vunpack.c.h.b16 %v24
  %v256 = vunpack.c.l.b16 %v25
  %v257 = vunpack.c.h.b16 %v25
  %v258 = vunpack.c.l.b16 %v26
  %v259 = vunpack.c.h.b16 %v26
  %v260 = vunpack.c.l.b16 %v27
  %v261 = vunpack.c.h.b16 %v27
  %v262 = vunpack.c.l.b16 %v28
  %v263 = vunpack.c.h.b16 %v28
  %v264 = vunpack.c.l.b16 %v29
  %v265 = vunpack.c.h.b16 %v29
  %v266 = vunpack.c.l.b16 %v30
  %v267 = vunpack.c.h.b16 %v30
  %v268 = vunpack.c.l.b16 %v31
  %v269 = vunpack.c.h.b16 %v31
  %v270 = vunpack.c.l.b16 %v32
  %v271 = vunpack.c.h.b16 %v32
  %v272 = vunpack.c.l.b16 %v33
  %v273 = vunpack.c.h.b16 %v33
  %v274 = vunpack.c.l.b16 %v34
  %v275 = vunpack.c.h.b16 %v34
  %v276 = vunpack.c.l.b16 %v35
  %v277 = vunpack.c.h.b16 %v35
  %v278 = vunpack.c.l.b16 %v36
  %v279 = vunpack.c.h.b16 %v36
  %v280 = vunpack.c.l.b16 %v37
  %v281 = vunpack.c.h.b16 %v37
  %v282 = vunpack.c.l.b16 %v38
  %v283 = vunpack.c.h.b16 %v38
  %v284 = vunpack.c.l.b16 %v39
  %v285 = vunpack.c.h.b16 %v39
  %v286 = vunpack.c.l.b16 %v40
  %v287 = vunpack.c.h.b16 %v40
  %v288 = vunpack.c.l.b16 %v41
  %v289 = vunpack.c.h.b16 %v41
  %v290 = vunpack.c.l.b16 %v42
  %v291 = vunpack.c.h.b16 %v42
  %v292 = vunpack.c.l.b16 %v43
  %v293 = vunpack.c.h.b16 %v43
  %v294 = vunpack.c.l.b16 %v44
  %v295 = vunpack.c.h.b16 %v44
  %v296 = vunpack.c.l.b16 %v45
  %v297 = vunpack.c.h.b16 %v45
  %v298 = vunpack.c.l.b16 %v46
  %v299 = vunpack.c.h.b16 %v46
  %v300 = vunpack.c.l.b16 %v47
  %v301 = vunpack.c.h.b16 %v47
  %v302 = vunpack.c.l.b16 %v48
  %v303 = vunpack.c.h.b16 %v48
  %v304 = vunpack.c.l.b16 %v49
  %v305 = vunpack.c.h.b16 %v49
  %v306 = vunpack.c.l.b16 %v50
  %v307 = vunpack.c.h.b16 %v50
  %v308 = vunpack.c.l.b16 %v51
  %v309 = vunpack.c.h.b16 %v51
  %v310 = vunpack.c.l.b16 %v52
  %v311 = vunpack.c.h.b16 %v52
  %v312 = vunpack.c.l.b16 %v53
  %v313 = vunpack.c.h.b16 %v53
  %v314 = vunpack.c.l.b16 %v54
  %v315 = vunpack.c.h.b16 %v54
  %v316 = vunpack.c.l.b16 %v55
  %v317 = vunpack.c.h.b16 %v55
  %v318 = vunpack.c.l.b16 %v56
  %v319 = vunpack.c.h.b16 %v56
  %v320 = vunpack.c.l.b16 %v57
  %v321 = vunpack.c.h.b16 %v57
  %v322 = vunpack.c.l.b16 %v58
  %v323 = vunpack.c.h.b16 %v58
  %v324 = vunpack.c.l.b16 %v59
  %v325 = vunpack.c.h.b16 %v59
  %v326 = vunpack.c.l.b16 %v60
  %v327 = vunpack.c.h.b16 %v60
  %v328 = vunpack.c.l.b16 %v61
  %v329 = vunpack.c.h.b16 %v61
  %v330 = vunpack.c.l.b16 %v62
  %v331 = vunpack.c.h.b16 %v62
  %v332 = vunpack.c.l.b16 %v63
  %v333 = vunpack.c.h.b16 %v63
  %v334 = vunpack.c.l.b16 %v64
  %v335 = vunpack.c.h.b16 %v64
  %v336 = vunpack.c.l.b16 %v65
  %v337 = vunpack.c.h.b16 %v65
  %v338 = vunpack.c.l.b16 %v66
  %v339 = vunpack.c.h.b16 %v66
  %v340 = vunpack.c.l.b16 %v67
  %v341 = vunpack.c.h.b16 %v67
  %v342 = vunpack.c.l.b16 %v68
  %v343 = vunpack.c.h.b16 %v68
  %v344 = vunpack.c.l.b16 %v69
  %v345 = vunpack.c.h.b16 %v69
  %v346 = vunpack.c.l.b16 %v70
  %v347 = vunpack.c.h.b16 %v70
  %v348 = vunpack.c.l.b16 %v71
  %v349 = vunpack.c.h.b16 %v71
  %v350 = vunpack.c.l.b16 %v72
  %v351 = vunpack.c.h.b16 %v72
  %v352 = vunpack.c.l.b16 %v73
  %v353 = vunpack.c.h.b16 %v73
  %v354 = vunpack.c.l.b16 %v74
  %v355 = vunpack.c.h.b16 %v74
  %v356 = vunpack.c.l.b16 %v75
  %v357 = vunpack.c.h.b16 %v75
  %v358 = vunpack.c.l.b16 %v76
  %v359 = vunpack.c.h.b16 %v76
  %v360 = vunpack.c.l.b16 %v77
  %v361 = vunpack.c.h.b16 %v77
  %v362 = vunpack.c.l.b16 %v78
  %v363 = vunpack.c.h.b16 %v78
  %v364 = vunpack.c.l.b16 %v79
  %v365 = vunpack.c.h.b16 %v79
  %v366 = vunpack.c.l.b16 %v80
  %v367 = vunpack.c.h.b16 %v80
  %v368 = vunpack.c.l.b16 %v81
  %v369 = vunpack.c.h.b16 %v81
  %v370 = vunpack.c.l.b16 %v82
  %v371 = vunpack.c.h.b16 %v82
  %v372 = vunpack.c.l.b16 %v83
  %v373 = vunpack.c.h.b16 %v83
  %v374 = vunpack.c.l.b16 %v84
  %v375 = vunpack.c.h.b16 %v84
  %v376 = vunpack.c.l.b16 %v85
  %v377 = vunpack.c.h.b16 %v85
  %v378 = vunpack.c.l.b16 %v86
  %v379 = vunpack.c.h.b16 %v86
  %v380 = vunpack.c.l.b16 %v87
  %v381 = vunpack.c.h.b16 %v87
  %v382 = vunpack.c.l.b16 %v88
  %v383 = vunpack.c.h.b16 %v88
  %v384 = vunpack.c.l.b16 %v89
  %v385 = vunpack.c.h.b16 %v89
  %v386 = vunpack.c.l.b16 %v90
  %v387 = vunpack.c.h.b16 %v90
  %v388 = vunpack.c.l.b16 %v91
  %v389 = vunpack.c.h.b16 %v91
  %v390 = vunpack.c.l.b16 %v92
  %v391 = vunpack.c.h.b16 %v92
  %v392 = vunpack.c.l.b16 %v93
  %v393 = vunpack.c.h.b16 %v93
  %v394 = vunpack.c.l.b16 %v94
  %v395 = vunpack.c.h.b16 %v94
  %v396 = vunpack.c.l.b16 %v95
  %v397 = vunpack.c.h.b16 %v95
  %v398 = vunpack.c.l.b16 %v96
  %v399 = vunpack.c.h.b16 %v96
  %v400 = vunpack.c.l.b16 %v97
  %v401 = vunpack.c.h.b16 %v97
  %v402 = vunpack.c.l.b16 %v98
  %v403 = vunpack.c.h.b16 %v98
  %v404 = vunpack.c.l.b16 %v99
  %v405 = vunpack.c.h.b16 %v99
  %v406 = vunpack.c.l.b16 %v100
  %v407 = vunpack.c.h.b16 %v100
  %v408 = vunpack.c.l.b16 %v101
  %v409 = vunpack.c.h.b16 %v101
  %v410 = vunpack.c.l.b16 %v102
  %v411 = vunpack.c.h.b16 %v102
  %v412 = vunpack.c.l.b16 %v103
  %v413 = vunpack.c.h.b16 %v103
  %v414 = vunpack.c.l.b16 %v104
  %v415 = vunpack.c.h.b16 %v104
  %v416 = vunpack.c.l.b16 %v105
  %v417 = vunpack.c.h.b16 %v105
  %v418 = vunpack.c.l.b16 %v106
  %v419 = vunpack.c.h.b16 %v106
  %v420 = vunpack.c.l.b16 %v107
  %v421 = vunpack.c.h.b16 %v107
  %v422 = vunpack.c.l.b16 %v108
  %v423 = vunpack.c.h.b16 %v108
  %v424 = vunpack.c.l.b16 %v109
  %v425 = vunpack.c.h.b16 %v109
  %v426 = vunpack.c.l.b16 %v110
  %v427 = vunpack.c.h.b16 %v110
  %v428 = vunpack.c.l.b16 %v111
  %v429 = vunpack.c.h.b16 %v111
  %v430 = vunpack.c.l.b16 %v112
  %v431 = vunpack.c.h.b16 %v112
  %v432 = vunpack.c.l.b16 %v113
  %v433 = vunpack.c.h.b16 %v113
  %v434 = vunpack.c.l.b16 %v114
  %v435 = vunpack.c.h.b16 %v114
  %v436 = vunpack.c.l.b16 %v115
  %v437 = vunpack.c.h.b16 %v115
  %v438 = vunpack.c.l.b16 %v116
  %v439 = vunpack.c.h.b16 %v116
  %v440 = vunpack.c.l.b16 %v117
  %v441 = vunpack.c.h.b16 %v117
  %v442 = vunpack.c.l.b16 %v118
  %v443 = vunpack.c.h.b16 %v118
  %v444 = vunpack.c.l.b16 %v119
  %v445 = vunpack.c.h.b16 %v119
  %v446 = vunpack.c.l.b16 %v120
  %v447 = vunpack.c.h.b16 %v120
  %v448 = vunpack.c.l.b16 %v121
  %v449 = vunpack.c.h.b16 %v121
  %v450 = vunpack.c.l.b16 %v122
  %v451 = vunpack.c.h.b16 %v122
  %v452 = vunpack.c.l.b16 %v123
  %v453 = vunpack.c.h.b16 %v123
  %v454 = vunpack.c.l.b16 %v124
  %v455 = vunpack.c.h.b16 %v124
  %v456 = vunpack.c.l.b16 %v125
  %v457 = vunpack.c.h.b16 %v125
  %v458 = vunpack.c.l.b16 %v126
  %v459 = vunpack.c.h.b16 %v126
  %v460 = vunpack.c.l.b16 %v127
  %v461 = vunpack.c.h.b16 %v127
  %v462 = vunpack.c.l.b16 %v128
  %v463 = vunpack.c.h.b16 %v128
  %v464 = vunpack.c.l.b16 %v129
  %v465 = vunpack.c.h.b16 %v129
  %v466 = vpack.c.b16 %v258, %v250
  %v467 = vpack.c.b16 %v259, %v251
  %v468 = vpack.c.b16 %v260, %v252
  %v469 = vpack.c.b16 %v261, %v253
  %v470 = vpack.c.b16 %v262, %v254
  %v471 = vpack.c.b16 %v263, %v255
  %v472 = vpack.c.b16 %v264, %v256
  %v473 = vpack.c.b16 %v265, %v257
  %v474 = vpack.c.b16 %v274, %v266
  %v475 = vpack.c.b16 %v275, %v267
  %v476 = vpack.c.b16 %v276, %v268
  %v477 = vpack.c.b16 %v277, %v269
  %v478 = vpack.c.b16 %v278, %v270
  %v479 = vpack.c.b16 %v279, %v271
  %v480 = vpack.c.b16 %v280, %v272
  %v481 = vpack.c.b16 %v281, %v273
  %v482 = vpack.c.b16 %v290, %v282
  %v483 = vpack.c.b16 %v291, %v283
  %v484 = vpack.c.b16 %v292, %v284
  %v485 = vpack.c.b16 %v293, %v285
  %v486 = vpack.c.b16 %v294, %v286
  %v487 = vpack.c.b16 %v295, %v287
  %v488 = vpack.c.b16 %v296, %v288
  %v489 = vpack.c.b16 %v297, %v289
  %v490 = vpack.c.b16 %v306, %v298
  %v491 = vpack.c.b16 %v307, %v299
  %v492 = vpack.c.b16 %v308, %v300
  %v493 = vpack.c.b16 %v309, %v301
  %v494 = vpack.c.b16 %v310, %v302
  %v495 = vpack.c.b16 %v311, %v303
  %v496 = vpack.c.b16 %v312, %v304
  %v497 = vpack.c.b16 %v313, %v305
  %v498 = vpack.c.b16 %v322, %v314
  %v499 = vpack.c.b16 %v323, %v315
  %v500 = vpack.c.b16 %v324, %v316
  %v501 = vpack.c.b16 %v325, %v317
  %v502 = vpack.c.b16 %v326, %v318
  %v503 = vpack.c.b16 %v327, %v319
  %v504 = vpack.c.b16 %v328, %v320
  %v505 = vpack.c.b16 %v329, %v321
  %v506 = vpack.c.b16 %v338, %v330
  %v507 = vpack.c.b16 %v339, %v331
  %v508 = vpack.c.b16 %v340, %v332
  %v509 = vpack.c.b16 %v341, %v333
  %v510 = vpack.c.b16 %v342, %v334
  %v511 = vpack.c.b16 %v343, %v335
  %v512 = vpack.c.b16 %v344, %v336
  %v513 = vpack.c.b16 %v345, %v337
  %v514 = vpack.c.b16 %v354, %v346
  %v515 = vpack.c.b16 %v355, %v347
  %v516 = vpack.c.b16 %v356, %v348
  %v517 = vpack.c.b16 %v357, %v349
  %v518 = vpack.c.b16 %v358, %v350
  %v519 = vpack.c.b16 %v359, %v351
  %v520 = vpack.c.b16 %v360, %v352
  %v521 = vpack.c.b16 %v361, %v353
  %v522 = vpack.c.b16 %v370, %v362
  %v523 = vpack.c.b16 %v371, %v363
  %v524 = vpack.c.b16 %v372, %v364
  %v525 = vpack.c.b16 %v373, %v365
  %v526 = vpack.c.b16 %v374, %v366
  %v527 = vpack.c.b16 %v375, %v367
  %v528 = vpack.c.b16 %v376, %v368
  %v529 = vpack.c.b16 %v377, %v369
  %v530 = vpack.c.b16 %v386, %v378
  %v531 = vpack.c.b16 %v387, %v379
  %v532 = vpack.c.b16 %v388, %v380
  %v533 = vpack.c.b16 %v389, %v381
  %v534 = vpack.c.b16 %v390, %v382
  %v535 = vpack.c.b16 %v391, %v383
  %v536 = vpack.c.b16 %v392, %v384
  %v537 = vpack.c.b16 %v393, %v385
  %v538 = vpack.c.b16 %v402, %v394
  %v539 = vpack.c.b16 %v403, %v395
  %v540 = vpack.c.b16 %v404, %v396
  %v541 = vpack.c.b16 %v405, %v397
  %v542 = vpack.c.b16 %v406, %v398
  %v543 = vpack.c.b16 %v407, %v399
  %v544 = vpack.c.b16 %v408, %v400
  %v545 = vpack.c.b16 %v409, %v401
  %v546 = vpack.c.b16 %v418, %v410
  %v547 = vpack.c.b16 %v419, %v411
  %v548 = vpack.c.b16 %v420, %v412
  %v549 = vpack.c.b16 %v421, %v413
  %v550 = vpack.c.b16 %v422, %v414
  %v551 = vpack.c.b16 %v423, %v415
  %v552 = vpack.c.b16 %v424, %v416
  %v553 = vpack.c.b16 %v425, %v417
  %v554 = vpack.c.b16 %v434, %v426
  %v555 = vpack.c.b16 %v435, %v427
  %v556 = vpack.c.b16 %v436, %v428
  %v557 = vpack.c.b16 %v437, %v429
  %v558 = vpack.c.b16 %v438, %v430
  %v559 = vpack.c.b16 %v439, %v431
  %v560 = vpack.c.b16 %v440, %v432
  %v561 = vpack.c.b16 %v441, %v433
  %v562 = vpack.c.b16 %v450, %v442
  %v563 = vpack.c.b16 %v451, %v443
  %v564 = vpack.c.b16 %v452, %v444
  %v565 = vpack.c.b16 %v453, %v445
  %v566 = vpack.c.b16 %v454, %v446
  %v567 = vpack.c.b16 %v455, %v447
  %v568 = vpack.c.b16 %v456, %v448
  %v569 = vpack.c.b16 %v457, %v449
  %v570 = vpack.c.b16 %v458, %v458
  %v571 = vpack.c.b16 %v459, %v459
  %v572 = vpack.c.b16 %v460, %v460
  %v573 = vpack.c.b16 %v461, %v461
  %v574 = vpack.c.b16 %v462, %v462
  %v575 = vpack.c.b16 %v463, %v463
  %v576 = vpack.c.b16 %v464, %v464
  %v577 = vpack.c.b16 %v465, %v465
  %vm682 = vcmask 719872
  %v684 = vsel %vm682, %v140, 0
  %vm686 = vcmask 1043456
  %v688 = vsel %vm686, %v570, 0
  %v691 = vsel %vm686, %v571, 0
  %v694 = vsel %vm686, %v572, 0
  %v697 = vsel %vm686, %v573, 0
  %v700 = vsel %vm686, %v574, 0
  %v703 = vsel %vm686, %v575, 0
  %v706 = vsel %vm686, %v576, 0
  %v709 = vsel %vm686, %v577, 0
  %711 = vmatprep.subr.bf16.mxu0 %v523
  %712 = vmatpush1.bf16.msra.mxu0 %v522
  %713 = vmatprep.subr.bf16.mxu0 %v515
  %714 = vmatpush1.bf16.msra.mxu0 %v514
  %715 = vmatprep.subr.bf16.mxu0 %v507
  %716 = vmatpush1.bf16.msra.mxu0 %v506
  %717 = vmatprep.subr.bf16.mxu0 %v499
  %718 = vmatpush1.bf16.msra.mxu0 %v498
  %719 = vmatprep.subr.bf16.mxu0 %v491
  %720 = vmatpush1.bf16.msra.mxu0 %v490
  %721 = vmatprep.subr.bf16.mxu0 %v483
  %722 = vmatpush1.bf16.msra.mxu0 %v482
  %723 = vmatprep.subr.bf16.mxu0 %v475
  %724 = vmatpush1.bf16.msra.mxu0 %v474
  %725 = vmatprep.subr.bf16.mxu0 %v467
  %726 = vmatpush1.bf16.msra.mxu0 %v466
  %727 = vmatprep.subr.bf16.mxu0 0
  %728 = vmatpush2.bf16.msra.mxu0 0
  %729 = vmatprep.subr.bf16.mxu0 0
  %730 = vmatpush2.bf16.msra.mxu0 0
  %731 = vmatprep.subr.bf16.mxu0 %v691
  %732 = vmatpush2.bf16.msra.mxu0 %v688
  %733 = vmatprep.subr.bf16.mxu0 %v563
  %734 = vmatpush2.bf16.msra.mxu0 %v562
  %735 = vmatprep.subr.bf16.mxu0 %v555
  %736 = vmatpush2.bf16.msra.mxu0 %v554
  %737 = vmatprep.subr.bf16.mxu0 %v547
  %738 = vmatpush2.bf16.msra.mxu0 %v546
  %739 = vmatprep.subr.bf16.mxu0 %v539
  %740 = vmatpush2.bf16.msra.mxu0 %v538
  %741 = vmatprep.subr.bf16.mxu0 %v531
  %742 = vmatpush2.bf16.msra.mxu0 %v530
  %743 = vmatprep.mubr.bf16.mxu0 %v684
  %744 = vmatmul.mubr.bf16.gmra.mxu0 %v139
  %v745 = vpop.f32.mrf.mxu0
  %v746 = vadd.f32 %v134, %v745
  %v747 = vpop.f32.mrf.mxu0
  %v748 = vadd.f32 %v134, %v747
  %v749 = vpop.f32.mrf.mxu0
  %v750 = vpop.f32.mrf.mxu0
  %751 = vdwg.mxu0
  %752 = vmatprep.subr.bf16.mxu0 %v525
  %753 = vmatpush1.bf16.msra.mxu0 %v524
  %754 = vmatprep.subr.bf16.mxu0 %v517
  %755 = vmatpush1.bf16.msra.mxu0 %v516
  %756 = vmatprep.subr.bf16.mxu0 %v509
  %757 = vmatpush1.bf16.msra.mxu0 %v508
  %758 = vmatprep.subr.bf16.mxu0 %v501
  %759 = vmatpush1.bf16.msra.mxu0 %v500
  %760 = vmatprep.subr.bf16.mxu0 %v493
  %761 = vmatpush1.bf16.msra.mxu0 %v492
  %762 = vmatprep.subr.bf16.mxu0 %v485
  %763 = vmatpush1.bf16.msra.mxu0 %v484
  %764 = vmatprep.subr.bf16.mxu0 %v477
  %765 = vmatpush1.bf16.msra.mxu0 %v476
  %766 = vmatprep.subr.bf16.mxu0 %v469
  %767 = vmatpush1.bf16.msra.mxu0 %v468
  %768 = vmatprep.subr.bf16.mxu0 0
  %769 = vmatpush2.bf16.msra.mxu0 0
  %770 = vmatprep.subr.bf16.mxu0 0
  %771 = vmatpush2.bf16.msra.mxu0 0
  %772 = vmatprep.subr.bf16.mxu0 %v697
  %773 = vmatpush2.bf16.msra.mxu0 %v694
  %774 = vmatprep.subr.bf16.mxu0 %v565
  %775 = vmatpush2.bf16.msra.mxu0 %v564
  %776 = vmatprep.subr.bf16.mxu0 %v557
  %777 = vmatpush2.bf16.msra.mxu0 %v556
  %778 = vmatprep.subr.bf16.mxu0 %v549
  %779 = vmatpush2.bf16.msra.mxu0 %v548
  %780 = vmatprep.subr.bf16.mxu0 %v541
  %781 = vmatpush2.bf16.msra.mxu0 %v540
  %782 = vmatprep.subr.bf16.mxu0 %v533
  %783 = vmatpush2.bf16.msra.mxu0 %v532
  %784 = vmatprep.mubr.bf16.mxu0 %v684
  %785 = vmatmul.mubr.bf16.gmra.mxu0 %v139
  %v786 = vpop.f32.mrf.mxu0
  %v787 = vadd.f32 %v134, %v786
  %v788 = vpop.f32.mrf.mxu0
  %v789 = vadd.f32 %v134, %v788
  %v790 = vpop.f32.mrf.mxu0
  %v791 = vpop.f32.mrf.mxu0
  %792 = vdwg.mxu0
  %793 = vmatprep.subr.bf16.mxu0 %v527
  %794 = vmatpush1.bf16.msra.mxu0 %v526
  %795 = vmatprep.subr.bf16.mxu0 %v519
  %796 = vmatpush1.bf16.msra.mxu0 %v518
  %797 = vmatprep.subr.bf16.mxu0 %v511
  %798 = vmatpush1.bf16.msra.mxu0 %v510
  %799 = vmatprep.subr.bf16.mxu0 %v503
  %800 = vmatpush1.bf16.msra.mxu0 %v502
  %801 = vmatprep.subr.bf16.mxu0 %v495
  %802 = vmatpush1.bf16.msra.mxu0 %v494
  %803 = vmatprep.subr.bf16.mxu0 %v487
  %804 = vmatpush1.bf16.msra.mxu0 %v486
  %805 = vmatprep.subr.bf16.mxu0 %v479
  %806 = vmatpush1.bf16.msra.mxu0 %v478
  %807 = vmatprep.subr.bf16.mxu0 %v471
  %808 = vmatpush1.bf16.msra.mxu0 %v470
  %809 = vmatprep.subr.bf16.mxu0 0
  %810 = vmatpush2.bf16.msra.mxu0 0
  %811 = vmatprep.subr.bf16.mxu0 0
  %812 = vmatpush2.bf16.msra.mxu0 0
  %813 = vmatprep.subr.bf16.mxu0 %v703
  %814 = vmatpush2.bf16.msra.mxu0 %v700
  %815 = vmatprep.subr.bf16.mxu0 %v567
  %816 = vmatpush2.bf16.msra.mxu0 %v566
  %817 = vmatprep.subr.bf16.mxu0 %v559
  %818 = vmatpush2.bf16.msra.mxu0 %v558
  %819 = vmatprep.subr.bf16.mxu0 %v551
  %820 = vmatpush2.bf16.msra.mxu0 %v550
  %821 = vmatprep.subr.bf16.mxu0 %v543
  %822 = vmatpush2.bf16.msra.mxu0 %v542
  %823 = vmatprep.subr.bf16.mxu0 %v535
  %824 = vmatpush2.bf16.msra.mxu0 %v534
  %825 = vmatprep.mubr.bf16.mxu0 %v684
  %826 = vmatmul.mubr.bf16.gmra.mxu0 %v139
  %v827 = vpop.f32.mrf.mxu0
  %v828 = vadd.f32 %v134, %v827
  %v829 = vpop.f32.mrf.mxu0
  %v830 = vadd.f32 %v134, %v829
  %v831 = vpop.f32.mrf.mxu0
  %v832 = vpop.f32.mrf.mxu0
  %833 = vdwg.mxu0
  %834 = vmatprep.subr.bf16.mxu0 %v529
  %835 = vmatpush1.bf16.msra.mxu0 %v528
  %836 = vmatprep.subr.bf16.mxu0 %v521
  %837 = vmatpush1.bf16.msra.mxu0 %v520
  %838 = vmatprep.subr.bf16.mxu0 %v513
  %839 = vmatpush1.bf16.msra.mxu0 %v512
  %840 = vmatprep.subr.bf16.mxu0 %v505
  %841 = vmatpush1.bf16.msra.mxu0 %v504
  %842 = vmatprep.subr.bf16.mxu0 %v497
  %843 = vmatpush1.bf16.msra.mxu0 %v496
  %844 = vmatprep.subr.bf16.mxu0 %v489
  %845 = vmatpush1.bf16.msra.mxu0 %v488
  %846 = vmatprep.subr.bf16.mxu0 %v481
  %847 = vmatpush1.bf16.msra.mxu0 %v480
  %848 = vmatprep.subr.bf16.mxu0 %v473
  %849 = vmatpush1.bf16.msra.mxu0 %v472
  %850 = vmatprep.subr.bf16.mxu0 0
  %851 = vmatpush2.bf16.msra.mxu0 0
  %852 = vmatprep.subr.bf16.mxu0 0
  %853 = vmatpush2.bf16.msra.mxu0 0
  %854 = vmatprep.subr.bf16.mxu0 %v709
  %855 = vmatpush2.bf16.msra.mxu0 %v706
  %856 = vmatprep.subr.bf16.mxu0 %v569
  %857 = vmatpush2.bf16.msra.mxu0 %v568
  %858 = vmatprep.subr.bf16.mxu0 %v561
  %859 = vmatpush2.bf16.msra.mxu0 %v560
  %860 = vmatprep.subr.bf16.mxu0 %v553
  %861 = vmatpush2.bf16.msra.mxu0 %v552
  %862 = vmatprep.subr.bf16.mxu0 %v545
  %863 = vmatpush2.bf16.msra.mxu0 %v544
  %864 = vmatprep.subr.bf16.mxu0 %v537
  %865 = vmatpush2.bf16.msra.mxu0 %v536
  %866 = vmatprep.mubr.bf16.mxu0 %v684
  %867 = vmatmul.mubr.bf16.gmra.mxu0 %v139
  %v868 = vpop.f32.mrf.mxu0
  %v869 = vadd.f32 %v134, %v868
  %v870 = vpop.f32.mrf.mxu0
  %v871 = vadd.f32 %v134, %v870
  %v872 = vpop.f32.mrf.mxu0
  %v873 = vpop.f32.mrf.mxu0
  %874 = vdwg.mxu0
  %v875 = vmax.f32 %v746, 0.0
  %v876 = vmax.f32 %v748, 0.0
  %v877 = vmax.f32 %v787, 0.0
  %v878 = vmax.f32 %v789, 0.0
  %v879 = vmax.f32 %v828, 0.0
  %v880 = vmax.f32 %v830, 0.0
  %v881 = vmax.f32 %v869, 0.0
  %v882 = vmax.f32 %v871, 0.0
  %v883 = vadd.f32 %v875, %v876
  %v884 = vadd.f32 %v883, %v877
  %v885 = vadd.f32 %v884, %v878
  %v886 = vadd.f32 %v885, %v879
  %v887 = vadd.f32 %v886, %v880
  %v888 = vadd.f32 %v887, %v881
  %v889 = vadd.f32 %v888, %v882
  %890 = vadd.xlane.f32.xlu0 %v889
  %v891 = vpop.xlane.xlu0 %890
  %v892 = vmul.f32 %v891, 0.0009765625
  %v893 = vsub.f32 %v875, %v892
  %v894 = vsub.f32 %v876, %v892
  %v895 = vsub.f32 %v877, %v892
  %v896 = vsub.f32 %v878, %v892
  %v897 = vsub.f32 %v879, %v892
  %v898 = vsub.f32 %v880, %v892
  %v899 = vsub.f32 %v881, %v892
  %v900 = vsub.f32 %v882, %v892
  %v901 = vmul.f32 %v893, %v893
  %v902 = vmul.f32 %v894, %v894
  %v903 = vmul.f32 %v895, %v895
  %v904 = vmul.f32 %v896, %v896
  %v905 = vmul.f32 %v897, %v897
  %v906 = vmul.f32 %v898, %v898
  %v907 = vmul.f32 %v899, %v899
  %v908 = vmul.f32 %v900, %v900
  %v909 = vadd.f32 %v901, %v902
  %v910 = vadd.f32 %v909, %v903
  %v911 = vadd.f32 %v910, %v904
  %v912 = vadd.f32 %v911, %v905
  %v913 = vadd.f32 %v912, %v906
  %v914 = vadd.f32 %v913, %v907
  %v915 = vadd.f32 %v914, %v908
  %916 = vadd.xlane.f32.xlu0 %v915
  %v917 = vpop.xlane.xlu0 %916
  %v918 = vmul.f32 %v917, 0.0009765625
  %v919 = vadd.f32 %v918, 1e-05
  %v920 = vrsqrt.pop %v919
  %v921 = vmul.f32 %v893, %v920
  %v922 = vmul.f32 %v894, %v920
  %v923 = vmul.f32 %v895, %v920
  %v924 = vmul.f32 %v896, %v920
  %v925 = vmul.f32 %v897, %v920
  %v926 = vmul.f32 %v898, %v920
  %v927 = vmul.f32 %v899, %v920
  %v928 = vmul.f32 %v900, %v920
  %v929 = vld [vmem:[%s3] sm:$0xff]
  %931 = vset.pattern.permute.xlu0 0
  %932 = vperm.xlu0 %931, %v929
  %v933 = vpop.permute.xlu0 %932
  %v935 = vmul.f32 %v921, %v933
  %v936 = vmul.f32 %v922, %v933
  %v937 = vmul.f32 %v923, %v933
  %v938 = vmul.f32 %v924, %v933
  %v939 = vmul.f32 %v925, %v933
  %v940 = vmul.f32 %v926, %v933
  %v941 = vmul.f32 %v927, %v933
  %v942 = vmul.f32 %v928, %v933
  %v943 = vld [vmem:[%s4] sm:$0xff]
  %945 = vset.pattern.permute.xlu0 0
  %946 = vperm.xlu0 %945, %v943
  %v947 = vpop.permute.xlu0 %946
  %v949 = vadd.f32 %v935, %v947
  %v950 = vadd.f32 %v936, %v947
  %v951 = vadd.f32 %v937, %v947
  %v952 = vadd.f32 %v938, %v947
  %v953 = vadd.f32 %v939, %v947
  %v954 = vadd.f32 %v940, %v947
  %v955 = vadd.f32 %v941, %v947
  %v956 = vadd.f32 %v942, %v947
  %957 = vst [vmem:[%s5] sm:$0xff] %v949
  %958 = vst [vmem:[%s5 + $0x8] sm:$0xff] %v950
  %959 = vst [vmem:[%s5 + $0x10] sm:$0xff] %v951
  %960 = vst [vmem:[%s5 + $0x18] sm:$0xff] %v952
  %961 = vst [vmem:[%s5 + $0x20] sm:$0xff] %v953
  %962 = vst [vmem:[%s5 + $0x28] sm:$0xff] %v954
  %963 = vst [vmem:[%s5 + $0x30] sm:$0xff] %v955
  %964 = vst [vmem:[%s5 + $0x38] sm:$0xff] %v956
  // Predicated region
  $region22: #{_lambda_.6} parent=0 // pred_check
    _
  $region23: #{_lambda_.6} parent=0 // pred_check_branch
    %966 = sbr.rel (0) target = $region25
  $region24: #{_lambda_.6} parent=0 // pred_region
    _
  $region25: #{_lambda_.6} parent=0 // pred_fallthru
    _
  // Predicated region
  $region26: #{_lambda_.6} parent=0 // pred_check
    _
  $region27: #{_lambda_.6} parent=0 // pred_check_branch
    %968 = sbr.rel (0) target = $region29
  $region28: #{_lambda_.6} parent=0 // pred_region
    _
  $region29: #{_lambda_.6} parent=0 // pred_fallthru
    _

// kernel: _lambda_.7
$region0: #{_lambda_.7}
  #allocation0 [shape = 'u32[]', space=smem, size = 0x4, offset = 0x4, fixed_abs, tag = 'smem constant byte address 0x4 - core index']
  #allocation1 [shape = 'u32[144,128]{1,0:T(1,128)}', space=vmem, size = 0x12000, scoped, tag = 'internal scratch']
  %s0 = inlined_call_operand.vmem [shape: bf16[216,128], index: 0, kind: input, shape index: {}]
  %s1 = inlined_call_operand.vmem [shape: bf16[16,216], index: 1, kind: input, shape index: {}]
  %s2 = inlined_call_operand.vmem [shape: f32[16,1], index: 2, kind: input, shape index: {}, may-alias: {2,4}]
  %s3 = inlined_call_operand.vmem [shape: f32[16,1], index: 3, kind: input, shape index: {}]
  %s4 = inlined_call_operand.vmem [shape: f32[16,1], index: 4, kind: input, shape index: {}, may-alias: {2,4}]
  %s5 = inlined_call_operand.vmem [shape: f32[16,128], index: 5, kind: output, shape index: {}]
  %s6 = sld [smem:[#allocation0]]
  $region30: #{_lambda_.7} parent=0
    _
  %s8 = ssub.s32 1, %s6
  %s9 = scalar_select 0, %s8, %s6
  // Predicated region
  $region2: #{_lambda_.7} parent=0 // pred_check
    _
  $region3: #{_lambda_.7} parent=0 // pred_check_branch
    %11 = sbr.rel (0) target = $region5
  $region4: #{_lambda_.7} parent=0 // pred_region
    _
  $region5: #{_lambda_.7} parent=0 // pred_fallthru
    _
  // Predicated region
  $region6: #{_lambda_.7} parent=0 // pred_check
    _
  $region7: #{_lambda_.7} parent=0 // pred_check_branch
    %13 = sbr.rel (0) target = $region9
  $region8: #{_lambda_.7} parent=0 // pred_region
    _
  $region9: #{_lambda_.7} parent=0 // pred_fallthru
    _
  // Predicated region
  $region10: #{_lambda_.7} parent=0 // pred_check
    _
  $region11: #{_lambda_.7} parent=0 // pred_check_branch
    %15 = sbr.rel (0) target = $region13
  $region12: #{_lambda_.7} parent=0 // pred_region
    _
  $region13: #{_lambda_.7} parent=0 // pred_fallthru
    _
  // Predicated region
  $region14: #{_lambda_.7} parent=0 // pred_check
    _
  $region15: #{_lambda_.7} parent=0 // pred_check_branch
    %17 = sbr.rel (0) target = $region17
  $region16: #{_lambda_.7} parent=0 // pred_region
    _
  $region17: #{_lambda_.7} parent=0 // pred_fallthru
    _
  // Predicated region
  $region18: #{_lambda_.7} parent=0 // pred_check
    _
  $region19: #{_lambda_.7} parent=0 // pred_check_branch
    %19 = sbr.rel (0) target = $region21
  $region20: #{_lambda_.7} parent=0 // pred_region
    _
  $region21: #{_lambda_.7} parent=0 // pred_fallthru
    _
  %v21 = vld [vmem:[%s1] sm:$0xff]
  %v22 = vld [vmem:[%s1 + $0x8] sm:$0xff]
  %v23 = vld [vmem:[%s0] sm:$0xf]
  %v24 = vld [vmem:[%s0 + $0x4] sm:$0xf]
  %v25 = vld [vmem:[%s0 + $0x8] sm:$0xf]
  %v26 = vld [vmem:[%s0 + $0xc] sm:$0xf]
  %v27 = vld [vmem:[%s0 + $0x10] sm:$0xf]
  %v28 = vld [vmem:[%s0 + $0x14] sm:$0xf]
  %v29 = vld [vmem:[%s0 + $0x18] sm:$0xf]
  %v30 = vld [vmem:[%s0 + $0x1c] sm:$0xf]
  %v31 = vld [vmem:[%s0 + $0x20] sm:$0xf]
  %v32 = vld [vmem:[%s0 + $0x24] sm:$0xf]
  %v33 = vld [vmem:[%s0 + $0x28] sm:$0xf]
  %v34 = vld [vmem:[%s0 + $0x2c] sm:$0xf]
  %v35 = vld [vmem:[%s0 + $0x30] sm:$0xf]
  %v36 = vld [vmem:[%s0 + $0x34] sm:$0xf]
  %v37 = vld [vmem:[%s0 + $0x38] sm:$0xf]
  %v38 = vld [vmem:[%s0 + $0x3c] sm:$0xf]
  %v39 = vld [vmem:[%s0 + $0x40] sm:$0xf]
  %v40 = vld [vmem:[%s0 + $0x44] sm:$0xf]
  %v41 = vld [vmem:[%s0 + $0x48] sm:$0xf]
  %v42 = vld [vmem:[%s0 + $0x4c] sm:$0xf]
  %v43 = vld [vmem:[%s0 + $0x50] sm:$0xf]
  %v44 = vld [vmem:[%s0 + $0x54] sm:$0xf]
  %v45 = vld [vmem:[%s0 + $0x58] sm:$0xf]
  %v46 = vld [vmem:[%s0 + $0x5c] sm:$0xf]
  %v47 = vld [vmem:[%s0 + $0x60] sm:$0xf]
  %v48 = vld [vmem:[%s0 + $0x64] sm:$0xf]
  %v49 = vld [vmem:[%s0 + $0x68] sm:$0xf]
  %v50 = vld [vmem:[%s2] sm:$0xff]
  %v51 = vld [vmem:[%s2 + $0x8] sm:$0xff]
  %53 = vset.pattern.permute.xlu0 0
  %54 = vperm.xlu0 %53, %v50
  %v55 = vpop.permute.xlu0 %54
  %58 = vset.pattern.permute.xlu0 0
  %59 = vperm.xlu0 %58, %v51
  %v60 = vpop.permute.xlu0 %59
  %v64 = vunpack.c.l.b16 %v21
  %v65 = vunpack.c.h.b16 %v21
  %v66 = vunpack.c.l.b16 %v22
  %v67 = vunpack.c.h.b16 %v22
  %v68 = vpack.c.b16 %v66, %v64
  %v69 = vpack.c.b16 %v67, %v65
  %v98 = vunpack.c.l.b16 %v23
  %v99 = vunpack.c.l.b16 %v24
  %v100 = vunpack.c.l.b16 %v25
  %v101 = vunpack.c.l.b16 %v26
  %v102 = vunpack.c.l.b16 %v27
  %v103 = vunpack.c.l.b16 %v28
  %v104 = vunpack.c.l.b16 %v29
  %v105 = vunpack.c.l.b16 %v30
  %v106 = vunpack.c.l.b16 %v31
  %v107 = vunpack.c.l.b16 %v32
  %v108 = vunpack.c.l.b16 %v33
  %v109 = vunpack.c.l.b16 %v34
  %v110 = vunpack.c.l.b16 %v35
  %v111 = vunpack.c.l.b16 %v36
  %v112 = vunpack.c.l.b16 %v37
  %v113 = vunpack.c.l.b16 %v38
  %v114 = vunpack.c.l.b16 %v39
  %v115 = vunpack.c.l.b16 %v40
  %v116 = vunpack.c.l.b16 %v41
  %v117 = vunpack.c.l.b16 %v42
  %v118 = vunpack.c.l.b16 %v43
  %v119 = vunpack.c.l.b16 %v44
  %v120 = vunpack.c.l.b16 %v45
  %v121 = vunpack.c.l.b16 %v46
  %v122 = vunpack.c.l.b16 %v47
  %v123 = vunpack.c.l.b16 %v48
  %v124 = vunpack.c.l.b16 %v49
  %v125 = vpack.c.b16 %v99, %v98
  %v126 = vpack.c.b16 %v101, %v100
  %v127 = vpack.c.b16 %v103, %v102
  %v128 = vpack.c.b16 %v105, %v104
  %v129 = vpack.c.b16 %v107, %v106
  %v130 = vpack.c.b16 %v109, %v108
  %v131 = vpack.c.b16 %v111, %v110
  %v132 = vpack.c.b16 %v113, %v112
  %v133 = vpack.c.b16 %v115, %v114
  %v134 = vpack.c.b16 %v117, %v116
  %v135 = vpack.c.b16 %v119, %v118
  %v136 = vpack.c.b16 %v121, %v120
  %v137 = vpack.c.b16 %v123, %v122
  %v138 = vpack.c.b16 %v124, %v124
  %vm152 = vcmask 719872
  %v154 = vsel %vm152, %v69, 0
  %vm156 = vcmask 1043456
  %v158 = vsel %vm156, %v138, 0
  %160 = vmatprep.subr.bf16.mxu0 0
  %161 = vmatpush1.bf16.msra.mxu0 %v132
  %162 = vmatprep.subr.bf16.mxu0 0
  %163 = vmatpush1.bf16.msra.mxu0 %v131
  %164 = vmatprep.subr.bf16.mxu0 0
  %165 = vmatpush1.bf16.msra.mxu0 %v130
  %166 = vmatprep.subr.bf16.mxu0 0
  %167 = vmatpush1.bf16.msra.mxu0 %v129
  %168 = vmatprep.subr.bf16.mxu0 0
  %169 = vmatpush1.bf16.msra.mxu0 %v128
  %170 = vmatprep.subr.bf16.mxu0 0
  %171 = vmatpush1.bf16.msra.mxu0 %v127
  %172 = vmatprep.subr.bf16.mxu0 0
  %173 = vmatpush1.bf16.msra.mxu0 %v126
  %174 = vmatprep.subr.bf16.mxu0 0
  %175 = vmatpush1.bf16.msra.mxu0 %v125
  %176 = vmatprep.subr.bf16.mxu0 0
  %177 = vmatpush2.bf16.msra.mxu0 0
  %178 = vmatprep.subr.bf16.mxu0 0
  %179 = vmatpush2.bf16.msra.mxu0 0
  %180 = vmatprep.subr.bf16.mxu0 0
  %181 = vmatpush2.bf16.msra.mxu0 %v158
  %182 = vmatprep.subr.bf16.mxu0 0
  %183 = vmatpush2.bf16.msra.mxu0 %v137
  %184 = vmatprep.subr.bf16.mxu0 0
  %185 = vmatpush2.bf16.msra.mxu0 %v136
  %186 = vmatprep.subr.bf16.mxu0 0
  %187 = vmatpush2.bf16.msra.mxu0 %v135
  %188 = vmatprep.subr.bf16.mxu0 0
  %189 = vmatpush2.bf16.msra.mxu0 %v134
  %190 = vmatprep.subr.bf16.mxu0 0
  %191 = vmatpush2.bf16.msra.mxu0 %v133
  %192 = vmatprep.mubr.bf16.mxu0 %v154
  %193 = vmatmul.mubr.bf16.gmra.mxu0 %v68
  %v194 = vpop.f32.mrf.mxu0
  %v195 = vadd.f32 %v55, %v194
  %v196 = vpop.f32.mrf.mxu0
  %v197 = vpop.f32.mrf.mxu0
  %v198 = vadd.f32 %v60, %v197
  %v199 = vpop.f32.mrf.mxu0
  %200 = vdwg.mxu0
  %v201 = vmax.f32 %v195, 0.0
  %v202 = vmax.f32 %v198, 0.0
  %203 = vadd.xlane.f32.xlu0 %v201
  %v204 = vpop.xlane.xlu0 %203
  %205 = vadd.xlane.f32.xlu0 %v202
  %v206 = vpop.xlane.xlu0 %205
  %v207 = vmul.f32 %v204, 0.0078125
  %v208 = vmul.f32 %v206, 0.0078125
  %v209 = vsub.f32 %v201, %v207
  %v210 = vsub.f32 %v202, %v208
  %v211 = vmul.f32 %v209, %v209
  %v212 = vmul.f32 %v210, %v210
  %213 = vadd.xlane.f32.xlu0 %v211
  %v214 = vpop.xlane.xlu0 %213
  %215 = vadd.xlane.f32.xlu0 %v212
  %v216 = vpop.xlane.xlu0 %215
  %v217 = vmul.f32 %v214, 0.0078125
  %v218 = vmul.f32 %v216, 0.0078125
  %v219 = vadd.f32 %v217, 1e-05
  %v220 = vadd.f32 %v218, 1e-05
  %v221 = vrsqrt.pop %v219
  %v222 = vrsqrt.pop %v220
  %v223 = vmul.f32 %v209, %v221
  %v224 = vmul.f32 %v210, %v222
  %v225 = vld [vmem:[%s3] sm:$0xff]
  %v226 = vld [vmem:[%s3 + $0x8] sm:$0xff]
  %228 = vset.pattern.permute.xlu0 0
  %229 = vperm.xlu0 %228, %v225
  %v230 = vpop.permute.xlu0 %229
  %233 = vset.pattern.permute.xlu0 0
  %234 = vperm.xlu0 %233, %v226
  %v235 = vpop.permute.xlu0 %234
  %v237 = vmul.f32 %v223, %v230
  %v238 = vmul.f32 %v224, %v235
  %v239 = vld [vmem:[%s4] sm:$0xff]
  %v240 = vld [vmem:[%s4 + $0x8] sm:$0xff]
  %242 = vset.pattern.permute.xlu0 0
  %243 = vperm.xlu0 %242, %v239
  %v244 = vpop.permute.xlu0 %243
  %247 = vset.pattern.permute.xlu0 0
  %248 = vperm.xlu0 %247, %v240
  %v249 = vpop.permute.xlu0 %248
  %v251 = vadd.f32 %v237, %v244
  %v252 = vadd.f32 %v238, %v249
  %253 = vst [vmem:[%s5] sm:$0xff] %v251
  %254 = vst [vmem:[%s5 + $0x8] sm:$0xff] %v252
  // Predicated region
  $region22: #{_lambda_.7} parent=0 // pred_check
    _
  $region23: #{_lambda_.7} parent=0 // pred_check_branch
    %256 = sbr.rel (0) target = $region25
  $region24: #{_lambda_.7} parent=0 // pred_region
    _
  $region25: #{_lambda_.7} parent=0 // pred_fallthru
    _
  // Predicated region
  $region26: #{_lambda_.7} parent=0 // pred_check
    _
  $region27: #{_lambda_.7} parent=0 // pred_check_branch
    %258 = sbr.rel (0) target = $region29
  $region28: #{_lambda_.7} parent=0 // pred_region
    _
  $region29: #{_lambda_.7} parent=0 // pred_fallthru
    _

// kernel: _lambda_.8
$region0: #{_lambda_.8}
  #allocation0 [shape = 'u32[]', space=smem, size = 0x4, offset = 0x4, fixed_abs, tag = 'smem constant byte address 0x4 - core index']
  #allocation1 [shape = 'u32[144,128]{1,0:T(1,128)}', space=vmem, size = 0x12000, scoped, tag = 'internal scratch']
  %s0 = inlined_call_operand.vmem [shape: bf16[432,16], index: 0, kind: input, shape index: {}]
  %s1 = inlined_call_operand.vmem [shape: bf16[16,432], index: 1, kind: input, shape index: {}]
  %s2 = inlined_call_operand.vmem [shape: f32[16,1], index: 2, kind: input, shape index: {}, may-alias: {2,4}]
  %s3 = inlined_call_operand.vmem [shape: f32[16,1], index: 3, kind: input, shape index: {}]
  %s4 = inlined_call_operand.vmem [shape: f32[16,1], index: 4, kind: input, shape index: {}, may-alias: {2,4}]
  %s5 = inlined_call_operand.vmem [shape: f32[16,16], index: 5, kind: output, shape index: {}]
  %s6 = sld [smem:[#allocation0]]
  $region30: #{_lambda_.8} parent=0
    _
  %s8 = ssub.s32 1, %s6
  %s9 = scalar_select 0, %s8, %s6
  // Predicated region
  $region2: #{_lambda_.8} parent=0 // pred_check
    _
  $region3: #{_lambda_.8} parent=0 // pred_check_branch
    %11 = sbr.rel (0) target = $region5
  $region4: #{_lambda_.8} parent=0 // pred_region
    _
  $region5: #{_lambda_.8} parent=0 // pred_fallthru
    _
  // Predicated region
  $region6: #{_lambda_.8} parent=0 // pred_check
    _
  $region7: #{_lambda_.8} parent=0 // pred_check_branch
    %13 = sbr.rel (0) target = $region9
  $region8: #{_lambda_.8} parent=0 // pred_region
    _
  $region9: #{_lambda_.8} parent=0 // pred_fallthru
    _
  // Predicated region
  $region10: #{_lambda_.8} parent=0 // pred_check
    _
  $region11: #{_lambda_.8} parent=0 // pred_check_branch
    %15 = sbr.rel (0) target = $region13
  $region12: #{_lambda_.8} parent=0 // pred_region
    _
  $region13: #{_lambda_.8} parent=0 // pred_fallthru
    _
  // Predicated region
  $region14: #{_lambda_.8} parent=0 // pred_check
    _
  $region15: #{_lambda_.8} parent=0 // pred_check_branch
    %17 = sbr.rel (0) target = $region17
  $region16: #{_lambda_.8} parent=0 // pred_region
    _
  $region17: #{_lambda_.8} parent=0 // pred_fallthru
    _
  // Predicated region
  $region18: #{_lambda_.8} parent=0 // pred_check
    _
  $region19: #{_lambda_.8} parent=0 // pred_check_branch
    %19 = sbr.rel (0) target = $region21
  $region20: #{_lambda_.8} parent=0 // pred_region
    _
  $region21: #{_lambda_.8} parent=0 // pred_fallthru
    _
  %v21 = vld [vmem:[%s1] sm:$0xff]
  %v22 = vld [vmem:[%s1 + $0x8] sm:$0xff]
  %v23 = vld [vmem:[%s1 + $0x10] sm:$0xff]
  %v24 = vld [vmem:[%s1 + $0x18] sm:$0xff]
  %v25 = vld [vmem:[%s0] sm:$0xf]
  %v26 = vld [vmem:[%s0 + $0x4] sm:$0xf]
  %v27 = vld [vmem:[%s0 + $0x8] sm:$0xf]
  %v28 = vld [vmem:[%s0 + $0xc] sm:$0xf]
  %v29 = vld [vmem:[%s0 + $0x10] sm:$0xf]
  %v30 = vld [vmem:[%s0 + $0x14] sm:$0xf]
  %v31 = vld [vmem:[%s0 + $0x18] sm:$0xf]
  %v32 = vld [vmem:[%s0 + $0x1c] sm:$0xf]
  %v33 = vld [vmem:[%s0 + $0x20] sm:$0xf]
  %v34 = vld [vmem:[%s0 + $0x24] sm:$0xf]
  %v35 = vld [vmem:[%s0 + $0x28] sm:$0xf]
  %v36 = vld [vmem:[%s0 + $0x2c] sm:$0xf]
  %v37 = vld [vmem:[%s0 + $0x30] sm:$0xf]
  %v38 = vld [vmem:[%s0 + $0x34] sm:$0xf]
  %v39 = vld [vmem:[%s0 + $0x38] sm:$0xf]
  %v40 = vld [vmem:[%s0 + $0x3c] sm:$0xf]
  %v41 = vld [vmem:[%s0 + $0x40] sm:$0xf]
  %v42 = vld [vmem:[%s0 + $0x44] sm:$0xf]
  %v43 = vld [vmem:[%s0 + $0x48] sm:$0xf]
  %v44 = vld [vmem:[%s0 + $0x4c] sm:$0xf]
  %v45 = vld [vmem:[%s0 + $0x50] sm:$0xf]
  %v46 = vld [vmem:[%s0 + $0x54] sm:$0xf]
  %v47 = vld [vmem:[%s0 + $0x58] sm:$0xf]
  %v48 = vld [vmem:[%s0 + $0x5c] sm:$0xf]
  %v49 = vld [vmem:[%s0 + $0x60] sm:$0xf]
  %v50 = vld [vmem:[%s0 + $0x64] sm:$0xf]
  %v51 = vld [vmem:[%s0 + $0x68] sm:$0xf]
  %v52 = vld [vmem:[%s0 + $0x6c] sm:$0xf]
  %v53 = vld [vmem:[%s0 + $0x70] sm:$0xf]
  %v54 = vld [vmem:[%s0 + $0x74] sm:$0xf]
  %v55 = vld [vmem:[%s0 + $0x78] sm:$0xf]
  %v56 = vld [vmem:[%s0 + $0x7c] sm:$0xf]
  %v57 = vld [vmem:[%s0 + $0x80] sm:$0xf]
  %v58 = vld [vmem:[%s0 + $0x84] sm:$0xf]
  %v59 = vld [vmem:[%s0 + $0x88] sm:$0xf]
  %v60 = vld [vmem:[%s0 + $0x8c] sm:$0xf]
  %v61 = vld [vmem:[%s0 + $0x90] sm:$0xf]
  %v62 = vld [vmem:[%s0 + $0x94] sm:$0xf]
  %v63 = vld [vmem:[%s0 + $0x98] sm:$0xf]
  %v64 = vld [vmem:[%s0 + $0x9c] sm:$0xf]
  %v65 = vld [vmem:[%s0 + $0xa0] sm:$0xf]
  %v66 = vld [vmem:[%s0 + $0xa4] sm:$0xf]
  %v67 = vld [vmem:[%s0 + $0xa8] sm:$0xf]
  %v68 = vld [vmem:[%s0 + $0xac] sm:$0xf]
  %v69 = vld [vmem:[%s0 + $0xb0] sm:$0xf]
  %v70 = vld [vmem:[%s0 + $0xb4] sm:$0xf]
  %v71 = vld [vmem:[%s0 + $0xb8] sm:$0xf]
  %v72 = vld [vmem:[%s0 + $0xbc] sm:$0xf]
  %v73 = vld [vmem:[%s0 + $0xc0] sm:$0xf]
  %v74 = vld [vmem:[%s0 + $0xc4] sm:$0xf]
  %v75 = vld [vmem:[%s0 + $0xc8] sm:$0xf]
  %v76 = vld [vmem:[%s0 + $0xcc] sm:$0xf]
  %v77 = vld [vmem:[%s0 + $0xd0] sm:$0xf]
  %v78 = vld [vmem:[%s0 + $0xd4] sm:$0xf]
  %v79 = vld [vmem:[%s2] sm:$0xff]
  %v80 = vld [vmem:[%s2 + $0x8] sm:$0xff]
  %82 = vset.pattern.permute.xlu0 0
  %83 = vperm.xlu0 %82, %v79
  %v84 = vpop.permute.xlu0 %83
  %87 = vset.pattern.permute.xlu0 0
  %88 = vperm.xlu0 %87, %v80
  %v89 = vpop.permute.xlu0 %88
  %v95 = vunpack.c.l.b16 %v21
  %v96 = vunpack.c.h.b16 %v21
  %v97 = vunpack.c.l.b16 %v22
  %v98 = vunpack.c.h.b16 %v22
  %v99 = vunpack.c.l.b16 %v23
  %v100 = vunpack.c.h.b16 %v23
  %v101 = vunpack.c.l.b16 %v24
  %v102 = vunpack.c.h.b16 %v24
  %v103 = vpack.c.b16 %v99, %v95
  %v104 = vpack.c.b16 %v100, %v96
  %v105 = vpack.c.b16 %v101, %v97
  %v106 = vpack.c.b16 %v102, %v98
  %v164 = vunpack.c.l.b16 %v25
  %v165 = vunpack.c.l.b16 %v26
  %v166 = vunpack.c.l.b16 %v27
  %v167 = vunpack.c.l.b16 %v28
  %v168 = vunpack.c.l.b16 %v29
  %v169 = vunpack.c.l.b16 %v30
  %v170 = vunpack.c.l.b16 %v31
  %v171 = vunpack.c.l.b16 %v32
  %v172 = vunpack.c.l.b16 %v33
  %v173 = vunpack.c.l.b16 %v34
  %v174 = vunpack.c.l.b16 %v35
  %v175 = vunpack.c.l.b16 %v36
  %v176 = vunpack.c.l.b16 %v37
  %v177 = vunpack.c.l.b16 %v38
  %v178 = vunpack.c.l.b16 %v39
  %v179 = vunpack.c.l.b16 %v40
  %v180 = vunpack.c.l.b16 %v41
  %v181 = vunpack.c.l.b16 %v42
  %v182 = vunpack.c.l.b16 %v43
  %v183 = vunpack.c.l.b16 %v44
  %v184 = vunpack.c.l.b16 %v45
  %v185 = vunpack.c.l.b16 %v46
  %v186 = vunpack.c.l.b16 %v47
  %v187 = vunpack.c.l.b16 %v48
  %v188 = vunpack.c.l.b16 %v49
  %v189 = vunpack.c.l.b16 %v50
  %v190 = vunpack.c.l.b16 %v51
  %v191 = vunpack.c.l.b16 %v52
  %v192 = vunpack.c.l.b16 %v53
  %v193 = vunpack.c.l.b16 %v54
  %v194 = vunpack.c.l.b16 %v55
  %v195 = vunpack.c.l.b16 %v56
  %v196 = vunpack.c.l.b16 %v57
  %v197 = vunpack.c.l.b16 %v58
  %v198 = vunpack.c.l.b16 %v59
  %v199 = vunpack.c.l.b16 %v60
  %v200 = vunpack.c.l.b16 %v61
  %v201 = vunpack.c.l.b16 %v62
  %v202 = vunpack.c.l.b16 %v63
  %v203 = vunpack.c.l.b16 %v64
  %v204 = vunpack.c.l.b16 %v65
  %v205 = vunpack.c.l.b16 %v66
  %v206 = vunpack.c.l.b16 %v67
  %v207 = vunpack.c.l.b16 %v68
  %v208 = vunpack.c.l.b16 %v69
  %v209 = vunpack.c.l.b16 %v70
  %v210 = vunpack.c.l.b16 %v71
  %v211 = vunpack.c.l.b16 %v72
  %v212 = vunpack.c.l.b16 %v73
  %v213 = vunpack.c.l.b16 %v74
  %v214 = vunpack.c.l.b16 %v75
  %v215 = vunpack.c.l.b16 %v76
  %v216 = vunpack.c.l.b16 %v77
  %v217 = vunpack.c.l.b16 %v78
  %v218 = vpack.c.b16 %v165, %v164
  %v219 = vpack.c.b16 %v167, %v166
  %v220 = vpack.c.b16 %v169, %v168
  %v221 = vpack.c.b16 %v171, %v170
  %v222 = vpack.c.b16 %v173, %v172
  %v223 = vpack.c.b16 %v175, %v174
  %v224 = vpack.c.b16 %v177, %v176
  %v225 = vpack.c.b16 %v179, %v178
  %v226 = vpack.c.b16 %v181, %v180
  %v227 = vpack.c.b16 %v183, %v182
  %v228 = vpack.c.b16 %v185, %v184
  %v229 = vpack.c.b16 %v187, %v186
  %v230 = vpack.c.b16 %v189, %v188
  %v231 = vpack.c.b16 %v191, %v190
  %v232 = vpack.c.b16 %v193, %v192
  %v233 = vpack.c.b16 %v195, %v194
  %v234 = vpack.c.b16 %v197, %v196
  %v235 = vpack.c.b16 %v199, %v198
  %v236 = vpack.c.b16 %v201, %v200
  %v237 = vpack.c.b16 %v203, %v202
  %v238 = vpack.c.b16 %v205, %v204
  %v239 = vpack.c.b16 %v207, %v206
  %v240 = vpack.c.b16 %v209, %v208
  %v241 = vpack.c.b16 %v211, %v210
  %v242 = vpack.c.b16 %v213, %v212
  %v243 = vpack.c.b16 %v215, %v214
  %v244 = vpack.c.b16 %v217, %v216
  %vm272 = vcmask 392192
  %v274 = vsel %vm272, %v106, 0
  %276 = vmatprep.subr.bf16.mxu0 0
  %277 = vmatpush1.bf16.msra.mxu0 %v225
  %278 = vmatprep.subr.bf16.mxu0 0
  %279 = vmatpush1.bf16.msra.mxu0 %v224
  %280 = vmatprep.subr.bf16.mxu0 0
  %281 = vmatpush1.bf16.msra.mxu0 %v223
  %282 = vmatprep.subr.bf16.mxu0 0
  %283 = vmatpush1.bf16.msra.mxu0 %v222
  %284 = vmatprep.subr.bf16.mxu0 0
  %285 = vmatpush1.bf16.msra.mxu0 %v221
  %286 = vmatprep.subr.bf16.mxu0 0
  %287 = vmatpush1.bf16.msra.mxu0 %v220
  %288 = vmatprep.subr.bf16.mxu0 0
  %289 = vmatpush1.bf16.msra.mxu0 %v219
  %290 = vmatprep.subr.bf16.mxu0 0
  %291 = vmatpush1.bf16.msra.mxu0 %v218
  %292 = vmatprep.subr.bf16.mxu0 0
  %293 = vmatpush2.bf16.msra.mxu0 %v233
  %294 = vmatprep.subr.bf16.mxu0 0
  %295 = vmatpush2.bf16.msra.mxu0 %v232
  %296 = vmatprep.subr.bf16.mxu0 0
  %297 = vmatpush2.bf16.msra.mxu0 %v231
  %298 = vmatprep.subr.bf16.mxu0 0
  %299 = vmatpush2.bf16.msra.mxu0 %v230
  %300 = vmatprep.subr.bf16.mxu0 0
  %301 = vmatpush2.bf16.msra.mxu0 %v229
  %302 = vmatprep.subr.bf16.mxu0 0
  %303 = vmatpush2.bf16.msra.mxu0 %v228
  %304 = vmatprep.subr.bf16.mxu0 0
  %305 = vmatpush2.bf16.msra.mxu0 %v227
  %306 = vmatprep.subr.bf16.mxu0 0
  %307 = vmatpush2.bf16.msra.mxu0 %v226
  %308 = vmatprep.mubr.bf16.mxu0 %v104
  %309 = vmatmul.mubr.bf16.gmra.mxu0 %v103
  %v310 = vpop.f32.mrf.mxu0
  %v311 = vadd.f32 %v84, %v310
  %v312 = vpop.f32.mrf.mxu0
  %v313 = vpop.f32.mrf.mxu0
  %v314 = vadd.f32 %v89, %v313
  %v315 = vpop.f32.mrf.mxu0
  %316 = vdwg.mxu0
  %317 = vmatprep.subr.bf16.mxu0 0
  %318 = vmatpush1.bf16.msra.mxu0 %v241
  %319 = vmatprep.subr.bf16.mxu0 0
  %320 = vmatpush1.bf16.msra.mxu0 %v240
  %321 = vmatprep.subr.bf16.mxu0 0
  %322 = vmatpush1.bf16.msra.mxu0 %v239
  %323 = vmatprep.subr.bf16.mxu0 0
  %324 = vmatpush1.bf16.msra.mxu0 %v238
  %325 = vmatprep.subr.bf16.mxu0 0
  %326 = vmatpush1.bf16.msra.mxu0 %v237
  %327 = vmatprep.subr.bf16.mxu0 0
  %328 = vmatpush1.bf16.msra.mxu0 %v236
  %329 = vmatprep.subr.bf16.mxu0 0
  %330 = vmatpush1.bf16.msra.mxu0 %v235
  %331 = vmatprep.subr.bf16.mxu0 0
  %332 = vmatpush1.bf16.msra.mxu0 %v234
  %333 = vmatprep.subr.bf16.mxu0 0
  %334 = vmatpush2.bf16.msra.mxu0 0
  %335 = vmatprep.subr.bf16.mxu0 0
  %336 = vmatpush2.bf16.msra.mxu0 0
  %337 = vmatprep.subr.bf16.mxu0 0
  %338 = vmatpush2.bf16.msra.mxu0 0
  %339 = vmatprep.subr.bf16.mxu0 0
  %340 = vmatpush2.bf16.msra.mxu0 0
  %341 = vmatprep.subr.bf16.mxu0 0
  %342 = vmatpush2.bf16.msra.mxu0 0
  %343 = vmatprep.subr.bf16.mxu0 0
  %344 = vmatpush2.bf16.msra.mxu0 %v244
  %345 = vmatprep.subr.bf16.mxu0 0
  %346 = vmatpush2.bf16.msra.mxu0 %v243
  %347 = vmatprep.subr.bf16.mxu0 0
  %348 = vmatpush2.bf16.msra.mxu0 %v242
  %349 = vmatprep.mubr.bf16.mxu0 %v274
  %350 = vmatmul.mubr.bf16.gmra.mxu0 %v105
  %v351 = vpop.f32.mrf.mxu0
  %v352 = vadd.f32 %v311, %v351
  %v353 = vpop.f32.mrf.mxu0
  %v354 = vpop.f32.mrf.mxu0
  %v355 = vadd.f32 %v314, %v354
  %v356 = vpop.f32.mrf.mxu0
  %357 = vdwg.mxu0
  %v358 = vmax.f32 %v352, 0.0
  %v359 = vmax.f32 %v355, 0.0
  %vm360 = vcmask 130048
  %v361 = vsel %vm360, %v358, 0.0
  %362 = vadd.xlane.f32.xlu0 %v361
  %v363 = vpop.xlane.xlu0 %362
  %v364 = vsel %vm360, %v359, 0.0
  %365 = vadd.xlane.f32.xlu0 %v364
  %v366 = vpop.xlane.xlu0 %365
  %v367 = vmul.f32 %v363, 0.0625
  %v368 = vmul.f32 %v366, 0.0625
  %v369 = vsub.f32 %v358, %v367
  %v370 = vsub.f32 %v359, %v368
  %v371 = vmul.f32 %v369, %v369
  %v372 = vmul.f32 %v370, %v370
  %v373 = vsel %vm360, %v371, 0.0
  %374 = vadd.xlane.f32.xlu0 %v373
  %v375 = vpop.xlane.xlu0 %374
  %v376 = vsel %vm360, %v372, 0.0
  %377 = vadd.xlane.f32.xlu0 %v376
  %v378 = vpop.xlane.xlu0 %377
  %v379 = vmul.f32 %v375, 0.0625
  %v380 = vmul.f32 %v378, 0.0625
  %v381 = vadd.f32 %v379, 1e-05
  %v382 = vadd.f32 %v380, 1e-05
  %v383 = vrsqrt.pop %v381
  %v384 = vrsqrt.pop %v382
  %v385 = vmul.f32 %v369, %v383
  %v386 = vmul.f32 %v370, %v384
  %v387 = vld [vmem:[%s3] sm:$0xff]
  %v388 = vld [vmem:[%s3 + $0x8] sm:$0xff]
  %390 = vset.pattern.permute.xlu0 0
  %391 = vperm.xlu0 %390, %v387
  %v392 = vpop.permute.xlu0 %391
  %395 = vset.pattern.permute.xlu0 0
  %396 = vperm.xlu0 %395, %v388
  %v397 = vpop.permute.xlu0 %396
  %v399 = vmul.f32 %v385, %v392
  %v400 = vmul.f32 %v386, %v397
  %v401 = vld [vmem:[%s4] sm:$0xff]
  %v402 = vld [vmem:[%s4 + $0x8] sm:$0xff]
  %404 = vset.pattern.permute.xlu0 0
  %405 = vperm.xlu0 %404, %v401
  %v406 = vpop.permute.xlu0 %405
  %409 = vset.pattern.permute.xlu0 0
  %410 = vperm.xlu0 %409, %v402
  %v411 = vpop.permute.xlu0 %410
  %v413 = vadd.f32 %v399, %v406
  %v414 = vadd.f32 %v400, %v411
  %415 = vst.msk [vmem:[%s5] sm:$0xff] %vm360, %v413
  %416 = vst.msk [vmem:[%s5 + $0x8] sm:$0xff] %vm360, %v414
  // Predicated region
  $region22: #{_lambda_.8} parent=0 // pred_check
    _
  $region23: #{_lambda_.8} parent=0 // pred_check_branch
    %418 = sbr.rel (0) target = $region25
  $region24: #{_lambda_.8} parent=0 // pred_region
    _
  $region25: #{_lambda_.8} parent=0 // pred_fallthru
    _
  // Predicated region
  $region26: #{_lambda_.8} parent=0 // pred_check
    _
  $region27: #{_lambda_.8} parent=0 // pred_check_branch
    %420 = sbr.rel (0) target = $region29
  $region28: #{_lambda_.8} parent=0 // pred_region
    _
  $region29: #{_lambda_.8} parent=0 // pred_fallthru
    _

// kernel: _lambda_.9
$region0: #{_lambda_.9}
  #allocation0 [shape = 'u32[]', space=smem, size = 0x4, offset = 0x4, fixed_abs, tag = 'smem constant byte address 0x4 - core index']
  #allocation1 [shape = 'u32[144,128]{1,0:T(1,128)}', space=vmem, size = 0x12000, scoped, tag = 'internal scratch']
  %s0 = inlined_call_operand.vmem [shape: f32[2,128], index: 0, kind: input, shape index: {}]
  %s1 = inlined_call_operand.vmem [shape: f32[128,128], index: 1, kind: input, shape index: {}]
  %s2 = inlined_call_operand.vmem [shape: f32[1,128], index: 2, kind: input, shape index: {}]
  %s3 = inlined_call_operand.vmem [shape: f32[128,128], index: 3, kind: input, shape index: {}]
  %s4 = inlined_call_operand.vmem [shape: f32[1,128], index: 4, kind: input, shape index: {}]
  %s5 = inlined_call_operand.vmem [shape: f32[128,128], index: 5, kind: input, shape index: {}]
  %s6 = inlined_call_operand.vmem [shape: f32[1,128], index: 6, kind: input, shape index: {}]
  %s7 = inlined_call_operand.vmem [shape: f32[128,2], index: 7, kind: input, shape index: {}]
  %s8 = inlined_call_operand.vmem [shape: f32[1,2], index: 8, kind: input, shape index: {}]
  %s9 = inlined_call_operand.hbm [shape: f32[2,2], index: 9, kind: output, shape index: {}]
  %s10 = sld [smem:[#allocation0]]
  $region46: #{_lambda_.9} parent=0
    _
  %s12 = ssub.s32 1, %s10
  %s13 = scalar_select 0, %s12, %s10
  $region1: #{_lambda_.9} parent=0
    #allocation2 [shape = 'u8[1024]{0}', space=vmem, size = 0x400, scoped, tag = 'output window, operand 0, single buffered']
    #allocation3 [shape = 's32[1]{0}', space=sflag, size = 0x4, scoped, tag = 'scoped memory for _lambda_.9']
    %14 = vsyncpa [#allocation3], 0
    // Predicated region
    $region2: #{_lambda_.9} parent=1 // pred_check
      _
    $region3: #{_lambda_.9} parent=1 // pred_check_branch
      %16 = sbr.rel (0) target = $region5
    $region4: #{_lambda_.9} parent=1 // pred_region
      _
    $region5: #{_lambda_.9} parent=1 // pred_fallthru
      _
    // Predicated region
    $region6: #{_lambda_.9} parent=1 // pred_check
      _
    $region7: #{_lambda_.9} parent=1 // pred_check_branch
      %18 = sbr.rel (0) target = $region9
    $region8: #{_lambda_.9} parent=1 // pred_region
      _
    $region9: #{_lambda_.9} parent=1 // pred_fallthru
      _
    // Predicated region
    $region10: #{_lambda_.9} parent=1 // pred_check
      _
    $region11: #{_lambda_.9} parent=1 // pred_check_branch
      %20 = sbr.rel (0) target = $region13
    $region12: #{_lambda_.9} parent=1 // pred_region
      _
    $region13: #{_lambda_.9} parent=1 // pred_fallthru
      _
    // Predicated region
    $region14: #{_lambda_.9} parent=1 // pred_check
      _
    $region15: #{_lambda_.9} parent=1 // pred_check_branch
      %22 = sbr.rel (0) target = $region17
    $region16: #{_lambda_.9} parent=1 // pred_region
      _
    $region17: #{_lambda_.9} parent=1 // pred_fallthru
      _
    // Predicated region
    $region18: #{_lambda_.9} parent=1 // pred_check
      _
    $region19: #{_lambda_.9} parent=1 // pred_check_branch
      %24 = sbr.rel (0) target = $region21
    $region20: #{_lambda_.9} parent=1 // pred_region
      _
    $region21: #{_lambda_.9} parent=1 // pred_fallthru
      _
    // Predicated region
    $region22: #{_lambda_.9} parent=1 // pred_check
      _
    $region23: #{_lambda_.9} parent=1 // pred_check_branch
      %26 = sbr.rel (0) target = $region25
    $region24: #{_lambda_.9} parent=1 // pred_region
      _
    $region25: #{_lambda_.9} parent=1 // pred_fallthru
      _
    // Predicated region
    $region26: #{_lambda_.9} parent=1 // pred_check
      _
    $region27: #{_lambda_.9} parent=1 // pred_check_branch
      %28 = sbr.rel (0) target = $region29
    $region28: #{_lambda_.9} parent=1 // pred_region
      _
    $region29: #{_lambda_.9} parent=1 // pred_fallthru
      _
    // Predicated region
    $region30: #{_lambda_.9} parent=1 // pred_check
      _
    $region31: #{_lambda_.9} parent=1 // pred_check_branch
      %30 = sbr.rel (0) target = $region33
    $region32: #{_lambda_.9} parent=1 // pred_region
      _
    $region33: #{_lambda_.9} parent=1 // pred_fallthru
      _
    // Predicated region
    $region34: #{_lambda_.9} parent=1 // pred_check
      _
    $region35: #{_lambda_.9} parent=1 // pred_check_branch
      %32 = sbr.rel (0) target = $region37
    $region36: #{_lambda_.9} parent=1 // pred_region
      _
    $region37: #{_lambda_.9} parent=1 // pred_fallthru
      _
    %v33 = vld [vmem:[%s0] sm:$0x3]
    %v34 = vld [vmem:[%s1] sm:$0xff]
    %v35 = vld [vmem:[%s1 + $0x8] sm:$0xff]
    %v36 = vld [vmem:[%s1 + $0x10] sm:$0xff]
    %v37 = vld [vmem:[%s1 + $0x18] sm:$0xff]
    %v38 = vld [vmem:[%s1 + $0x20] sm:$0xff]
    %v39 = vld [vmem:[%s1 + $0x28] sm:$0xff]
    %v40 = vld [vmem:[%s1 + $0x30] sm:$0xff]
    %v41 = vld [vmem:[%s1 + $0x38] sm:$0xff]
    %v42 = vld [vmem:[%s1 + $0x40] sm:$0xff]
    %v43 = vld [vmem:[%s1 + $0x48] sm:$0xff]
    %v44 = vld [vmem:[%s1 + $0x50] sm:$0xff]
    %v45 = vld [vmem:[%s1 + $0x58] sm:$0xff]
    %v46 = vld [vmem:[%s1 + $0x60] sm:$0xff]
    %v47 = vld [vmem:[%s1 + $0x68] sm:$0xff]
    %v48 = vld [vmem:[%s1 + $0x70] sm:$0xff]
    %v49 = vld [vmem:[%s1 + $0x78] sm:$0xff]
    %v50 = vld [vmem:[%s2] sm:$0x1]
    %v52 = vlaneseq
    %v53 = vshrl.u32 %v52, 7
    %v54 = vsub.s32 0, %v53
    %v55 = vrot.slane %v50, %v54
    %57 = vmatprep.subr.mxu0 0.0
    %58 = vmatpush1.msra.mxu0 %v49
    %59 = vmatprep.subr.mxu0 0.0
    %60 = vmatpush1.msra.mxu0 %v48
    %61 = vmatprep.subr.mxu0 0.0
    %62 = vmatpush1.msra.mxu0 %v47
    %63 = vmatprep.subr.mxu0 0.0
    %64 = vmatpush1.msra.mxu0 %v46
    %65 = vmatprep.subr.mxu0 0.0
    %66 = vmatpush1.msra.mxu0 %v45
    %67 = vmatprep.subr.mxu0 0.0
    %68 = vmatpush1.msra.mxu0 %v44
    %69 = vmatprep.subr.mxu0 0.0
    %70 = vmatpush1.msra.mxu0 %v43
    %71 = vmatprep.subr.mxu0 0.0
    %72 = vmatpush1.msra.mxu0 %v42
    %73 = vmatprep.subr.mxu0 0.0
    %74 = vmatpush1.msra.mxu0 %v41
    %75 = vmatprep.subr.mxu0 0.0
    %76 = vmatpush1.msra.mxu0 %v40
    %77 = vmatprep.subr.mxu0 0.0
    %78 = vmatpush1.msra.mxu0 %v39
    %79 = vmatprep.subr.mxu0 0.0
    %80 = vmatpush1.msra.mxu0 %v38
    %81 = vmatprep.subr.mxu0 0.0
    %82 = vmatpush1.msra.mxu0 %v37
    %83 = vmatprep.subr.mxu0 0.0
    %84 = vmatpush1.msra.mxu0 %v36
    %85 = vmatprep.subr.mxu0 0.0
    %86 = vmatpush1.msra.mxu0 %v35
    %87 = vmatprep.subr.mxu0 0.0
    %88 = vmatpush1.msra.mxu0 %v34
    %89 = vmatprep.subr.mxu0 0.0
    %90 = vmatpush2.msra.mxu0 0.0
    %91 = vmatprep.subr.mxu0 0.0
    %92 = vmatpush2.msra.mxu0 0.0
    %93 = vmatprep.subr.mxu0 0.0
    %94 = vmatpush2.msra.mxu0 0.0
    %95 = vmatprep.subr.mxu0 0.0
    %96 = vmatpush2.msra.mxu0 0.0
    %97 = vmatprep.subr.mxu0 0.0
    %98 = vmatpush2.msra.mxu0 0.0
    %99 = vmatprep.subr.mxu0 0.0
    %100 = vmatpush2.msra.mxu0 0.0
    %101 = vmatprep.subr.mxu0 0.0
    %102 = vmatpush2.msra.mxu0 0.0
    %103 = vmatprep.subr.mxu0 0.0
    %104 = vmatpush2.msra.mxu0 0.0
    %105 = vmatprep.subr.mxu0 0.0
    %106 = vmatpush2.msra.mxu0 0.0
    %107 = vmatprep.subr.mxu0 0.0
    %108 = vmatpush2.msra.mxu0 0.0
    %109 = vmatprep.subr.mxu0 0.0
    %110 = vmatpush2.msra.mxu0 0.0
    %111 = vmatprep.subr.mxu0 0.0
    %112 = vmatpush2.msra.mxu0 0.0
    %113 = vmatprep.subr.mxu0 0.0
    %114 = vmatpush2.msra.mxu0 0.0
    %115 = vmatprep.subr.mxu0 0.0
    %116 = vmatpush2.msra.mxu0 0.0
    %117 = vmatprep.subr.mxu0 0.0
    %118 = vmatpush2.msra.mxu0 0.0
    %119 = vmatprep.subr.mxu0 0.0
    %120 = vmatpush2.msra.mxu0 0.0
    %121 = vmatprep.mubr.f32.mxu0 0.0
    %122 = vmatmul.mubr.f32.gmra.mxu0 %v33
    %v123 = vpop.f32.mrf.mxu0
    %v124 = vadd.f32 %v55, %v123
    %v125 = vpop.f32.mrf.mxu0
    %126 = vdwg.mxu0
    %v127 = vld [vmem:[%s3] sm:$0xff]
    %v128 = vld [vmem:[%s3 + $0x8] sm:$0xff]
    %v129 = vld [vmem:[%s3 + $0x10] sm:$0xff]
    %v130 = vld [vmem:[%s3 + $0x18] sm:$0xff]
    %v131 = vld [vmem:[%s3 + $0x20] sm:$0xff]
    %v132 = vld [vmem:[%s3 + $0x28] sm:$0xff]
    %v133 = vld [vmem:[%s3 + $0x30] sm:$0xff]
    %v134 = vld [vmem:[%s3 + $0x38] sm:$0xff]
    %v135 = vld [vmem:[%s3 + $0x40] sm:$0xff]
    %v136 = vld [vmem:[%s3 + $0x48] sm:$0xff]
    %v137 = vld [vmem:[%s3 + $0x50] sm:$0xff]
    %v138 = vld [vmem:[%s3 + $0x58] sm:$0xff]
    %v139 = vld [vmem:[%s3 + $0x60] sm:$0xff]
    %v140 = vld [vmem:[%s3 + $0x68] sm:$0xff]
    %v141 = vld [vmem:[%s3 + $0x70] sm:$0xff]
    %v142 = vld [vmem:[%s3 + $0x78] sm:$0xff]
    %v143 = vld [vmem:[%s4] sm:$0x1]
    %v145 = vlaneseq
    %v146 = vshrl.u32 %v145, 7
    %v147 = vsub.s32 0, %v146
    %v148 = vrot.slane %v143, %v147
    %150 = vmatprep.subr.mxu0 0.0
    %151 = vmatpush1.msra.mxu0 %v142
    %152 = vmatprep.subr.mxu0 0.0
    %153 = vmatpush1.msra.mxu0 %v141
    %154 = vmatprep.subr.mxu0 0.0
    %155 = vmatpush1.msra.mxu0 %v140
    %156 = vmatprep.subr.mxu0 0.0
    %157 = vmatpush1.msra.mxu0 %v139
    %158 = vmatprep.subr.mxu0 0.0
    %159 = vmatpush1.msra.mxu0 %v138
    %160 = vmatprep.subr.mxu0 0.0
    %161 = vmatpush1.msra.mxu0 %v137
    %162 = vmatprep.subr.mxu0 0.0
    %163 = vmatpush1.msra.mxu0 %v136
    %164 = vmatprep.subr.mxu0 0.0
    %165 = vmatpush1.msra.mxu0 %v135
    %166 = vmatprep.subr.mxu0 0.0
    %167 = vmatpush1.msra.mxu0 %v134
    %168 = vmatprep.subr.mxu0 0.0
    %169 = vmatpush1.msra.mxu0 %v133
    %170 = vmatprep.subr.mxu0 0.0
    %171 = vmatpush1.msra.mxu0 %v132
    %172 = vmatprep.subr.mxu0 0.0
    %173 = vmatpush1.msra.mxu0 %v131
    %174 = vmatprep.subr.mxu0 0.0
    %175 = vmatpush1.msra.mxu0 %v130
    %176 = vmatprep.subr.mxu0 0.0
    %177 = vmatpush1.msra.mxu0 %v129
    %178 = vmatprep.subr.mxu0 0.0
    %179 = vmatpush1.msra.mxu0 %v128
    %180 = vmatprep.subr.mxu0 0.0
    %181 = vmatpush1.msra.mxu0 %v127
    %182 = vmatprep.subr.mxu0 0.0
    %183 = vmatpush2.msra.mxu0 0.0
    %184 = vmatprep.subr.mxu0 0.0
    %185 = vmatpush2.msra.mxu0 0.0
    %186 = vmatprep.subr.mxu0 0.0
    %187 = vmatpush2.msra.mxu0 0.0
    %188 = vmatprep.subr.mxu0 0.0
    %189 = vmatpush2.msra.mxu0 0.0
    %190 = vmatprep.subr.mxu0 0.0
    %191 = vmatpush2.msra.mxu0 0.0
    %192 = vmatprep.subr.mxu0 0.0
    %193 = vmatpush2.msra.mxu0 0.0
    %194 = vmatprep.subr.mxu0 0.0
    %195 = vmatpush2.msra.mxu0 0.0
    %196 = vmatprep.subr.mxu0 0.0
    %197 = vmatpush2.msra.mxu0 0.0
    %198 = vmatprep.subr.mxu0 0.0
    %199 = vmatpush2.msra.mxu0 0.0
    %200 = vmatprep.subr.mxu0 0.0
    %201 = vmatpush2.msra.mxu0 0.0
    %202 = vmatprep.subr.mxu0 0.0
    %203 = vmatpush2.msra.mxu0 0.0
    %204 = vmatprep.subr.mxu0 0.0
    %205 = vmatpush2.msra.mxu0 0.0
    %206 = vmatprep.subr.mxu0 0.0
    %207 = vmatpush2.msra.mxu0 0.0
    %208 = vmatprep.subr.mxu0 0.0
    %209 = vmatpush2.msra.mxu0 0.0
    %210 = vmatprep.subr.mxu0 0.0
    %211 = vmatpush2.msra.mxu0 0.0
    %212 = vmatprep.subr.mxu0 0.0
    %213 = vmatpush2.msra.mxu0 0.0
    %214 = vmatprep.mubr.f32.mxu0 0.0
    %215 = vmatmul.mubr.f32.gmra.mxu0 %v124
    %v216 = vpop.f32.mrf.mxu0
    %v217 = vadd.f32 %v148, %v216
    %v218 = vpop.f32.mrf.mxu0
    %219 = vdwg.mxu0
    %v220 = vld [vmem:[%s5] sm:$0xff]
    %v221 = vld [vmem:[%s5 + $0x8] sm:$0xff]
    %v222 = vld [vmem:[%s5 + $0x10] sm:$0xff]
    %v223 = vld [vmem:[%s5 + $0x18] sm:$0xff]
    %v224 = vld [vmem:[%s5 + $0x20] sm:$0xff]
    %v225 = vld [vmem:[%s5 + $0x28] sm:$0xff]
    %v226 = vld [vmem:[%s5 + $0x30] sm:$0xff]
    %v227 = vld [vmem:[%s5 + $0x38] sm:$0xff]
    %v228 = vld [vmem:[%s5 + $0x40] sm:$0xff]
    %v229 = vld [vmem:[%s5 + $0x48] sm:$0xff]
    %v230 = vld [vmem:[%s5 + $0x50] sm:$0xff]
    %v231 = vld [vmem:[%s5 + $0x58] sm:$0xff]
    %v232 = vld [vmem:[%s5 + $0x60] sm:$0xff]
    %v233 = vld [vmem:[%s5 + $0x68] sm:$0xff]
    %v234 = vld [vmem:[%s5 + $0x70] sm:$0xff]
    %v235 = vld [vmem:[%s5 + $0x78] sm:$0xff]
    %v236 = vld [vmem:[%s6] sm:$0x1]
    %v238 = vlaneseq
    %v239 = vshrl.u32 %v238, 7
    %v240 = vsub.s32 0, %v239
    %v241 = vrot.slane %v236, %v240
    %243 = vmatprep.subr.mxu0 0.0
    %244 = vmatpush1.msra.mxu0 %v235
    %245 = vmatprep.subr.mxu0 0.0
    %246 = vmatpush1.msra.mxu0 %v234
    %247 = vmatprep.subr.mxu0 0.0
    %248 = vmatpush1.msra.mxu0 %v233
    %249 = vmatprep.subr.mxu0 0.0
    %250 = vmatpush1.msra.mxu0 %v232
    %251 = vmatprep.subr.mxu0 0.0
    %252 = vmatpush1.msra.mxu0 %v231
    %253 = vmatprep.subr.mxu0 0.0
    %254 = vmatpush1.msra.mxu0 %v230
    %255 = vmatprep.subr.mxu0 0.0
    %256 = vmatpush1.msra.mxu0 %v229
    %257 = vmatprep.subr.mxu0 0.0
    %258 = vmatpush1.msra.mxu0 %v228
    %259 = vmatprep.subr.mxu0 0.0
    %260 = vmatpush1.msra.mxu0 %v227
    %261 = vmatprep.subr.mxu0 0.0
    %262 = vmatpush1.msra.mxu0 %v226
    %263 = vmatprep.subr.mxu0 0.0
    %264 = vmatpush1.msra.mxu0 %v225
    %265 = vmatprep.subr.mxu0 0.0
    %266 = vmatpush1.msra.mxu0 %v224
    %267 = vmatprep.subr.mxu0 0.0
    %268 = vmatpush1.msra.mxu0 %v223
    %269 = vmatprep.subr.mxu0 0.0
    %270 = vmatpush1.msra.mxu0 %v222
    %271 = vmatprep.subr.mxu0 0.0
    %272 = vmatpush1.msra.mxu0 %v221
    %273 = vmatprep.subr.mxu0 0.0
    %274 = vmatpush1.msra.mxu0 %v220
    %275 = vmatprep.subr.mxu0 0.0
    %276 = vmatpush2.msra.mxu0 0.0
    %277 = vmatprep.subr.mxu0 0.0
    %278 = vmatpush2.msra.mxu0 0.0
    %279 = vmatprep.subr.mxu0 0.0
    %280 = vmatpush2.msra.mxu0 0.0
    %281 = vmatprep.subr.mxu0 0.0
    %282 = vmatpush2.msra.mxu0 0.0
    %283 = vmatprep.subr.mxu0 0.0
    %284 = vmatpush2.msra.mxu0 0.0
    %285 = vmatprep.subr.mxu0 0.0
    %286 = vmatpush2.msra.mxu0 0.0
    %287 = vmatprep.subr.mxu0 0.0
    %288 = vmatpush2.msra.mxu0 0.0
    %289 = vmatprep.subr.mxu0 0.0
    %290 = vmatpush2.msra.mxu0 0.0
    %291 = vmatprep.subr.mxu0 0.0
    %292 = vmatpush2.msra.mxu0 0.0
    %293 = vmatprep.subr.mxu0 0.0
    %294 = vmatpush2.msra.mxu0 0.0
    %295 = vmatprep.subr.mxu0 0.0
    %296 = vmatpush2.msra.mxu0 0.0
    %297 = vmatprep.subr.mxu0 0.0
    %298 = vmatpush2.msra.mxu0 0.0
    %299 = vmatprep.subr.mxu0 0.0
    %300 = vmatpush2.msra.mxu0 0.0
    %301 = vmatprep.subr.mxu0 0.0
    %302 = vmatpush2.msra.mxu0 0.0
    %303 = vmatprep.subr.mxu0 0.0
    %304 = vmatpush2.msra.mxu0 0.0
    %305 = vmatprep.subr.mxu0 0.0
    %306 = vmatpush2.msra.mxu0 0.0
    %307 = vmatprep.mubr.f32.mxu0 0.0
    %308 = vmatmul.mubr.f32.gmra.mxu0 %v217
    %v309 = vpop.f32.mrf.mxu0
    %v310 = vadd.f32 %v241, %v309
    %v311 = vpop.f32.mrf.mxu0
    %312 = vdwg.mxu0
    %v313 = vld [vmem:[%s7] sm:$0xff]
    %v314 = vld [vmem:[%s7 + $0x8] sm:$0xff]
    %v315 = vld [vmem:[%s7 + $0x10] sm:$0xff]
    %v316 = vld [vmem:[%s7 + $0x18] sm:$0xff]
    %v317 = vld [vmem:[%s7 + $0x20] sm:$0xff]
    %v318 = vld [vmem:[%s7 + $0x28] sm:$0xff]
    %v319 = vld [vmem:[%s7 + $0x30] sm:$0xff]
    %v320 = vld [vmem:[%s7 + $0x38] sm:$0xff]
    %v321 = vld [vmem:[%s7 + $0x40] sm:$0xff]
    %v322 = vld [vmem:[%s7 + $0x48] sm:$0xff]
    %v323 = vld [vmem:[%s7 + $0x50] sm:$0xff]
    %v324 = vld [vmem:[%s7 + $0x58] sm:$0xff]
    %v325 = vld [vmem:[%s7 + $0x60] sm:$0xff]
    %v326 = vld [vmem:[%s7 + $0x68] sm:$0xff]
    %v327 = vld [vmem:[%s7 + $0x70] sm:$0xff]
    %v328 = vld [vmem:[%s7 + $0x78] sm:$0xff]
    %v329 = vld [vmem:[%s8] sm:$0x1]
    %v331 = vlaneseq
    %v332 = vshrl.u32 %v331, 7
    %v333 = vsub.s32 0, %v332
    %v334 = vrot.slane %v329, %v333
    %336 = vmatprep.subr.mxu0 0.0
    %337 = vmatpush1.msra.mxu0 %v328
    %338 = vmatprep.subr.mxu0 0.0
    %339 = vmatpush1.msra.mxu0 %v327
    %340 = vmatprep.subr.mxu0 0.0
    %341 = vmatpush1.msra.mxu0 %v326
    %342 = vmatprep.subr.mxu0 0.0
    %343 = vmatpush1.msra.mxu0 %v325
    %344 = vmatprep.subr.mxu0 0.0
    %345 = vmatpush1.msra.mxu0 %v324
    %346 = vmatprep.subr.mxu0 0.0
    %347 = vmatpush1.msra.mxu0 %v323
    %348 = vmatprep.subr.mxu0 0.0
    %349 = vmatpush1.msra.mxu0 %v322
    %350 = vmatprep.subr.mxu0 0.0
    %351 = vmatpush1.msra.mxu0 %v321
    %352 = vmatprep.subr.mxu0 0.0
    %353 = vmatpush1.msra.mxu0 %v320
    %354 = vmatprep.subr.mxu0 0.0
    %355 = vmatpush1.msra.mxu0 %v319
    %356 = vmatprep.subr.mxu0 0.0
    %357 = vmatpush1.msra.mxu0 %v318
    %358 = vmatprep.subr.mxu0 0.0
    %359 = vmatpush1.msra.mxu0 %v317
    %360 = vmatprep.subr.mxu0 0.0
    %361 = vmatpush1.msra.mxu0 %v316
    %362 = vmatprep.subr.mxu0 0.0
    %363 = vmatpush1.msra.mxu0 %v315
    %364 = vmatprep.subr.mxu0 0.0
    %365 = vmatpush1.msra.mxu0 %v314
    %366 = vmatprep.subr.mxu0 0.0
    %367 = vmatpush1.msra.mxu0 %v313
    %368 = vmatprep.subr.mxu0 0.0
    %369 = vmatpush2.msra.mxu0 0.0
    %370 = vmatprep.subr.mxu0 0.0
    %371 = vmatpush2.msra.mxu0 0.0
    %372 = vmatprep.subr.mxu0 0.0
    %373 = vmatpush2.msra.mxu0 0.0
    %374 = vmatprep.subr.mxu0 0.0
    %375 = vmatpush2.msra.mxu0 0.0
    %376 = vmatprep.subr.mxu0 0.0
    %377 = vmatpush2.msra.mxu0 0.0
    %378 = vmatprep.subr.mxu0 0.0
    %379 = vmatpush2.msra.mxu0 0.0
    %380 = vmatprep.subr.mxu0 0.0
    %381 = vmatpush2.msra.mxu0 0.0
    %382 = vmatprep.subr.mxu0 0.0
    %383 = vmatpush2.msra.mxu0 0.0
    %384 = vmatprep.subr.mxu0 0.0
    %385 = vmatpush2.msra.mxu0 0.0
    %386 = vmatprep.subr.mxu0 0.0
    %387 = vmatpush2.msra.mxu0 0.0
    %388 = vmatprep.subr.mxu0 0.0
    %389 = vmatpush2.msra.mxu0 0.0
    %390 = vmatprep.subr.mxu0 0.0
    %391 = vmatpush2.msra.mxu0 0.0
    %392 = vmatprep.subr.mxu0 0.0
    %393 = vmatpush2.msra.mxu0 0.0
    %394 = vmatprep.subr.mxu0 0.0
    %395 = vmatpush2.msra.mxu0 0.0
    %396 = vmatprep.subr.mxu0 0.0
    %397 = vmatpush2.msra.mxu0 0.0
    %398 = vmatprep.subr.mxu0 0.0
    %399 = vmatpush2.msra.mxu0 0.0
    %400 = vmatprep.mubr.f32.mxu0 0.0
    %401 = vmatmul.mubr.f32.gmra.mxu0 %v310
    %v402 = vpop.f32.mrf.mxu0
    %v403 = vadd.f32 %v334, %v402
    %v404 = vpop.f32.mrf.mxu0
    %405 = vdwg.mxu0
    %vm406 = vcmask 9216
    %407 = vst.msk [vmem:[#allocation2] sm:$0x3] %vm406, %v403
    // Predicated region
    $region38: #{_lambda_.9} parent=1 // pred_check
      _
    $region39: #{_lambda_.9} parent=1 // pred_check_branch
      %409 = sbr.rel (0) target = $region41
    $region40: #{_lambda_.9} parent=1 // pred_region
      %s411 = ssub.s32 32, 32
      %412 = vsyncadd [#allocation3], %s411
      %s414 = sshll.u32 [#allocation2], 4
      %s415 = int_to_ptr.vmem [resolvable:$true] %s414
      %417 = dma.vmem_to_hbm [thread:$0]  %s415, 32, %s9, [#allocation3]
    $region41: #{_lambda_.9} parent=1 // pred_fallthru
      _
    // Predicated region
    $region42: #{_lambda_.9} parent=1 // pred_check
      _
    $region43: #{_lambda_.9} parent=1 // pred_check_branch
      %419 = sbr.rel (0) target = $region45
    $region44: #{_lambda_.9} parent=1 // pred_region
      %420 = dma.done [#allocation3], 32
    $region45: #{_lambda_.9} parent=1 // pred_fallthru
      _
    %421 = vsyncpa [#allocation3], 1

</llo_original>
